<compile_context>
chip_gen: v7x
topology: tpu7x:2x2x1
jax: 0.10.0
libtpu: 0.0.40
codegen_flags: <defaults>
</compile_context>

<pallas_src>
import functools

import jax
import jax.numpy as jnp
from jax.experimental import pallas as pl
from jax.experimental.pallas import tpu as pltpu

BN_EPS = 1e-5
N_BLOCKS = 2                    # ResNet layer1 = 2 BasicBlocks, stride 1, no downsample
N_CONVS = 2 * N_BLOCKS


# ----------------------------------------------------------------------------
# Fused Pallas kernel: whole layer1 for a batch of B images, resident in VMEM.
# ----------------------------------------------------------------------------
def _layer1_fused_kernel(x_ref, w_ref, b_ref, o_ref, pad_ref, *, B, H, W, C):
    # x_ref  : (B, H, W, C)          f32  input activations (NHWC)
    # w_ref  : (N_CONVS*3, 3*C, C)   bf16 conv weights with BN scale folded in;
    #                                matrix [conv*3 + kh] has rows (kw*C + cin),
    #                                columns cout.
    # b_ref  : (N_CONVS, 1, C)       f32  folded BN bias per conv
    # o_ref  : (B, H, W, C)          f32  output activations (NHWC)
    # pad_ref: (B, H+2, W+2, C)      f32  VMEM scratch holding the zero-padded act
    M = B * H * W
    mxu_dtype = jnp.bfloat16

    # Re-zero the padded scratch every grid step.  Scratch is per-core and persists,
    # so a program_id==0 guard would leave a garbage halo on the second TensorCore
    # under "parallel" grid partitioning.  Only the 1-pixel halo actually needs the
    # zeros; the interior is rewritten before every conv.  This memset is tiny next
    # to the 12 matmuls per step.
    pad_ref[...] = jnp.zeros_like(pad_ref)

    def conv3x3_bn(act, conv_idx, residual, relu):
        # act: (B, H, W, C) f32 -> (B, H, W, C) f32
        pad_ref[:, 1:H + 1, 1:W + 1, :] = act            # stage interior in VMEM

        # 3x3 conv (stride 1, pad 1) as 3 MXU matmuls: for each kh, the three kw
        # taps are concatenated along the contraction axis (K = 3*C), so the MXU
        # sees (M, 3C) x (3C, C) with f32 accumulation instead of nine K=C matmuls.
        # TODO(synk): a bf16 pad scratch would halve staging bytes and drop the
        # per-kh cast; kept f32 to stay on the most robust relayout paths.
        acc = None
        for kh in range(3):
            patch = jnp.concatenate(
                [pad_ref[:, kh:kh + H, kw:kw + W, :] for kw in range(3)],
                axis=-1,
            ).reshape(M, 3 * C).astype(mxu_dtype)                       # (M, 3C) bf16
            part = jnp.dot(patch, w_ref[3 * conv_idx + kh],
                           preferred_element_type=jnp.float32)          # (M, C)  f32
            acc = part if acc is None else acc + part

        # BN scale is already folded into the weights; only the bias remains.
        y = (acc + b_ref[conv_idx]).reshape(B, H, W, C)
        if residual is not None:
            y = y + residual
        if relu:
            y = jnp.maximum(y, 0.0)
        return y

    act = x_ref[...].astype(jnp.float32)
    for blk in range(N_BLOCKS):
        identity = act                                   # residual kept in f32
        act = conv3x3_bn(act, 2 * blk, residual=None, relu=True)
        act = conv3x3_bn(act, 2 * blk + 1, residual=identity, relu=True)

    # TODO(synk): a lane-dense (B, H, W*C) out_spec would avoid half-lane masked
    # stores but needs a minor-dim-merging relayout in-kernel; after full fusion
    # this single store is negligible next to the matmuls.
    o_ref[...] = act.astype(o_ref.dtype)


# ----------------------------------------------------------------------------
# Wrapper: BN folding, weight packing, grid/BlockSpec setup.
# ----------------------------------------------------------------------------
def _fold_bn(gamma, beta, mean, var):
    scale = gamma / jnp.sqrt(var + BN_EPS)
    bias = beta - mean * scale
    return scale, bias


def _pack_conv(w_oihw, scale):
    """(Cout, Cin, 3, 3) torch weight * per-Cout BN scale -> (3, 3*Cin, Cout)
    packed as [kh, kw*Cin + cin, cout] to match the kernel's kw-packed K axis."""
    w = w_oihw * scale[:, None, None, None]
    w = jnp.transpose(w, (2, 3, 1, 0))                   # (kh, kw, cin, cout)
    return w.reshape(3, 3 * w.shape[2], w.shape[3])


def _pick_image_block(N, H, W, target_m=512):
    """Largest divisor of N keeping B*H*W near an MXU-friendly M target."""
    best = 1
    for b in range(1, N + 1):
        if N % b == 0 and b * H * W <= max(target_m, H * W):
            best = b
    return best


def layer1_fused(x_nhwc, params):
    N, H, W, C = x_nhwc.shape
    assert len(params) == N_BLOCKS

    # Pack all convs' weights (kw taps along K, BN scale folded) and BN biases.
    w_list, b_list = [], []
    for p in params:
        for w_oihw, g, be, m, v in ((p["w1"], p["g1"], p["be1"], p["m1"], p["v1"]),
                                    (p["w2"], p["g2"], p["be2"], p["m2"], p["v2"])):
            s, b = _fold_bn(g, be, m, v)
            w_list.append(_pack_conv(w_oihw, s))
            b_list.append(b.reshape(1, 1, C))
    w_all = jnp.concatenate(w_list, axis=0).astype(jnp.bfloat16)   # (N_CONVS*3, 3C, C)
    b_all = jnp.concatenate(b_list, axis=0).astype(jnp.float32)    # (N_CONVS, 1, C)

    B = _pick_image_block(N, H, W)
    kernel = functools.partial(_layer1_fused_kernel, B=B, H=H, W=W, C=C)

    return pl.pallas_call(
        kernel,
        out_shape=jax.ShapeDtypeStruct((N, H, W, C), jnp.float32),
        grid=(N // B,),
        in_specs=[
            pl.BlockSpec((B, H, W, C), lambda n: (n, 0, 0, 0)),
            pl.BlockSpec((N_CONVS * 3, 3 * C, C), lambda n: (0, 0, 0)),
            pl.BlockSpec((N_CONVS, 1, C), lambda n: (0, 0, 0)),
        ],
        out_specs=pl.BlockSpec((B, H, W, C), lambda n: (n, 0, 0, 0)),
        scratch_shapes=[pltpu.VMEM((B, H + 2, W + 2, C), jnp.float32)],
        compiler_params=pltpu.CompilerParams(
            dimension_semantics=("parallel",),       # batch axis splits across TCs
            vmem_limit_bytes=32 * 1024 * 1024,
        ),
    )(x_nhwc.astype(jnp.float32), w_all, b_all)


@jax.jit
def layer1_forward(x_nchw, params):
    x = jnp.transpose(x_nchw, (0, 2, 3, 1))        # NCHW -> NHWC for the kernel
    y = layer1_fused(x, params)
    y = jnp.transpose(y, (0, 3, 1, 2))             # NHWC -> NCHW
    flat = y.reshape(y.shape[0], -1)               # torch.nn.Flatten() (C, H, W order)
    # TODO(synk): DoubleOutput definition is not in the source file; assumed to
    # return the flattened encoder output twice.
    return flat, flat


def init_params(key, C):
    blocks = []
    for _ in range(N_BLOCKS):
        key, *ks = jax.random.split(key, 11)
        blocks.append({
            "w1": 0.05 * jax.random.normal(ks[0], (C, C, 3, 3), jnp.float32),
            "w2": 0.05 * jax.random.normal(ks[1], (C, C, 3, 3), jnp.float32),
            "g1": 1.0 + 0.1 * jax.random.normal(ks[2], (C,), jnp.float32),
            "be1": 0.1 * jax.random.normal(ks[3], (C,), jnp.float32),
            "m1": 0.05 * jax.random.normal(ks[4], (C,), jnp.float32),
            "v1": jax.random.uniform(ks[5], (C,), jnp.float32, 0.5, 1.5),
            "g2": 1.0 + 0.1 * jax.random.normal(ks[6], (C,), jnp.float32),
            "be2": 0.1 * jax.random.normal(ks[7], (C,), jnp.float32),
            "m2": 0.05 * jax.random.normal(ks[8], (C,), jnp.float32),
            "v2": jax.random.uniform(ks[9], (C,), jnp.float32, 0.5, 1.5),
        })
    return blocks


# ----------------------------------------------------------------------------
# Pure-JAX reference (mirrors the kernel's precision: BN scale folded into bf16
# weights, bf16 operands, f32 accumulation).
# ----------------------------------------------------------------------------
def _conv3x3_ref(x_nhwc, w_oihw, scale):
    w_hwio = jnp.transpose(w_oihw * scale[:, None, None, None],
                           (2, 3, 1, 0)).astype(jnp.bfloat16)
    return jax.lax.conv_general_dilated(
        x_nhwc.astype(jnp.bfloat16), w_hwio, window_strides=(1, 1), padding="SAME",
        dimension_numbers=("NHWC", "HWIO", "NHWC"),
        preferred_element_type=jnp.float32)


def _basic_block_ref(x, p):
    s1, b1 = _fold_bn(p["g1"], p["be1"], p["m1"], p["v1"])
    s2, b2 = _fold_bn(p["g2"], p["be2"], p["m2"], p["v2"])
    y = jnp.maximum(_conv3x3_ref(x, p["w1"], s1) + b1, 0.0)
    y = _conv3x3_ref(y, p["w2"], s2) + b2 + x
    return jnp.maximum(y, 0.0)


if __name__ == "__main__":
    key = jax.random.PRNGKey(0)
    kx, kp = jax.random.split(key)

    N, C, H, W = 2, 64, 8, 8                      # small shapes; NCHW like PyTorch
    x = jax.random.normal(kx, (N, C, H, W), jnp.float32)
    params = init_params(kp, C)

    out_a, out_b = layer1_forward(x, params)
    jax.block_until_ready(out_a)
    jax.block_until_ready(out_b)

    # Numerical sanity check against the pure-JAX reference.
    xr = jnp.transpose(x, (0, 2, 3, 1))
    for blk in params:
        xr = _basic_block_ref(xr, blk)
    ref = jnp.transpose(xr, (0, 3, 1, 2)).reshape(N, -1)

    assert out_a.shape == (N, C * H * W)
    assert bool(jnp.allclose(out_a, out_b))
    max_err = float(jnp.max(jnp.abs(out_a - ref)))
    assert bool(jnp.allclose(out_a, ref, atol=5e-3, rtol=5e-3)), max_err

    print("KERNEL_OK")
</pallas_src>

<mosaic_0001>
module attributes {stable_mosaic.version = 11 : i64} {
  func.func @_layer1_fused_kernel(%arg0: i32, %arg1: memref<2x8x8x64xf32, #tpu.memory_space<vmem>>, %arg2: memref<12x192x64xbf16, #tpu.memory_space<vmem>>, %arg3: memref<4x1x64xf32, #tpu.memory_space<vmem>>, %arg4: memref<2x8x8x64xf32, #tpu.memory_space<vmem>>, %arg5: memref<2x10x10x64xf32, #tpu.memory_space<vmem>>) attributes {dimension_semantics = [#tpu.dimension_semantics<parallel>], iteration_bounds = array<i64: 1>, scalar_prefetch = 0 : i64, scratch_operands = 1 : i64, tpu.core_type = #tpu.core_type<tc>, window_params = [{transform_indices = @transform_0, window_bounds = array<i64: 2, 8, 8, 64>}, {pipeline_mode = #tpu.pipeline_mode<synchronous>, transform_indices = @transform_1, window_bounds = array<i64: 12, 192, 64>}, {pipeline_mode = #tpu.pipeline_mode<synchronous>, transform_indices = @transform_2, window_bounds = array<i64: 4, 1, 64>}, {transform_indices = @transform_3, window_bounds = array<i64: 2, 8, 8, 64>}]} {
    %cst = arith.constant 0.000000e+00 : f32
    %0 = vector.broadcast %cst : f32 to vector<2x10x10x64xf32>
    %c0 = arith.constant 0 : index
    %c0_0 = arith.constant 0 : index
    %c0_1 = arith.constant 0 : index
    %c0_2 = arith.constant 0 : index
    %1 = vector.load %arg5[%c0, %c0_0, %c0_1, %c0_2] : memref<2x10x10x64xf32, #tpu.memory_space<vmem>>, vector<2x10x10x64xf32>
    tpu.vector_store %arg5[%c0, %c0_0, %c0_1, %c0_2], %0 {strides = array<i32>} : memref<2x10x10x64xf32, #tpu.memory_space<vmem>>, vector<2x10x10x64xf32>,
    %c0_3 = arith.constant 0 : index
    %c0_4 = arith.constant 0 : index
    %c0_5 = arith.constant 0 : index
    %c0_6 = arith.constant 0 : index
    %2 = vector.load %arg1[%c0_3, %c0_4, %c0_5, %c0_6] : memref<2x8x8x64xf32, #tpu.memory_space<vmem>>, vector<2x8x8x64xf32>
    %c0_7 = arith.constant 0 : index
    %c1 = arith.constant 1 : index
    %c1_8 = arith.constant 1 : index
    %c0_9 = arith.constant 0 : index
    %3 = vector.load %arg5[%c0_7, %c1, %c1_8, %c0_9] : memref<2x10x10x64xf32, #tpu.memory_space<vmem>>, vector<2x8x8x64xf32>
    tpu.vector_store %arg5[%c0_7, %c1, %c1_8, %c0_9], %2 {strides = array<i32>} : memref<2x10x10x64xf32, #tpu.memory_space<vmem>>, vector<2x8x8x64xf32>,
    %c0_10 = arith.constant 0 : index
    %c0_11 = arith.constant 0 : index
    %c0_12 = arith.constant 0 : index
    %c0_13 = arith.constant 0 : index
    %4 = vector.load %arg5[%c0_10, %c0_11, %c0_12, %c0_13] : memref<2x10x10x64xf32, #tpu.memory_space<vmem>>, vector<2x8x8x64xf32>
    %c0_14 = arith.constant 0 : index
    %c0_15 = arith.constant 0 : index
    %c1_16 = arith.constant 1 : index
    %c0_17 = arith.constant 0 : index
    %5 = vector.load %arg5[%c0_14, %c0_15, %c1_16, %c0_17] : memref<2x10x10x64xf32, #tpu.memory_space<vmem>>, vector<2x8x8x64xf32>
    %c0_18 = arith.constant 0 : index
    %c0_19 = arith.constant 0 : index
    %c2 = arith.constant 2 : index
    %c0_20 = arith.constant 0 : index
    %6 = vector.load %arg5[%c0_18, %c0_19, %c2, %c0_20] : memref<2x10x10x64xf32, #tpu.memory_space<vmem>>, vector<2x8x8x64xf32>
    %7 = tpu.concatenate %4, %5, %6 in 3 : vector<2x8x8x64xf32>, vector<2x8x8x64xf32>, vector<2x8x8x64xf32> -> vector<2x8x8x192xf32>
    %8 = vector.shape_cast %7 : vector<2x8x8x192xf32> to vector<128x192xf32>
    %9 = arith.truncf %8 : vector<128x192xf32> to vector<128x192xbf16>
    %c0_21 = arith.constant 0 : index
    %c0_22 = arith.constant 0 : index
    %c0_23 = arith.constant 0 : index
    %10 = vector.load %arg2[%c0_21, %c0_22, %c0_23] : memref<12x192x64xbf16, #tpu.memory_space<vmem>>, vector<1x192x64xbf16>
    %11 = vector.shape_cast %10 : vector<1x192x64xbf16> to vector<192x64xbf16>
    %cst_24 = arith.constant dense<0.000000e+00> : vector<128x64xf32>
    %12 = tpu.matmul %9, %11, %cst_24 {dimension_numbers = #tpu.dot_dimension_numbers<[1], [0], [0], [1], [0, 0, 1, 1], [], []>} : vector<128x192xbf16>, vector<192x64xbf16>, vector<128x64xf32> -> vector<128x64xf32>
    %c0_25 = arith.constant 0 : index
    %c1_26 = arith.constant 1 : index
    %c0_27 = arith.constant 0 : index
    %c0_28 = arith.constant 0 : index
    %13 = vector.load %arg5[%c0_25, %c1_26, %c0_27, %c0_28] : memref<2x10x10x64xf32, #tpu.memory_space<vmem>>, vector<2x8x8x64xf32>
    %c0_29 = arith.constant 0 : index
    %c1_30 = arith.constant 1 : index
    %c1_31 = arith.constant 1 : index
    %c0_32 = arith.constant 0 : index
    %14 = vector.load %arg5[%c0_29, %c1_30, %c1_31, %c0_32] : memref<2x10x10x64xf32, #tpu.memory_space<vmem>>, vector<2x8x8x64xf32>
    %c0_33 = arith.constant 0 : index
    %c1_34 = arith.constant 1 : index
    %c2_35 = arith.constant 2 : index
    %c0_36 = arith.constant 0 : index
    %15 = vector.load %arg5[%c0_33, %c1_34, %c2_35, %c0_36] : memref<2x10x10x64xf32, #tpu.memory_space<vmem>>, vector<2x8x8x64xf32>
    %16 = tpu.concatenate %13, %14, %15 in 3 : vector<2x8x8x64xf32>, vector<2x8x8x64xf32>, vector<2x8x8x64xf32> -> vector<2x8x8x192xf32>
    %17 = vector.shape_cast %16 : vector<2x8x8x192xf32> to vector<128x192xf32>
    %18 = arith.truncf %17 : vector<128x192xf32> to vector<128x192xbf16>
    %c1_37 = arith.constant 1 : index
    %c0_38 = arith.constant 0 : index
    %c0_39 = arith.constant 0 : index
    %19 = vector.load %arg2[%c1_37, %c0_38, %c0_39] : memref<12x192x64xbf16, #tpu.memory_space<vmem>>, vector<1x192x64xbf16>
    %20 = vector.shape_cast %19 : vector<1x192x64xbf16> to vector<192x64xbf16>
    %cst_40 = arith.constant dense<0.000000e+00> : vector<128x64xf32>
    %21 = tpu.matmul %18, %20, %cst_40 {dimension_numbers = #tpu.dot_dimension_numbers<[1], [0], [0], [1], [0, 0, 1, 1], [], []>} : vector<128x192xbf16>, vector<192x64xbf16>, vector<128x64xf32> -> vector<128x64xf32>
    %22 = arith.addf %12, %21 : vector<128x64xf32>
    %c0_41 = arith.constant 0 : index
    %c2_42 = arith.constant 2 : index
    %c0_43 = arith.constant 0 : index
    %c0_44 = arith.constant 0 : index
    %23 = vector.load %arg5[%c0_41, %c2_42, %c0_43, %c0_44] : memref<2x10x10x64xf32, #tpu.memory_space<vmem>>, vector<2x8x8x64xf32>
    %c0_45 = arith.constant 0 : index
    %c2_46 = arith.constant 2 : index
    %c1_47 = arith.constant 1 : index
    %c0_48 = arith.constant 0 : index
    %24 = vector.load %arg5[%c0_45, %c2_46, %c1_47, %c0_48] : memref<2x10x10x64xf32, #tpu.memory_space<vmem>>, vector<2x8x8x64xf32>
    %c0_49 = arith.constant 0 : index
    %c2_50 = arith.constant 2 : index
    %c2_51 = arith.constant 2 : index
    %c0_52 = arith.constant 0 : index
    %25 = vector.load %arg5[%c0_49, %c2_50, %c2_51, %c0_52] : memref<2x10x10x64xf32, #tpu.memory_space<vmem>>, vector<2x8x8x64xf32>
    %26 = tpu.concatenate %23, %24, %25 in 3 : vector<2x8x8x64xf32>, vector<2x8x8x64xf32>, vector<2x8x8x64xf32> -> vector<2x8x8x192xf32>
    %27 = vector.shape_cast %26 : vector<2x8x8x192xf32> to vector<128x192xf32>
    %28 = arith.truncf %27 : vector<128x192xf32> to vector<128x192xbf16>
    %c2_53 = arith.constant 2 : index
    %c0_54 = arith.constant 0 : index
    %c0_55 = arith.constant 0 : index
    %29 = vector.load %arg2[%c2_53, %c0_54, %c0_55] : memref<12x192x64xbf16, #tpu.memory_space<vmem>>, vector<1x192x64xbf16>
    %30 = vector.shape_cast %29 : vector<1x192x64xbf16> to vector<192x64xbf16>
    %cst_56 = arith.constant dense<0.000000e+00> : vector<128x64xf32>
    %31 = tpu.matmul %28, %30, %cst_56 {dimension_numbers = #tpu.dot_dimension_numbers<[1], [0], [0], [1], [0, 0, 1, 1], [], []>} : vector<128x192xbf16>, vector<192x64xbf16>, vector<128x64xf32> -> vector<128x64xf32>
    %32 = arith.addf %22, %31 : vector<128x64xf32>
    %c0_57 = arith.constant 0 : index
    %c0_58 = arith.constant 0 : index
    %c0_59 = arith.constant 0 : index
    %33 = vector.load %arg3[%c0_57, %c0_58, %c0_59] : memref<4x1x64xf32, #tpu.memory_space<vmem>>, vector<1x1x64xf32>
    %34 = vector.shape_cast %33 : vector<1x1x64xf32> to vector<1x64xf32>
    %35 = vector.broadcast %34 : vector<1x64xf32> to vector<128x64xf32>
    %36 = arith.addf %32, %35 : vector<128x64xf32>
    %37 = vector.shape_cast %36 : vector<128x64xf32> to vector<2x8x8x64xf32>
    %cst_60 = arith.constant 0.000000e+00 : f32
    %38 = vector.broadcast %cst_60 : f32 to vector<2x8x8x64xf32>
    %39 = arith.maximumf %37, %38 : vector<2x8x8x64xf32>
    %c0_61 = arith.constant 0 : index
    %c1_62 = arith.constant 1 : index
    %c1_63 = arith.constant 1 : index
    %c0_64 = arith.constant 0 : index
    %40 = vector.load %arg5[%c0_61, %c1_62, %c1_63, %c0_64] : memref<2x10x10x64xf32, #tpu.memory_space<vmem>>, vector<2x8x8x64xf32>
    tpu.vector_store %arg5[%c0_61, %c1_62, %c1_63, %c0_64], %39 {strides = array<i32>} : memref<2x10x10x64xf32, #tpu.memory_space<vmem>>, vector<2x8x8x64xf32>,
    %c0_65 = arith.constant 0 : index
    %c0_66 = arith.constant 0 : index
    %c0_67 = arith.constant 0 : index
    %c0_68 = arith.constant 0 : index
    %41 = vector.load %arg5[%c0_65, %c0_66, %c0_67, %c0_68] : memref<2x10x10x64xf32, #tpu.memory_space<vmem>>, vector<2x8x8x64xf32>
    %c0_69 = arith.constant 0 : index
    %c0_70 = arith.constant 0 : index
    %c1_71 = arith.constant 1 : index
    %c0_72 = arith.constant 0 : index
    %42 = vector.load %arg5[%c0_69, %c0_70, %c1_71, %c0_72] : memref<2x10x10x64xf32, #tpu.memory_space<vmem>>, vector<2x8x8x64xf32>
    %c0_73 = arith.constant 0 : index
    %c0_74 = arith.constant 0 : index
    %c2_75 = arith.constant 2 : index
    %c0_76 = arith.constant 0 : index
    %43 = vector.load %arg5[%c0_73, %c0_74, %c2_75, %c0_76] : memref<2x10x10x64xf32, #tpu.memory_space<vmem>>, vector<2x8x8x64xf32>
    %44 = tpu.concatenate %41, %42, %43 in 3 : vector<2x8x8x64xf32>, vector<2x8x8x64xf32>, vector<2x8x8x64xf32> -> vector<2x8x8x192xf32>
    %45 = vector.shape_cast %44 : vector<2x8x8x192xf32> to vector<128x192xf32>
    %46 = arith.truncf %45 : vector<128x192xf32> to vector<128x192xbf16>
    %c3 = arith.constant 3 : index
    %c0_77 = arith.constant 0 : index
    %c0_78 = arith.constant 0 : index
    %47 = vector.load %arg2[%c3, %c0_77, %c0_78] : memref<12x192x64xbf16, #tpu.memory_space<vmem>>, vector<1x192x64xbf16>
    %48 = vector.shape_cast %47 : vector<1x192x64xbf16> to vector<192x64xbf16>
    %cst_79 = arith.constant dense<0.000000e+00> : vector<128x64xf32>
    %49 = tpu.matmul %46, %48, %cst_79 {dimension_numbers = #tpu.dot_dimension_numbers<[1], [0], [0], [1], [0, 0, 1, 1], [], []>} : vector<128x192xbf16>, vector<192x64xbf16>, vector<128x64xf32> -> vector<128x64xf32>
    %c0_80 = arith.constant 0 : index
    %c1_81 = arith.constant 1 : index
    %c0_82 = arith.constant 0 : index
    %c0_83 = arith.constant 0 : index
    %50 = vector.load %arg5[%c0_80, %c1_81, %c0_82, %c0_83] : memref<2x10x10x64xf32, #tpu.memory_space<vmem>>, vector<2x8x8x64xf32>
    %c0_84 = arith.constant 0 : index
    %c1_85 = arith.constant 1 : index
    %c1_86 = arith.constant 1 : index
    %c0_87 = arith.constant 0 : index
    %51 = vector.load %arg5[%c0_84, %c1_85, %c1_86, %c0_87] : memref<2x10x10x64xf32, #tpu.memory_space<vmem>>, vector<2x8x8x64xf32>
    %c0_88 = arith.constant 0 : index
    %c1_89 = arith.constant 1 : index
    %c2_90 = arith.constant 2 : index
    %c0_91 = arith.constant 0 : index
    %52 = vector.load %arg5[%c0_88, %c1_89, %c2_90, %c0_91] : memref<2x10x10x64xf32, #tpu.memory_space<vmem>>, vector<2x8x8x64xf32>
    %53 = tpu.concatenate %50, %51, %52 in 3 : vector<2x8x8x64xf32>, vector<2x8x8x64xf32>, vector<2x8x8x64xf32> -> vector<2x8x8x192xf32>
    %54 = vector.shape_cast %53 : vector<2x8x8x192xf32> to vector<128x192xf32>
    %55 = arith.truncf %54 : vector<128x192xf32> to vector<128x192xbf16>
    %c4 = arith.constant 4 : index
    %c0_92 = arith.constant 0 : index
    %c0_93 = arith.constant 0 : index
    %56 = vector.load %arg2[%c4, %c0_92, %c0_93] : memref<12x192x64xbf16, #tpu.memory_space<vmem>>, vector<1x192x64xbf16>
    %57 = vector.shape_cast %56 : vector<1x192x64xbf16> to vector<192x64xbf16>
    %cst_94 = arith.constant dense<0.000000e+00> : vector<128x64xf32>
    %58 = tpu.matmul %55, %57, %cst_94 {dimension_numbers = #tpu.dot_dimension_numbers<[1], [0], [0], [1], [0, 0, 1, 1], [], []>} : vector<128x192xbf16>, vector<192x64xbf16>, vector<128x64xf32> -> vector<128x64xf32>
    %59 = arith.addf %49, %58 : vector<128x64xf32>
    %c0_95 = arith.constant 0 : index
    %c2_96 = arith.constant 2 : index
    %c0_97 = arith.constant 0 : index
    %c0_98 = arith.constant 0 : index
    %60 = vector.load %arg5[%c0_95, %c2_96, %c0_97, %c0_98] : memref<2x10x10x64xf32, #tpu.memory_space<vmem>>, vector<2x8x8x64xf32>
    %c0_99 = arith.constant 0 : index
    %c2_100 = arith.constant 2 : index
    %c1_101 = arith.constant 1 : index
    %c0_102 = arith.constant 0 : index
    %61 = vector.load %arg5[%c0_99, %c2_100, %c1_101, %c0_102] : memref<2x10x10x64xf32, #tpu.memory_space<vmem>>, vector<2x8x8x64xf32>
    %c0_103 = arith.constant 0 : index
    %c2_104 = arith.constant 2 : index
    %c2_105 = arith.constant 2 : index
    %c0_106 = arith.constant 0 : index
    %62 = vector.load %arg5[%c0_103, %c2_104, %c2_105, %c0_106] : memref<2x10x10x64xf32, #tpu.memory_space<vmem>>, vector<2x8x8x64xf32>
    %63 = tpu.concatenate %60, %61, %62 in 3 : vector<2x8x8x64xf32>, vector<2x8x8x64xf32>, vector<2x8x8x64xf32> -> vector<2x8x8x192xf32>
    %64 = vector.shape_cast %63 : vector<2x8x8x192xf32> to vector<128x192xf32>
    %65 = arith.truncf %64 : vector<128x192xf32> to vector<128x192xbf16>
    %c5 = arith.constant 5 : index
    %c0_107 = arith.constant 0 : index
    %c0_108 = arith.constant 0 : index
    %66 = vector.load %arg2[%c5, %c0_107, %c0_108] : memref<12x192x64xbf16, #tpu.memory_space<vmem>>, vector<1x192x64xbf16>
    %67 = vector.shape_cast %66 : vector<1x192x64xbf16> to vector<192x64xbf16>
    %cst_109 = arith.constant dense<0.000000e+00> : vector<128x64xf32>
    %68 = tpu.matmul %65, %67, %cst_109 {dimension_numbers = #tpu.dot_dimension_numbers<[1], [0], [0], [1], [0, 0, 1, 1], [], []>} : vector<128x192xbf16>, vector<192x64xbf16>, vector<128x64xf32> -> vector<128x64xf32>
    %69 = arith.addf %59, %68 : vector<128x64xf32>
    %c1_110 = arith.constant 1 : index
    %c0_111 = arith.constant 0 : index
    %c0_112 = arith.constant 0 : index
    %70 = vector.load %arg3[%c1_110, %c0_111, %c0_112] : memref<4x1x64xf32, #tpu.memory_space<vmem>>, vector<1x1x64xf32>
    %71 = vector.shape_cast %70 : vector<1x1x64xf32> to vector<1x64xf32>
    %72 = vector.broadcast %71 : vector<1x64xf32> to vector<128x64xf32>
    %73 = arith.addf %69, %72 : vector<128x64xf32>
    %74 = vector.shape_cast %73 : vector<128x64xf32> to vector<2x8x8x64xf32>
    %75 = arith.addf %74, %2 : vector<2x8x8x64xf32>
    %cst_113 = arith.constant 0.000000e+00 : f32
    %76 = vector.broadcast %cst_113 : f32 to vector<2x8x8x64xf32>
    %77 = arith.maximumf %75, %76 : vector<2x8x8x64xf32>
    %c0_114 = arith.constant 0 : index
    %c1_115 = arith.constant 1 : index
    %c1_116 = arith.constant 1 : index
    %c0_117 = arith.constant 0 : index
    %78 = vector.load %arg5[%c0_114, %c1_115, %c1_116, %c0_117] : memref<2x10x10x64xf32, #tpu.memory_space<vmem>>, vector<2x8x8x64xf32>
    tpu.vector_store %arg5[%c0_114, %c1_115, %c1_116, %c0_117], %77 {strides = array<i32>} : memref<2x10x10x64xf32, #tpu.memory_space<vmem>>, vector<2x8x8x64xf32>,
    %c0_118 = arith.constant 0 : index
    %c0_119 = arith.constant 0 : index
    %c0_120 = arith.constant 0 : index
    %c0_121 = arith.constant 0 : index
    %79 = vector.load %arg5[%c0_118, %c0_119, %c0_120, %c0_121] : memref<2x10x10x64xf32, #tpu.memory_space<vmem>>, vector<2x8x8x64xf32>
    %c0_122 = arith.constant 0 : index
    %c0_123 = arith.constant 0 : index
    %c1_124 = arith.constant 1 : index
    %c0_125 = arith.constant 0 : index
    %80 = vector.load %arg5[%c0_122, %c0_123, %c1_124, %c0_125] : memref<2x10x10x64xf32, #tpu.memory_space<vmem>>, vector<2x8x8x64xf32>
    %c0_126 = arith.constant 0 : index
    %c0_127 = arith.constant 0 : index
    %c2_128 = arith.constant 2 : index
    %c0_129 = arith.constant 0 : index
    %81 = vector.load %arg5[%c0_126, %c0_127, %c2_128, %c0_129] : memref<2x10x10x64xf32, #tpu.memory_space<vmem>>, vector<2x8x8x64xf32>
    %82 = tpu.concatenate %79, %80, %81 in 3 : vector<2x8x8x64xf32>, vector<2x8x8x64xf32>, vector<2x8x8x64xf32> -> vector<2x8x8x192xf32>
    %83 = vector.shape_cast %82 : vector<2x8x8x192xf32> to vector<128x192xf32>
    %84 = arith.truncf %83 : vector<128x192xf32> to vector<128x192xbf16>
    %c6 = arith.constant 6 : index
    %c0_130 = arith.constant 0 : index
    %c0_131 = arith.constant 0 : index
    %85 = vector.load %arg2[%c6, %c0_130, %c0_131] : memref<12x192x64xbf16, #tpu.memory_space<vmem>>, vector<1x192x64xbf16>
    %86 = vector.shape_cast %85 : vector<1x192x64xbf16> to vector<192x64xbf16>
    %cst_132 = arith.constant dense<0.000000e+00> : vector<128x64xf32>
    %87 = tpu.matmul %84, %86, %cst_132 {dimension_numbers = #tpu.dot_dimension_numbers<[1], [0], [0], [1], [0, 0, 1, 1], [], []>} : vector<128x192xbf16>, vector<192x64xbf16>, vector<128x64xf32> -> vector<128x64xf32>
    %c0_133 = arith.constant 0 : index
    %c1_134 = arith.constant 1 : index
    %c0_135 = arith.constant 0 : index
    %c0_136 = arith.constant 0 : index
    %88 = vector.load %arg5[%c0_133, %c1_134, %c0_135, %c0_136] : memref<2x10x10x64xf32, #tpu.memory_space<vmem>>, vector<2x8x8x64xf32>
    %c0_137 = arith.constant 0 : index
    %c1_138 = arith.constant 1 : index
    %c1_139 = arith.constant 1 : index
    %c0_140 = arith.constant 0 : index
    %89 = vector.load %arg5[%c0_137, %c1_138, %c1_139, %c0_140] : memref<2x10x10x64xf32, #tpu.memory_space<vmem>>, vector<2x8x8x64xf32>
    %c0_141 = arith.constant 0 : index
    %c1_142 = arith.constant 1 : index
    %c2_143 = arith.constant 2 : index
    %c0_144 = arith.constant 0 : index
    %90 = vector.load %arg5[%c0_141, %c1_142, %c2_143, %c0_144] : memref<2x10x10x64xf32, #tpu.memory_space<vmem>>, vector<2x8x8x64xf32>
    %91 = tpu.concatenate %88, %89, %90 in 3 : vector<2x8x8x64xf32>, vector<2x8x8x64xf32>, vector<2x8x8x64xf32> -> vector<2x8x8x192xf32>
    %92 = vector.shape_cast %91 : vector<2x8x8x192xf32> to vector<128x192xf32>
    %93 = arith.truncf %92 : vector<128x192xf32> to vector<128x192xbf16>
    %c7 = arith.constant 7 : index
    %c0_145 = arith.constant 0 : index
    %c0_146 = arith.constant 0 : index
    %94 = vector.load %arg2[%c7, %c0_145, %c0_146] : memref<12x192x64xbf16, #tpu.memory_space<vmem>>, vector<1x192x64xbf16>
    %95 = vector.shape_cast %94 : vector<1x192x64xbf16> to vector<192x64xbf16>
    %cst_147 = arith.constant dense<0.000000e+00> : vector<128x64xf32>
    %96 = tpu.matmul %93, %95, %cst_147 {dimension_numbers = #tpu.dot_dimension_numbers<[1], [0], [0], [1], [0, 0, 1, 1], [], []>} : vector<128x192xbf16>, vector<192x64xbf16>, vector<128x64xf32> -> vector<128x64xf32>
    %97 = arith.addf %87, %96 : vector<128x64xf32>
    %c0_148 = arith.constant 0 : index
    %c2_149 = arith.constant 2 : index
    %c0_150 = arith.constant 0 : index
    %c0_151 = arith.constant 0 : index
    %98 = vector.load %arg5[%c0_148, %c2_149, %c0_150, %c0_151] : memref<2x10x10x64xf32, #tpu.memory_space<vmem>>, vector<2x8x8x64xf32>
    %c0_152 = arith.constant 0 : index
    %c2_153 = arith.constant 2 : index
    %c1_154 = arith.constant 1 : index
    %c0_155 = arith.constant 0 : index
    %99 = vector.load %arg5[%c0_152, %c2_153, %c1_154, %c0_155] : memref<2x10x10x64xf32, #tpu.memory_space<vmem>>, vector<2x8x8x64xf32>
    %c0_156 = arith.constant 0 : index
    %c2_157 = arith.constant 2 : index
    %c2_158 = arith.constant 2 : index
    %c0_159 = arith.constant 0 : index
    %100 = vector.load %arg5[%c0_156, %c2_157, %c2_158, %c0_159] : memref<2x10x10x64xf32, #tpu.memory_space<vmem>>, vector<2x8x8x64xf32>
    %101 = tpu.concatenate %98, %99, %100 in 3 : vector<2x8x8x64xf32>, vector<2x8x8x64xf32>, vector<2x8x8x64xf32> -> vector<2x8x8x192xf32>
    %102 = vector.shape_cast %101 : vector<2x8x8x192xf32> to vector<128x192xf32>
    %103 = arith.truncf %102 : vector<128x192xf32> to vector<128x192xbf16>
    %c8 = arith.constant 8 : index
    %c0_160 = arith.constant 0 : index
    %c0_161 = arith.constant 0 : index
    %104 = vector.load %arg2[%c8, %c0_160, %c0_161] : memref<12x192x64xbf16, #tpu.memory_space<vmem>>, vector<1x192x64xbf16>
    %105 = vector.shape_cast %104 : vector<1x192x64xbf16> to vector<192x64xbf16>
    %cst_162 = arith.constant dense<0.000000e+00> : vector<128x64xf32>
    %106 = tpu.matmul %103, %105, %cst_162 {dimension_numbers = #tpu.dot_dimension_numbers<[1], [0], [0], [1], [0, 0, 1, 1], [], []>} : vector<128x192xbf16>, vector<192x64xbf16>, vector<128x64xf32> -> vector<128x64xf32>
    %107 = arith.addf %97, %106 : vector<128x64xf32>
    %c2_163 = arith.constant 2 : index
    %c0_164 = arith.constant 0 : index
    %c0_165 = arith.constant 0 : index
    %108 = vector.load %arg3[%c2_163, %c0_164, %c0_165] : memref<4x1x64xf32, #tpu.memory_space<vmem>>, vector<1x1x64xf32>
    %109 = vector.shape_cast %108 : vector<1x1x64xf32> to vector<1x64xf32>
    %110 = vector.broadcast %109 : vector<1x64xf32> to vector<128x64xf32>
    %111 = arith.addf %107, %110 : vector<128x64xf32>
    %112 = vector.shape_cast %111 : vector<128x64xf32> to vector<2x8x8x64xf32>
    %cst_166 = arith.constant 0.000000e+00 : f32
    %113 = vector.broadcast %cst_166 : f32 to vector<2x8x8x64xf32>
    %114 = arith.maximumf %112, %113 : vector<2x8x8x64xf32>
    %c0_167 = arith.constant 0 : index
    %c1_168 = arith.constant 1 : index
    %c1_169 = arith.constant 1 : index
    %c0_170 = arith.constant 0 : index
    %115 = vector.load %arg5[%c0_167, %c1_168, %c1_169, %c0_170] : memref<2x10x10x64xf32, #tpu.memory_space<vmem>>, vector<2x8x8x64xf32>
    tpu.vector_store %arg5[%c0_167, %c1_168, %c1_169, %c0_170], %114 {strides = array<i32>} : memref<2x10x10x64xf32, #tpu.memory_space<vmem>>, vector<2x8x8x64xf32>,
    %c0_171 = arith.constant 0 : index
    %c0_172 = arith.constant 0 : index
    %c0_173 = arith.constant 0 : index
    %c0_174 = arith.constant 0 : index
    %116 = vector.load %arg5[%c0_171, %c0_172, %c0_173, %c0_174] : memref<2x10x10x64xf32, #tpu.memory_space<vmem>>, vector<2x8x8x64xf32>
    %c0_175 = arith.constant 0 : index
    %c0_176 = arith.constant 0 : index
    %c1_177 = arith.constant 1 : index
    %c0_178 = arith.constant 0 : index
    %117 = vector.load %arg5[%c0_175, %c0_176, %c1_177, %c0_178] : memref<2x10x10x64xf32, #tpu.memory_space<vmem>>, vector<2x8x8x64xf32>
    %c0_179 = arith.constant 0 : index
    %c0_180 = arith.constant 0 : index
    %c2_181 = arith.constant 2 : index
    %c0_182 = arith.constant 0 : index
    %118 = vector.load %arg5[%c0_179, %c0_180, %c2_181, %c0_182] : memref<2x10x10x64xf32, #tpu.memory_space<vmem>>, vector<2x8x8x64xf32>
    %119 = tpu.concatenate %116, %117, %118 in 3 : vector<2x8x8x64xf32>, vector<2x8x8x64xf32>, vector<2x8x8x64xf32> -> vector<2x8x8x192xf32>
    %120 = vector.shape_cast %119 : vector<2x8x8x192xf32> to vector<128x192xf32>
    %121 = arith.truncf %120 : vector<128x192xf32> to vector<128x192xbf16>
    %c9 = arith.constant 9 : index
    %c0_183 = arith.constant 0 : index
    %c0_184 = arith.constant 0 : index
    %122 = vector.load %arg2[%c9, %c0_183, %c0_184] : memref<12x192x64xbf16, #tpu.memory_space<vmem>>, vector<1x192x64xbf16>
    %123 = vector.shape_cast %122 : vector<1x192x64xbf16> to vector<192x64xbf16>
    %cst_185 = arith.constant dense<0.000000e+00> : vector<128x64xf32>
    %124 = tpu.matmul %121, %123, %cst_185 {dimension_numbers = #tpu.dot_dimension_numbers<[1], [0], [0], [1], [0, 0, 1, 1], [], []>} : vector<128x192xbf16>, vector<192x64xbf16>, vector<128x64xf32> -> vector<128x64xf32>
    %c0_186 = arith.constant 0 : index
    %c1_187 = arith.constant 1 : index
    %c0_188 = arith.constant 0 : index
    %c0_189 = arith.constant 0 : index
    %125 = vector.load %arg5[%c0_186, %c1_187, %c0_188, %c0_189] : memref<2x10x10x64xf32, #tpu.memory_space<vmem>>, vector<2x8x8x64xf32>
    %c0_190 = arith.constant 0 : index
    %c1_191 = arith.constant 1 : index
    %c1_192 = arith.constant 1 : index
    %c0_193 = arith.constant 0 : index
    %126 = vector.load %arg5[%c0_190, %c1_191, %c1_192, %c0_193] : memref<2x10x10x64xf32, #tpu.memory_space<vmem>>, vector<2x8x8x64xf32>
    %c0_194 = arith.constant 0 : index
    %c1_195 = arith.constant 1 : index
    %c2_196 = arith.constant 2 : index
    %c0_197 = arith.constant 0 : index
    %127 = vector.load %arg5[%c0_194, %c1_195, %c2_196, %c0_197] : memref<2x10x10x64xf32, #tpu.memory_space<vmem>>, vector<2x8x8x64xf32>
    %128 = tpu.concatenate %125, %126, %127 in 3 : vector<2x8x8x64xf32>, vector<2x8x8x64xf32>, vector<2x8x8x64xf32> -> vector<2x8x8x192xf32>
    %129 = vector.shape_cast %128 : vector<2x8x8x192xf32> to vector<128x192xf32>
    %130 = arith.truncf %129 : vector<128x192xf32> to vector<128x192xbf16>
    %c10 = arith.constant 10 : index
    %c0_198 = arith.constant 0 : index
    %c0_199 = arith.constant 0 : index
    %131 = vector.load %arg2[%c10, %c0_198, %c0_199] : memref<12x192x64xbf16, #tpu.memory_space<vmem>>, vector<1x192x64xbf16>
    %132 = vector.shape_cast %131 : vector<1x192x64xbf16> to vector<192x64xbf16>
    %cst_200 = arith.constant dense<0.000000e+00> : vector<128x64xf32>
    %133 = tpu.matmul %130, %132, %cst_200 {dimension_numbers = #tpu.dot_dimension_numbers<[1], [0], [0], [1], [0, 0, 1, 1], [], []>} : vector<128x192xbf16>, vector<192x64xbf16>, vector<128x64xf32> -> vector<128x64xf32>
    %134 = arith.addf %124, %133 : vector<128x64xf32>
    %c0_201 = arith.constant 0 : index
    %c2_202 = arith.constant 2 : index
    %c0_203 = arith.constant 0 : index
    %c0_204 = arith.constant 0 : index
    %135 = vector.load %arg5[%c0_201, %c2_202, %c0_203, %c0_204] : memref<2x10x10x64xf32, #tpu.memory_space<vmem>>, vector<2x8x8x64xf32>
    %c0_205 = arith.constant 0 : index
    %c2_206 = arith.constant 2 : index
    %c1_207 = arith.constant 1 : index
    %c0_208 = arith.constant 0 : index
    %136 = vector.load %arg5[%c0_205, %c2_206, %c1_207, %c0_208] : memref<2x10x10x64xf32, #tpu.memory_space<vmem>>, vector<2x8x8x64xf32>
    %c0_209 = arith.constant 0 : index
    %c2_210 = arith.constant 2 : index
    %c2_211 = arith.constant 2 : index
    %c0_212 = arith.constant 0 : index
    %137 = vector.load %arg5[%c0_209, %c2_210, %c2_211, %c0_212] : memref<2x10x10x64xf32, #tpu.memory_space<vmem>>, vector<2x8x8x64xf32>
    %138 = tpu.concatenate %135, %136, %137 in 3 : vector<2x8x8x64xf32>, vector<2x8x8x64xf32>, vector<2x8x8x64xf32> -> vector<2x8x8x192xf32>
    %139 = vector.shape_cast %138 : vector<2x8x8x192xf32> to vector<128x192xf32>
    %140 = arith.truncf %139 : vector<128x192xf32> to vector<128x192xbf16>
    %c11 = arith.constant 11 : index
    %c0_213 = arith.constant 0 : index
    %c0_214 = arith.constant 0 : index
    %141 = vector.load %arg2[%c11, %c0_213, %c0_214] : memref<12x192x64xbf16, #tpu.memory_space<vmem>>, vector<1x192x64xbf16>
    %142 = vector.shape_cast %141 : vector<1x192x64xbf16> to vector<192x64xbf16>
    %cst_215 = arith.constant dense<0.000000e+00> : vector<128x64xf32>
    %143 = tpu.matmul %140, %142, %cst_215 {dimension_numbers = #tpu.dot_dimension_numbers<[1], [0], [0], [1], [0, 0, 1, 1], [], []>} : vector<128x192xbf16>, vector<192x64xbf16>, vector<128x64xf32> -> vector<128x64xf32>
    %144 = arith.addf %134, %143 : vector<128x64xf32>
    %c3_216 = arith.constant 3 : index
    %c0_217 = arith.constant 0 : index
    %c0_218 = arith.constant 0 : index
    %145 = vector.load %arg3[%c3_216, %c0_217, %c0_218] : memref<4x1x64xf32, #tpu.memory_space<vmem>>, vector<1x1x64xf32>
    %146 = vector.shape_cast %145 : vector<1x1x64xf32> to vector<1x64xf32>
    %147 = vector.broadcast %146 : vector<1x64xf32> to vector<128x64xf32>
    %148 = arith.addf %144, %147 : vector<128x64xf32>
    %149 = vector.shape_cast %148 : vector<128x64xf32> to vector<2x8x8x64xf32>
    %150 = arith.addf %149, %77 : vector<2x8x8x64xf32>
    %cst_219 = arith.constant 0.000000e+00 : f32
    %151 = vector.broadcast %cst_219 : f32 to vector<2x8x8x64xf32>
    %152 = arith.maximumf %150, %151 : vector<2x8x8x64xf32>
    %c0_220 = arith.constant 0 : index
    %c0_221 = arith.constant 0 : index
    %c0_222 = arith.constant 0 : index
    %c0_223 = arith.constant 0 : index
    %153 = vector.load %arg4[%c0_220, %c0_221, %c0_222, %c0_223] : memref<2x8x8x64xf32, #tpu.memory_space<vmem>>, vector<2x8x8x64xf32>
    tpu.vector_store %arg4[%c0_220, %c0_221, %c0_222, %c0_223], %152 {strides = array<i32>} : memref<2x8x8x64xf32, #tpu.memory_space<vmem>>, vector<2x8x8x64xf32>,
    return
  }
  func.func @transform_0(%arg0: i32) -> (i32, i32, i32, i32) {
    %c0_i32 = arith.constant 0 : i32
    %c0_i32_0 = arith.constant 0 : i32
    %c0_i32_1 = arith.constant 0 : i32
    %c0_i32_2 = arith.constant 0 : i32
    return %arg0, %c0_i32, %c0_i32_0, %c0_i32_1 : i32, i32, i32, i32
  }
  func.func @transform_1(%arg0: i32) -> (i32, i32, i32) {
    %c0_i32 = arith.constant 0 : i32
    %c0_i32_0 = arith.constant 0 : i32
    %c0_i32_1 = arith.constant 0 : i32
    %c0_i32_2 = arith.constant 0 : i32
    return %c0_i32, %c0_i32_0, %c0_i32_1 : i32, i32, i32
  }
  func.func @transform_2(%arg0: i32) -> (i32, i32, i32) {
    %c0_i32 = arith.constant 0 : i32
    %c0_i32_0 = arith.constant 0 : i32
    %c0_i32_1 = arith.constant 0 : i32
    %c0_i32_2 = arith.constant 0 : i32
    return %c0_i32, %c0_i32_0, %c0_i32_1 : i32, i32, i32
  }
  func.func @transform_3(%arg0: i32) -> (i32, i32, i32, i32) {
    %c0_i32 = arith.constant 0 : i32
    %c0_i32_0 = arith.constant 0 : i32
    %c0_i32_1 = arith.constant 0 : i32
    %c0_i32_2 = arith.constant 0 : i32
    return %arg0, %c0_i32, %c0_i32_0, %c0_i32_1 : i32, i32, i32, i32
  }
}

</mosaic_0001>

<llo_original>
// kernel: layer1_forward.1
$region0: #{layer1_forward.1}
  #allocation0 [shape = 'u32[]', space=smem, size = 0x4, offset = 0x4, fixed_abs, tag = 'smem constant byte address 0x4 - core index']
  #allocation1 [shape = 'u32[144,128]{1,0:T(1,128)}', space=vmem, size = 0x12000, scoped, tag = 'internal scratch']
  #allocation2 [shape = 'f32[2,10,10,64]{3,2,1,0:T(8,128)}', space=vmem, size = 0x28000, scoped, tag = 'scratch operand']
  %s0 = inlined_call_operand.vmem [shape: f32[2,8,8,64], index: 0, kind: input, shape index: {}]
  %s1 = inlined_call_operand.vmem [shape: bf16[12,192,64], index: 1, kind: input, shape index: {}]
  %s2 = inlined_call_operand.vmem [shape: f32[4,1,64], index: 2, kind: input, shape index: {}]
  %s3 = inlined_call_operand.vmem [shape: f32[2,8,8,64], index: 3, kind: output, shape index: {}]
  %s4 = sld [smem:[#allocation0]]
  $region22: #{layer1_forward.1} parent=0
    _
  %s6 = ssub.s32 1, %s4
  %s7 = scalar_select 0, %s6, %s4
  // Predicated region
  $region2: #{layer1_forward.1} parent=0 // pred_check
    _
  $region3: #{layer1_forward.1} parent=0 // pred_check_branch
    %9 = sbr.rel (0) target = $region5
  $region4: #{layer1_forward.1} parent=0 // pred_region
    _
  $region5: #{layer1_forward.1} parent=0 // pred_fallthru
    _
  // Predicated region
  $region6: #{layer1_forward.1} parent=0 // pred_check
    _
  $region7: #{layer1_forward.1} parent=0 // pred_check_branch
    %11 = sbr.rel (0) target = $region9
  $region8: #{layer1_forward.1} parent=0 // pred_region
    _
  $region9: #{layer1_forward.1} parent=0 // pred_fallthru
    _
  // Predicated region
  $region10: #{layer1_forward.1} parent=0 // pred_check
    _
  $region11: #{layer1_forward.1} parent=0 // pred_check_branch
    %13 = sbr.rel (0) target = $region13
  $region12: #{layer1_forward.1} parent=0 // pred_region
    _
  $region13: #{layer1_forward.1} parent=0 // pred_fallthru
    _
  %vm15 = vcmask 523264
  %16 = vst.msk [vmem:[#allocation2] sm:$0xff] %vm15, 0.0
  %vm17 = vcmask 517120
  %18 = vst.msk [vmem:[#allocation2 + $0x8] sm:$0x3] %vm17, 0.0
  %19 = vst.msk [vmem:[#allocation2 + $0x10] sm:$0xff] %vm15, 0.0
  %20 = vst.msk [vmem:[#allocation2 + $0x18] sm:$0x3] %vm17, 0.0
  %21 = vst.msk [vmem:[#allocation2 + $0x20] sm:$0xff] %vm15, 0.0
  %22 = vst.msk [vmem:[#allocation2 + $0x28] sm:$0x3] %vm17, 0.0
  %23 = vst.msk [vmem:[#allocation2 + $0x30] sm:$0xff] %vm15, 0.0
  %24 = vst.msk [vmem:[#allocation2 + $0x38] sm:$0x3] %vm17, 0.0
  %25 = vst.msk [vmem:[#allocation2 + $0x40] sm:$0xff] %vm15, 0.0
  %26 = vst.msk [vmem:[#allocation2 + $0x48] sm:$0x3] %vm17, 0.0
  %27 = vst.msk [vmem:[#allocation2 + $0x50] sm:$0xff] %vm15, 0.0
  %28 = vst.msk [vmem:[#allocation2 + $0x58] sm:$0x3] %vm17, 0.0
  %29 = vst.msk [vmem:[#allocation2 + $0x60] sm:$0xff] %vm15, 0.0
  %30 = vst.msk [vmem:[#allocation2 + $0x68] sm:$0x3] %vm17, 0.0
  %31 = vst.msk [vmem:[#allocation2 + $0x70] sm:$0xff] %vm15, 0.0
  %32 = vst.msk [vmem:[#allocation2 + $0x78] sm:$0x3] %vm17, 0.0
  %33 = vst.msk [vmem:[#allocation2 + $0x80] sm:$0xff] %vm15, 0.0
  %34 = vst.msk [vmem:[#allocation2 + $0x88] sm:$0x3] %vm17, 0.0
  %35 = vst.msk [vmem:[#allocation2 + $0x90] sm:$0xff] %vm15, 0.0
  %36 = vst.msk [vmem:[#allocation2 + $0x98] sm:$0x3] %vm17, 0.0
  %37 = vst.msk [vmem:[#allocation2 + $0xa0] sm:$0xff] %vm15, 0.0
  %38 = vst.msk [vmem:[#allocation2 + $0xa8] sm:$0x3] %vm17, 0.0
  %39 = vst.msk [vmem:[#allocation2 + $0xb0] sm:$0xff] %vm15, 0.0
  %40 = vst.msk [vmem:[#allocation2 + $0xb8] sm:$0x3] %vm17, 0.0
  %41 = vst.msk [vmem:[#allocation2 + $0xc0] sm:$0xff] %vm15, 0.0
  %42 = vst.msk [vmem:[#allocation2 + $0xc8] sm:$0x3] %vm17, 0.0
  %43 = vst.msk [vmem:[#allocation2 + $0xd0] sm:$0xff] %vm15, 0.0
  %44 = vst.msk [vmem:[#allocation2 + $0xd8] sm:$0x3] %vm17, 0.0
  %45 = vst.msk [vmem:[#allocation2 + $0xe0] sm:$0xff] %vm15, 0.0
  %46 = vst.msk [vmem:[#allocation2 + $0xe8] sm:$0x3] %vm17, 0.0
  %47 = vst.msk [vmem:[#allocation2 + $0xf0] sm:$0xff] %vm15, 0.0
  %48 = vst.msk [vmem:[#allocation2 + $0xf8] sm:$0x3] %vm17, 0.0
  %49 = vst.msk [vmem:[#allocation2 + $0x100] sm:$0xff] %vm15, 0.0
  %50 = vst.msk [vmem:[#allocation2 + $0x108] sm:$0x3] %vm17, 0.0
  %51 = vst.msk [vmem:[#allocation2 + $0x110] sm:$0xff] %vm15, 0.0
  %52 = vst.msk [vmem:[#allocation2 + $0x118] sm:$0x3] %vm17, 0.0
  %53 = vst.msk [vmem:[#allocation2 + $0x120] sm:$0xff] %vm15, 0.0
  %54 = vst.msk [vmem:[#allocation2 + $0x128] sm:$0x3] %vm17, 0.0
  %55 = vst.msk [vmem:[#allocation2 + $0x130] sm:$0xff] %vm15, 0.0
  %56 = vst.msk [vmem:[#allocation2 + $0x138] sm:$0x3] %vm17, 0.0
  %v57 = vld [vmem:[%s0] sm:$0xff]
  %v58 = vld [vmem:[%s0 + $0x8] sm:$0xff]
  %v59 = vld [vmem:[%s0 + $0x10] sm:$0xff]
  %v60 = vld [vmem:[%s0 + $0x18] sm:$0xff]
  %v61 = vld [vmem:[%s0 + $0x20] sm:$0xff]
  %v62 = vld [vmem:[%s0 + $0x28] sm:$0xff]
  %v63 = vld [vmem:[%s0 + $0x30] sm:$0xff]
  %v64 = vld [vmem:[%s0 + $0x38] sm:$0xff]
  %v65 = vld [vmem:[%s0 + $0x40] sm:$0xff]
  %v66 = vld [vmem:[%s0 + $0x48] sm:$0xff]
  %v67 = vld [vmem:[%s0 + $0x50] sm:$0xff]
  %v68 = vld [vmem:[%s0 + $0x58] sm:$0xff]
  %v69 = vld [vmem:[%s0 + $0x60] sm:$0xff]
  %v70 = vld [vmem:[%s0 + $0x68] sm:$0xff]
  %v71 = vld [vmem:[%s0 + $0x70] sm:$0xff]
  %v72 = vld [vmem:[%s0 + $0x78] sm:$0xff]
  %s73 = scalar_lea.vmem [#allocation2], 16
  %74 = vst.msk [vmem:[%s73 + $0x1] sm:$0xff] %vm15, %v57
  %75 = vst.msk [vmem:[%s73 + $0x11] sm:$0xff] %vm15, %v58
  %76 = vst.msk [vmem:[%s73 + $0x21] sm:$0xff] %vm15, %v59
  %77 = vst.msk [vmem:[%s73 + $0x31] sm:$0xff] %vm15, %v60
  %78 = vst.msk [vmem:[%s73 + $0x41] sm:$0xff] %vm15, %v61
  %79 = vst.msk [vmem:[%s73 + $0x51] sm:$0xff] %vm15, %v62
  %80 = vst.msk [vmem:[%s73 + $0x61] sm:$0xff] %vm15, %v63
  %81 = vst.msk [vmem:[%s73 + $0x71] sm:$0xff] %vm15, %v64
  %82 = vst.msk [vmem:[%s73 + $0xa1] sm:$0xff] %vm15, %v65
  %83 = vst.msk [vmem:[%s73 + $0xb1] sm:$0xff] %vm15, %v66
  %84 = vst.msk [vmem:[%s73 + $0xc1] sm:$0xff] %vm15, %v67
  %85 = vst.msk [vmem:[%s73 + $0xd1] sm:$0xff] %vm15, %v68
  %86 = vst.msk [vmem:[%s73 + $0xe1] sm:$0xff] %vm15, %v69
  %87 = vst.msk [vmem:[%s73 + $0xf1] sm:$0xff] %vm15, %v70
  %88 = vst.msk [vmem:[%s73 + $0x101] sm:$0xff] %vm15, %v71
  %89 = vst.msk [vmem:[%s73 + $0x111] sm:$0xff] %vm15, %v72
  %v90 = vld [vmem:[#allocation2] sm:$0xff]
  %v91 = vld [vmem:[#allocation2 + $0x10] sm:$0xff]
  %v92 = vld [vmem:[#allocation2 + $0x20] sm:$0xff]
  %v93 = vld [vmem:[#allocation2 + $0x30] sm:$0xff]
  %v94 = vld [vmem:[#allocation2 + $0x40] sm:$0xff]
  %v95 = vld [vmem:[#allocation2 + $0x50] sm:$0xff]
  %v96 = vld [vmem:[#allocation2 + $0x60] sm:$0xff]
  %v97 = vld [vmem:[#allocation2 + $0x70] sm:$0xff]
  %v98 = vld [vmem:[#allocation2 + $0xa0] sm:$0xff]
  %v99 = vld [vmem:[#allocation2 + $0xb0] sm:$0xff]
  %v100 = vld [vmem:[#allocation2 + $0xc0] sm:$0xff]
  %v101 = vld [vmem:[#allocation2 + $0xd0] sm:$0xff]
  %v102 = vld [vmem:[#allocation2 + $0xe0] sm:$0xff]
  %v103 = vld [vmem:[#allocation2 + $0xf0] sm:$0xff]
  %v104 = vld [vmem:[#allocation2 + $0x100] sm:$0xff]
  %v105 = vld [vmem:[#allocation2 + $0x110] sm:$0xff]
  %v106 = vld [vmem:[#allocation2 + $0x1] sm:$0xff]
  %v107 = vld [vmem:[#allocation2 + $0x11] sm:$0xff]
  %v108 = vld [vmem:[#allocation2 + $0x21] sm:$0xff]
  %v109 = vld [vmem:[#allocation2 + $0x31] sm:$0xff]
  %v110 = vld [vmem:[#allocation2 + $0x41] sm:$0xff]
  %v111 = vld [vmem:[#allocation2 + $0x51] sm:$0xff]
  %v112 = vld [vmem:[#allocation2 + $0x61] sm:$0xff]
  %v113 = vld [vmem:[#allocation2 + $0x71] sm:$0xff]
  %v114 = vld [vmem:[#allocation2 + $0xa1] sm:$0xff]
  %v115 = vld [vmem:[#allocation2 + $0xb1] sm:$0xff]
  %v116 = vld [vmem:[#allocation2 + $0xc1] sm:$0xff]
  %v117 = vld [vmem:[#allocation2 + $0xd1] sm:$0xff]
  %v118 = vld [vmem:[#allocation2 + $0xe1] sm:$0xff]
  %v119 = vld [vmem:[#allocation2 + $0xf1] sm:$0xff]
  %v120 = vld [vmem:[#allocation2 + $0x101] sm:$0xff]
  %v121 = vld [vmem:[#allocation2 + $0x111] sm:$0xff]
  %v122 = vld [vmem:[#allocation2 + $0x2] sm:$0xff]
  %v123 = vld [vmem:[#allocation2 + $0x12] sm:$0xff]
  %v124 = vld [vmem:[#allocation2 + $0x22] sm:$0xff]
  %v125 = vld [vmem:[#allocation2 + $0x32] sm:$0xff]
  %v126 = vld [vmem:[#allocation2 + $0x42] sm:$0xff]
  %v127 = vld [vmem:[#allocation2 + $0x52] sm:$0xff]
  %v128 = vld [vmem:[#allocation2 + $0x62] sm:$0xff]
  %v129 = vld [vmem:[#allocation2 + $0x72] sm:$0xff]
  %v130 = vld [vmem:[#allocation2 + $0xa2] sm:$0xff]
  %v131 = vld [vmem:[#allocation2 + $0xb2] sm:$0xff]
  %v132 = vld [vmem:[#allocation2 + $0xc2] sm:$0xff]
  %v133 = vld [vmem:[#allocation2 + $0xd2] sm:$0xff]
  %v134 = vld [vmem:[#allocation2 + $0xe2] sm:$0xff]
  %v135 = vld [vmem:[#allocation2 + $0xf2] sm:$0xff]
  %v136 = vld [vmem:[#allocation2 + $0x102] sm:$0xff]
  %v137 = vld [vmem:[#allocation2 + $0x112] sm:$0xff]
  %154 = vrot.lane.b32.xlu0 %v106, 64
  %v155 = vpop.permute.xlu0 %154
  %156 = vrot.lane.b32.xlu0 %v107, 64
  %v157 = vpop.permute.xlu0 %156
  %158 = vrot.lane.b32.xlu0 %v108, 64
  %v159 = vpop.permute.xlu0 %158
  %160 = vrot.lane.b32.xlu0 %v109, 64
  %v161 = vpop.permute.xlu0 %160
  %162 = vrot.lane.b32.xlu0 %v110, 64
  %v163 = vpop.permute.xlu0 %162
  %164 = vrot.lane.b32.xlu0 %v111, 64
  %v165 = vpop.permute.xlu0 %164
  %166 = vrot.lane.b32.xlu0 %v112, 64
  %v167 = vpop.permute.xlu0 %166
  %168 = vrot.lane.b32.xlu0 %v113, 64
  %v169 = vpop.permute.xlu0 %168
  %170 = vrot.lane.b32.xlu0 %v114, 64
  %v171 = vpop.permute.xlu0 %170
  %172 = vrot.lane.b32.xlu0 %v115, 64
  %v173 = vpop.permute.xlu0 %172
  %174 = vrot.lane.b32.xlu0 %v116, 64
  %v175 = vpop.permute.xlu0 %174
  %176 = vrot.lane.b32.xlu0 %v117, 64
  %v177 = vpop.permute.xlu0 %176
  %178 = vrot.lane.b32.xlu0 %v118, 64
  %v179 = vpop.permute.xlu0 %178
  %180 = vrot.lane.b32.xlu0 %v119, 64
  %v181 = vpop.permute.xlu0 %180
  %182 = vrot.lane.b32.xlu0 %v120, 64
  %v183 = vpop.permute.xlu0 %182
  %184 = vrot.lane.b32.xlu0 %v121, 64
  %v185 = vpop.permute.xlu0 %184
  %v202 = vsel %vm15, %v90, %v155
  %v203 = vsel %vm15, %v91, %v157
  %v204 = vsel %vm15, %v92, %v159
  %v205 = vsel %vm15, %v93, %v161
  %v206 = vsel %vm15, %v94, %v163
  %v207 = vsel %vm15, %v95, %v165
  %v208 = vsel %vm15, %v96, %v167
  %v209 = vsel %vm15, %v97, %v169
  %v210 = vsel %vm15, %v98, %v171
  %v211 = vsel %vm15, %v99, %v173
  %v212 = vsel %vm15, %v100, %v175
  %v213 = vsel %vm15, %v101, %v177
  %v214 = vsel %vm15, %v102, %v179
  %v215 = vsel %vm15, %v103, %v181
  %v216 = vsel %vm15, %v104, %v183
  %v217 = vsel %vm15, %v105, %v185
  %v218 = vpack.c.bf16 %v203, %v202
  %v219 = vpack.c.bf16 %v123, %v122
  %v220 = vpack.c.bf16 %v205, %v204
  %v221 = vpack.c.bf16 %v125, %v124
  %v222 = vpack.c.bf16 %v207, %v206
  %v223 = vpack.c.bf16 %v127, %v126
  %v224 = vpack.c.bf16 %v209, %v208
  %v225 = vpack.c.bf16 %v129, %v128
  %v226 = vpack.c.bf16 %v211, %v210
  %v227 = vpack.c.bf16 %v131, %v130
  %v228 = vpack.c.bf16 %v213, %v212
  %v229 = vpack.c.bf16 %v133, %v132
  %v230 = vpack.c.bf16 %v215, %v214
  %v231 = vpack.c.bf16 %v135, %v134
  %v232 = vpack.c.bf16 %v217, %v216
  %v233 = vpack.c.bf16 %v137, %v136
  %v234 = vld [vmem:[%s1] sm:$0xf]
  %v235 = vld [vmem:[%s1 + $0x4] sm:$0xf]
  %v236 = vld [vmem:[%s1 + $0x8] sm:$0xf]
  %v237 = vld [vmem:[%s1 + $0xc] sm:$0xf]
  %v238 = vld [vmem:[%s1 + $0x10] sm:$0xf]
  %v239 = vld [vmem:[%s1 + $0x14] sm:$0xf]
  %v240 = vld [vmem:[%s1 + $0x18] sm:$0xf]
  %v241 = vld [vmem:[%s1 + $0x1c] sm:$0xf]
  %v242 = vld [vmem:[%s1 + $0x20] sm:$0xf]
  %v243 = vld [vmem:[%s1 + $0x24] sm:$0xf]
  %v244 = vld [vmem:[%s1 + $0x28] sm:$0xf]
  %v245 = vld [vmem:[%s1 + $0x2c] sm:$0xf]
  %v246 = vld [vmem:[%s1 + $0x30] sm:$0xf]
  %v247 = vld [vmem:[%s1 + $0x34] sm:$0xf]
  %v248 = vld [vmem:[%s1 + $0x38] sm:$0xf]
  %v249 = vld [vmem:[%s1 + $0x3c] sm:$0xf]
  %v250 = vld [vmem:[%s1 + $0x40] sm:$0xf]
  %v251 = vld [vmem:[%s1 + $0x44] sm:$0xf]
  %v252 = vld [vmem:[%s1 + $0x48] sm:$0xf]
  %v253 = vld [vmem:[%s1 + $0x4c] sm:$0xf]
  %v254 = vld [vmem:[%s1 + $0x50] sm:$0xf]
  %v255 = vld [vmem:[%s1 + $0x54] sm:$0xf]
  %v256 = vld [vmem:[%s1 + $0x58] sm:$0xf]
  %v257 = vld [vmem:[%s1 + $0x5c] sm:$0xf]
  %v258 = vld [vmem:[%s73] sm:$0xff]
  %v259 = vld [vmem:[%s73 + $0x10] sm:$0xff]
  %v260 = vld [vmem:[%s73 + $0x20] sm:$0xff]
  %v261 = vld [vmem:[%s73 + $0x30] sm:$0xff]
  %v262 = vld [vmem:[%s73 + $0x40] sm:$0xff]
  %v263 = vld [vmem:[%s73 + $0x50] sm:$0xff]
  %v264 = vld [vmem:[%s73 + $0x60] sm:$0xff]
  %v265 = vld [vmem:[%s73 + $0x70] sm:$0xff]
  %v266 = vld [vmem:[%s73 + $0xa0] sm:$0xff]
  %v267 = vld [vmem:[%s73 + $0xb0] sm:$0xff]
  %v268 = vld [vmem:[%s73 + $0xc0] sm:$0xff]
  %v269 = vld [vmem:[%s73 + $0xd0] sm:$0xff]
  %v270 = vld [vmem:[%s73 + $0xe0] sm:$0xff]
  %v271 = vld [vmem:[%s73 + $0xf0] sm:$0xff]
  %v272 = vld [vmem:[%s73 + $0x100] sm:$0xff]
  %v273 = vld [vmem:[%s73 + $0x110] sm:$0xff]
  %v274 = vld [vmem:[%s73 + $0x1] sm:$0xff]
  %v275 = vld [vmem:[%s73 + $0x11] sm:$0xff]
  %v276 = vld [vmem:[%s73 + $0x21] sm:$0xff]
  %v277 = vld [vmem:[%s73 + $0x31] sm:$0xff]
  %v278 = vld [vmem:[%s73 + $0x41] sm:$0xff]
  %v279 = vld [vmem:[%s73 + $0x51] sm:$0xff]
  %v280 = vld [vmem:[%s73 + $0x61] sm:$0xff]
  %v281 = vld [vmem:[%s73 + $0x71] sm:$0xff]
  %v282 = vld [vmem:[%s73 + $0xa1] sm:$0xff]
  %v283 = vld [vmem:[%s73 + $0xb1] sm:$0xff]
  %v284 = vld [vmem:[%s73 + $0xc1] sm:$0xff]
  %v285 = vld [vmem:[%s73 + $0xd1] sm:$0xff]
  %v286 = vld [vmem:[%s73 + $0xe1] sm:$0xff]
  %v287 = vld [vmem:[%s73 + $0xf1] sm:$0xff]
  %v288 = vld [vmem:[%s73 + $0x101] sm:$0xff]
  %v289 = vld [vmem:[%s73 + $0x111] sm:$0xff]
  %v290 = vld [vmem:[%s73 + $0x2] sm:$0xff]
  %v291 = vld [vmem:[%s73 + $0x12] sm:$0xff]
  %v292 = vld [vmem:[%s73 + $0x22] sm:$0xff]
  %v293 = vld [vmem:[%s73 + $0x32] sm:$0xff]
  %v294 = vld [vmem:[%s73 + $0x42] sm:$0xff]
  %v295 = vld [vmem:[%s73 + $0x52] sm:$0xff]
  %v296 = vld [vmem:[%s73 + $0x62] sm:$0xff]
  %v297 = vld [vmem:[%s73 + $0x72] sm:$0xff]
  %v298 = vld [vmem:[%s73 + $0xa2] sm:$0xff]
  %v299 = vld [vmem:[%s73 + $0xb2] sm:$0xff]
  %v300 = vld [vmem:[%s73 + $0xc2] sm:$0xff]
  %v301 = vld [vmem:[%s73 + $0xd2] sm:$0xff]
  %v302 = vld [vmem:[%s73 + $0xe2] sm:$0xff]
  %v303 = vld [vmem:[%s73 + $0xf2] sm:$0xff]
  %v304 = vld [vmem:[%s73 + $0x102] sm:$0xff]
  %v305 = vld [vmem:[%s73 + $0x112] sm:$0xff]
  %322 = vrot.lane.b32.xlu0 %v274, 64
  %v323 = vpop.permute.xlu0 %322
  %324 = vrot.lane.b32.xlu0 %v275, 64
  %v325 = vpop.permute.xlu0 %324
  %326 = vrot.lane.b32.xlu0 %v276, 64
  %v327 = vpop.permute.xlu0 %326
  %328 = vrot.lane.b32.xlu0 %v277, 64
  %v329 = vpop.permute.xlu0 %328
  %330 = vrot.lane.b32.xlu0 %v278, 64
  %v331 = vpop.permute.xlu0 %330
  %332 = vrot.lane.b32.xlu0 %v279, 64
  %v333 = vpop.permute.xlu0 %332
  %334 = vrot.lane.b32.xlu0 %v280, 64
  %v335 = vpop.permute.xlu0 %334
  %336 = vrot.lane.b32.xlu0 %v281, 64
  %v337 = vpop.permute.xlu0 %336
  %338 = vrot.lane.b32.xlu0 %v282, 64
  %v339 = vpop.permute.xlu0 %338
  %340 = vrot.lane.b32.xlu0 %v283, 64
  %v341 = vpop.permute.xlu0 %340
  %342 = vrot.lane.b32.xlu0 %v284, 64
  %v343 = vpop.permute.xlu0 %342
  %344 = vrot.lane.b32.xlu0 %v285, 64
  %v345 = vpop.permute.xlu0 %344
  %346 = vrot.lane.b32.xlu0 %v286, 64
  %v347 = vpop.permute.xlu0 %346
  %348 = vrot.lane.b32.xlu0 %v287, 64
  %v349 = vpop.permute.xlu0 %348
  %350 = vrot.lane.b32.xlu0 %v288, 64
  %v351 = vpop.permute.xlu0 %350
  %352 = vrot.lane.b32.xlu0 %v289, 64
  %v353 = vpop.permute.xlu0 %352
  %v370 = vsel %vm15, %v258, %v323
  %v371 = vsel %vm15, %v259, %v325
  %v372 = vsel %vm15, %v260, %v327
  %v373 = vsel %vm15, %v261, %v329
  %v374 = vsel %vm15, %v262, %v331
  %v375 = vsel %vm15, %v263, %v333
  %v376 = vsel %vm15, %v264, %v335
  %v377 = vsel %vm15, %v265, %v337
  %v378 = vsel %vm15, %v266, %v339
  %v379 = vsel %vm15, %v267, %v341
  %v380 = vsel %vm15, %v268, %v343
  %v381 = vsel %vm15, %v269, %v345
  %v382 = vsel %vm15, %v270, %v347
  %v383 = vsel %vm15, %v271, %v349
  %v384 = vsel %vm15, %v272, %v351
  %v385 = vsel %vm15, %v273, %v353
  %v386 = vpack.c.bf16 %v371, %v370
  %v387 = vpack.c.bf16 %v291, %v290
  %v388 = vpack.c.bf16 %v373, %v372
  %v389 = vpack.c.bf16 %v293, %v292
  %v390 = vpack.c.bf16 %v375, %v374
  %v391 = vpack.c.bf16 %v295, %v294
  %v392 = vpack.c.bf16 %v377, %v376
  %v393 = vpack.c.bf16 %v297, %v296
  %v394 = vpack.c.bf16 %v379, %v378
  %v395 = vpack.c.bf16 %v299, %v298
  %v396 = vpack.c.bf16 %v381, %v380
  %v397 = vpack.c.bf16 %v301, %v300
  %v398 = vpack.c.bf16 %v383, %v382
  %v399 = vpack.c.bf16 %v303, %v302
  %v400 = vpack.c.bf16 %v385, %v384
  %v401 = vpack.c.bf16 %v305, %v304
  %s402 = scalar_lea.vmem %s1, 96
  %v403 = vld [vmem:[%s402] sm:$0xf]
  %v404 = vld [vmem:[%s402 + $0x4] sm:$0xf]
  %v405 = vld [vmem:[%s402 + $0x8] sm:$0xf]
  %v406 = vld [vmem:[%s402 + $0xc] sm:$0xf]
  %v407 = vld [vmem:[%s402 + $0x10] sm:$0xf]
  %v408 = vld [vmem:[%s402 + $0x14] sm:$0xf]
  %v409 = vld [vmem:[%s402 + $0x18] sm:$0xf]
  %v410 = vld [vmem:[%s402 + $0x1c] sm:$0xf]
  %v411 = vld [vmem:[%s402 + $0x20] sm:$0xf]
  %v412 = vld [vmem:[%s402 + $0x24] sm:$0xf]
  %v413 = vld [vmem:[%s402 + $0x28] sm:$0xf]
  %v414 = vld [vmem:[%s402 + $0x2c] sm:$0xf]
  %v415 = vld [vmem:[%s402 + $0x30] sm:$0xf]
  %v416 = vld [vmem:[%s402 + $0x34] sm:$0xf]
  %v417 = vld [vmem:[%s402 + $0x38] sm:$0xf]
  %v418 = vld [vmem:[%s402 + $0x3c] sm:$0xf]
  %v419 = vld [vmem:[%s402 + $0x40] sm:$0xf]
  %v420 = vld [vmem:[%s402 + $0x44] sm:$0xf]
  %v421 = vld [vmem:[%s402 + $0x48] sm:$0xf]
  %v422 = vld [vmem:[%s402 + $0x4c] sm:$0xf]
  %v423 = vld [vmem:[%s402 + $0x50] sm:$0xf]
  %v424 = vld [vmem:[%s402 + $0x54] sm:$0xf]
  %v425 = vld [vmem:[%s402 + $0x58] sm:$0xf]
  %v426 = vld [vmem:[%s402 + $0x5c] sm:$0xf]
  %v451 = vunpack.c.l.b16 %v403
  %v452 = vunpack.c.l.b16 %v404
  %v453 = vunpack.c.l.b16 %v405
  %v454 = vunpack.c.l.b16 %v406
  %v455 = vunpack.c.l.b16 %v407
  %v456 = vunpack.c.l.b16 %v408
  %v457 = vunpack.c.l.b16 %v409
  %v458 = vunpack.c.l.b16 %v410
  %v459 = vunpack.c.l.b16 %v411
  %v460 = vunpack.c.l.b16 %v412
  %v461 = vunpack.c.l.b16 %v413
  %v462 = vunpack.c.l.b16 %v414
  %v463 = vunpack.c.l.b16 %v415
  %v464 = vunpack.c.l.b16 %v416
  %v465 = vunpack.c.l.b16 %v417
  %v466 = vunpack.c.l.b16 %v418
  %v467 = vunpack.c.l.b16 %v419
  %v468 = vunpack.c.l.b16 %v420
  %v469 = vunpack.c.l.b16 %v421
  %v470 = vunpack.c.l.b16 %v422
  %v471 = vunpack.c.l.b16 %v423
  %v472 = vunpack.c.l.b16 %v424
  %v473 = vunpack.c.l.b16 %v425
  %v474 = vunpack.c.l.b16 %v426
  %v475 = vpack.c.b16 %v452, %v451
  %v476 = vpack.c.b16 %v454, %v453
  %v477 = vpack.c.b16 %v456, %v455
  %v478 = vpack.c.b16 %v458, %v457
  %v479 = vpack.c.b16 %v460, %v459
  %v480 = vpack.c.b16 %v462, %v461
  %v481 = vpack.c.b16 %v464, %v463
  %v482 = vpack.c.b16 %v466, %v465
  %v483 = vpack.c.b16 %v468, %v467
  %v484 = vpack.c.b16 %v470, %v469
  %v485 = vpack.c.b16 %v472, %v471
  %v486 = vpack.c.b16 %v474, %v473
  %v500 = vsel %vm15, %v387, 0
  %v503 = vsel %vm15, %v389, 0
  %v506 = vsel %vm15, %v391, 0
  %v509 = vsel %vm15, %v393, 0
  %v512 = vsel %vm15, %v395, 0
  %v515 = vsel %vm15, %v397, 0
  %v518 = vsel %vm15, %v399, 0
  %v521 = vsel %vm15, %v401, 0
  %523 = vmatprep.subr.bf16.mxu0 0
  %524 = vmatpush1.bf16.msra.mxu0 %v475
  %525 = vmatprep.subr.bf16.mxu0 0
  %526 = vmatpush1.bf16.msra.mxu0 %v476
  %527 = vmatprep.subr.bf16.mxu0 0
  %528 = vmatpush1.bf16.msra.mxu0 %v477
  %529 = vmatprep.subr.bf16.mxu0 0
  %530 = vmatpush1.bf16.msra.mxu0 %v478
  %531 = vmatprep.subr.bf16.mxu0 0
  %532 = vmatpush1.bf16.msra.mxu0 %v479
  %533 = vmatprep.subr.bf16.mxu0 0
  %534 = vmatpush1.bf16.msra.mxu0 %v480
  %535 = vmatprep.subr.bf16.mxu0 0
  %536 = vmatpush1.bf16.msra.mxu0 %v481
  %537 = vmatprep.subr.bf16.mxu0 0
  %538 = vmatpush1.bf16.msra.mxu0 %v482
  %539 = vmatprep.subr.bf16.mxu0 0
  %540 = vmatpush1.bf16.msra.mxu0 %v483
  %541 = vmatprep.subr.bf16.mxu0 0
  %542 = vmatpush1.bf16.msra.mxu0 %v484
  %543 = vmatprep.subr.bf16.mxu0 0
  %544 = vmatpush1.bf16.msra.mxu0 %v485
  %545 = vmatprep.subr.bf16.mxu0 0
  %546 = vmatpush1.bf16.msra.mxu0 %v486
  %547 = vmatprep.subr.bf16.mxu0 0
  %548 = vmatpush1.bf16.msra.mxu0 0
  %549 = vmatprep.subr.bf16.mxu0 0
  %550 = vmatpush1.bf16.msra.mxu0 0
  %551 = vmatprep.subr.bf16.mxu0 0
  %552 = vmatpush1.bf16.msra.mxu0 0
  %553 = vmatprep.subr.bf16.mxu0 0
  %554 = vmatpush1.bf16.msra.mxu0 0
  %555 = vmatprep.mubr.bf16.mxu0 %v500
  %556 = vmatmul.mubr.bf16.gmra.mrb[0].mxu0 %v386
  %v557 = vpop.f32.mrb[0].mxu0
  %v558 = vadd.f32 0.0, %v557
  %v559 = vpop.f32.mrb[0].mxu0
  %v560 = vpop.f32.mrb[0].mxu0
  %v561 = vadd.f32 0.0, %v560
  %v562 = vpop.f32.mrb[0].mxu0
  %563 = vmatprep.mubr.bf16.mxu0 %v503
  %564 = vmatmul.mubr.bf16.gmra.mrb[0].mxu0 %v388
  %v565 = vpop.f32.mrb[0].mxu0
  %v566 = vadd.f32 0.0, %v565
  %v567 = vpop.f32.mrb[0].mxu0
  %v568 = vpop.f32.mrb[0].mxu0
  %v569 = vadd.f32 0.0, %v568
  %v570 = vpop.f32.mrb[0].mxu0
  %571 = vmatprep.mubr.bf16.mxu0 %v506
  %572 = vmatmul.mubr.bf16.gmra.mrb[0].mxu0 %v390
  %v573 = vpop.f32.mrb[0].mxu0
  %v574 = vadd.f32 0.0, %v573
  %v575 = vpop.f32.mrb[0].mxu0
  %v576 = vpop.f32.mrb[0].mxu0
  %v577 = vadd.f32 0.0, %v576
  %v578 = vpop.f32.mrb[0].mxu0
  %579 = vmatprep.mubr.bf16.mxu0 %v509
  %580 = vmatmul.mubr.bf16.gmra.mrb[0].mxu0 %v392
  %v581 = vpop.f32.mrb[0].mxu0
  %v582 = vadd.f32 0.0, %v581
  %v583 = vpop.f32.mrb[0].mxu0
  %v584 = vpop.f32.mrb[0].mxu0
  %v585 = vadd.f32 0.0, %v584
  %v586 = vpop.f32.mrb[0].mxu0
  %587 = vmatprep.mubr.bf16.mxu0 %v512
  %588 = vmatmul.mubr.bf16.gmra.mrb[0].mxu0 %v394
  %v589 = vpop.f32.mrb[0].mxu0
  %v590 = vadd.f32 0.0, %v589
  %v591 = vpop.f32.mrb[0].mxu0
  %v592 = vpop.f32.mrb[0].mxu0
  %v593 = vadd.f32 0.0, %v592
  %v594 = vpop.f32.mrb[0].mxu0
  %595 = vmatprep.mubr.bf16.mxu0 %v515
  %596 = vmatmul.mubr.bf16.gmra.mrb[0].mxu0 %v396
  %v597 = vpop.f32.mrb[0].mxu0
  %v598 = vadd.f32 0.0, %v597
  %v599 = vpop.f32.mrb[0].mxu0
  %v600 = vpop.f32.mrb[0].mxu0
  %v601 = vadd.f32 0.0, %v600
  %v602 = vpop.f32.mrb[0].mxu0
  %603 = vmatprep.mubr.bf16.mxu0 %v518
  %604 = vmatmul.mubr.bf16.gmra.mrb[0].mxu0 %v398
  %v605 = vpop.f32.mrb[0].mxu0
  %v606 = vadd.f32 0.0, %v605
  %v607 = vpop.f32.mrb[0].mxu0
  %v608 = vpop.f32.mrb[0].mxu0
  %v609 = vadd.f32 0.0, %v608
  %v610 = vpop.f32.mrb[0].mxu0
  %611 = vmatprep.mubr.bf16.mxu0 %v521
  %612 = vmatmul.mubr.bf16.gmra.mrb[0].mxu0 %v400
  %v613 = vpop.f32.mrb[0].mxu0
  %v614 = vadd.f32 0.0, %v613
  %v615 = vpop.f32.mrb[0].mxu0
  %v616 = vpop.f32.mrb[0].mxu0
  %v617 = vadd.f32 0.0, %v616
  %v618 = vpop.f32.mrb[0].mxu0
  %619 = vdwg.mxu0
  %v644 = vunpack.c.l.b16 %v234
  %v645 = vunpack.c.l.b16 %v235
  %v646 = vunpack.c.l.b16 %v236
  %v647 = vunpack.c.l.b16 %v237
  %v648 = vunpack.c.l.b16 %v238
  %v649 = vunpack.c.l.b16 %v239
  %v650 = vunpack.c.l.b16 %v240
  %v651 = vunpack.c.l.b16 %v241
  %v652 = vunpack.c.l.b16 %v242
  %v653 = vunpack.c.l.b16 %v243
  %v654 = vunpack.c.l.b16 %v244
  %v655 = vunpack.c.l.b16 %v245
  %v656 = vunpack.c.l.b16 %v246
  %v657 = vunpack.c.l.b16 %v247
  %v658 = vunpack.c.l.b16 %v248
  %v659 = vunpack.c.l.b16 %v249
  %v660 = vunpack.c.l.b16 %v250
  %v661 = vunpack.c.l.b16 %v251
  %v662 = vunpack.c.l.b16 %v252
  %v663 = vunpack.c.l.b16 %v253
  %v664 = vunpack.c.l.b16 %v254
  %v665 = vunpack.c.l.b16 %v255
  %v666 = vunpack.c.l.b16 %v256
  %v667 = vunpack.c.l.b16 %v257
  %v668 = vpack.c.b16 %v645, %v644
  %v669 = vpack.c.b16 %v647, %v646
  %v670 = vpack.c.b16 %v649, %v648
  %v671 = vpack.c.b16 %v651, %v650
  %v672 = vpack.c.b16 %v653, %v652
  %v673 = vpack.c.b16 %v655, %v654
  %v674 = vpack.c.b16 %v657, %v656
  %v675 = vpack.c.b16 %v659, %v658
  %v676 = vpack.c.b16 %v661, %v660
  %v677 = vpack.c.b16 %v663, %v662
  %v678 = vpack.c.b16 %v665, %v664
  %v679 = vpack.c.b16 %v667, %v666
  %v693 = vsel %vm15, %v219, 0
  %v696 = vsel %vm15, %v221, 0
  %v699 = vsel %vm15, %v223, 0
  %v702 = vsel %vm15, %v225, 0
  %v705 = vsel %vm15, %v227, 0
  %v708 = vsel %vm15, %v229, 0
  %v711 = vsel %vm15, %v231, 0
  %v714 = vsel %vm15, %v233, 0
  %716 = vmatprep.subr.bf16.mxu0 0
  %717 = vmatpush1.bf16.msra.mxu0 %v668
  %718 = vmatprep.subr.bf16.mxu0 0
  %719 = vmatpush1.bf16.msra.mxu0 %v669
  %720 = vmatprep.subr.bf16.mxu0 0
  %721 = vmatpush1.bf16.msra.mxu0 %v670
  %722 = vmatprep.subr.bf16.mxu0 0
  %723 = vmatpush1.bf16.msra.mxu0 %v671
  %724 = vmatprep.subr.bf16.mxu0 0
  %725 = vmatpush1.bf16.msra.mxu0 %v672
  %726 = vmatprep.subr.bf16.mxu0 0
  %727 = vmatpush1.bf16.msra.mxu0 %v673
  %728 = vmatprep.subr.bf16.mxu0 0
  %729 = vmatpush1.bf16.msra.mxu0 %v674
  %730 = vmatprep.subr.bf16.mxu0 0
  %731 = vmatpush1.bf16.msra.mxu0 %v675
  %732 = vmatprep.subr.bf16.mxu0 0
  %733 = vmatpush1.bf16.msra.mxu0 %v676
  %734 = vmatprep.subr.bf16.mxu0 0
  %735 = vmatpush1.bf16.msra.mxu0 %v677
  %736 = vmatprep.subr.bf16.mxu0 0
  %737 = vmatpush1.bf16.msra.mxu0 %v678
  %738 = vmatprep.subr.bf16.mxu0 0
  %739 = vmatpush1.bf16.msra.mxu0 %v679
  %740 = vmatprep.subr.bf16.mxu0 0
  %741 = vmatpush1.bf16.msra.mxu0 0
  %742 = vmatprep.subr.bf16.mxu0 0
  %743 = vmatpush1.bf16.msra.mxu0 0
  %744 = vmatprep.subr.bf16.mxu0 0
  %745 = vmatpush1.bf16.msra.mxu0 0
  %746 = vmatprep.subr.bf16.mxu0 0
  %747 = vmatpush1.bf16.msra.mxu0 0
  %748 = vmatprep.mubr.bf16.mxu0 %v693
  %749 = vmatmul.mubr.bf16.gmra.mrb[0].mxu0 %v218
  %v750 = vpop.f32.mrb[0].mxu0
  %v751 = vadd.f32 %v558, %v750
  %v752 = vpop.f32.mrb[0].mxu0
  %v753 = vpop.f32.mrb[0].mxu0
  %v754 = vadd.f32 %v561, %v753
  %v755 = vpop.f32.mrb[0].mxu0
  %756 = vmatprep.mubr.bf16.mxu0 %v696
  %757 = vmatmul.mubr.bf16.gmra.mrb[0].mxu0 %v220
  %v758 = vpop.f32.mrb[0].mxu0
  %v759 = vadd.f32 %v566, %v758
  %v760 = vpop.f32.mrb[0].mxu0
  %v761 = vpop.f32.mrb[0].mxu0
  %v762 = vadd.f32 %v569, %v761
  %v763 = vpop.f32.mrb[0].mxu0
  %764 = vmatprep.mubr.bf16.mxu0 %v699
  %765 = vmatmul.mubr.bf16.gmra.mrb[0].mxu0 %v222
  %v766 = vpop.f32.mrb[0].mxu0
  %v767 = vadd.f32 %v574, %v766
  %v768 = vpop.f32.mrb[0].mxu0
  %v769 = vpop.f32.mrb[0].mxu0
  %v770 = vadd.f32 %v577, %v769
  %v771 = vpop.f32.mrb[0].mxu0
  %772 = vmatprep.mubr.bf16.mxu0 %v702
  %773 = vmatmul.mubr.bf16.gmra.mrb[0].mxu0 %v224
  %v774 = vpop.f32.mrb[0].mxu0
  %v775 = vadd.f32 %v582, %v774
  %v776 = vpop.f32.mrb[0].mxu0
  %v777 = vpop.f32.mrb[0].mxu0
  %v778 = vadd.f32 %v585, %v777
  %v779 = vpop.f32.mrb[0].mxu0
  %780 = vmatprep.mubr.bf16.mxu0 %v705
  %781 = vmatmul.mubr.bf16.gmra.mrb[0].mxu0 %v226
  %v782 = vpop.f32.mrb[0].mxu0
  %v783 = vadd.f32 %v590, %v782
  %v784 = vpop.f32.mrb[0].mxu0
  %v785 = vpop.f32.mrb[0].mxu0
  %v786 = vadd.f32 %v593, %v785
  %v787 = vpop.f32.mrb[0].mxu0
  %788 = vmatprep.mubr.bf16.mxu0 %v708
  %789 = vmatmul.mubr.bf16.gmra.mrb[0].mxu0 %v228
  %v790 = vpop.f32.mrb[0].mxu0
  %v791 = vadd.f32 %v598, %v790
  %v792 = vpop.f32.mrb[0].mxu0
  %v793 = vpop.f32.mrb[0].mxu0
  %v794 = vadd.f32 %v601, %v793
  %v795 = vpop.f32.mrb[0].mxu0
  %796 = vmatprep.mubr.bf16.mxu0 %v711
  %797 = vmatmul.mubr.bf16.gmra.mrb[0].mxu0 %v230
  %v798 = vpop.f32.mrb[0].mxu0
  %v799 = vadd.f32 %v606, %v798
  %v800 = vpop.f32.mrb[0].mxu0
  %v801 = vpop.f32.mrb[0].mxu0
  %v802 = vadd.f32 %v609, %v801
  %v803 = vpop.f32.mrb[0].mxu0
  %804 = vmatprep.mubr.bf16.mxu0 %v714
  %805 = vmatmul.mubr.bf16.gmra.mrb[0].mxu0 %v232
  %v806 = vpop.f32.mrb[0].mxu0
  %v807 = vadd.f32 %v614, %v806
  %v808 = vpop.f32.mrb[0].mxu0
  %v809 = vpop.f32.mrb[0].mxu0
  %v810 = vadd.f32 %v617, %v809
  %v811 = vpop.f32.mrb[0].mxu0
  %812 = vdwg.mxu0
  %s813 = scalar_lea.vmem [#allocation2], 32
  %v814 = vld [vmem:[%s813] sm:$0xff]
  %v815 = vld [vmem:[%s813 + $0x10] sm:$0xff]
  %v816 = vld [vmem:[%s813 + $0x20] sm:$0xff]
  %v817 = vld [vmem:[%s813 + $0x30] sm:$0xff]
  %v818 = vld [vmem:[%s813 + $0x40] sm:$0xff]
  %v819 = vld [vmem:[%s813 + $0x50] sm:$0xff]
  %v820 = vld [vmem:[%s813 + $0x60] sm:$0xff]
  %v821 = vld [vmem:[%s813 + $0x70] sm:$0xff]
  %v822 = vld [vmem:[%s813 + $0xa0] sm:$0xff]
  %v823 = vld [vmem:[%s813 + $0xb0] sm:$0xff]
  %v824 = vld [vmem:[%s813 + $0xc0] sm:$0xff]
  %v825 = vld [vmem:[%s813 + $0xd0] sm:$0xff]
  %v826 = vld [vmem:[%s813 + $0xe0] sm:$0xff]
  %v827 = vld [vmem:[%s813 + $0xf0] sm:$0xff]
  %v828 = vld [vmem:[%s813 + $0x100] sm:$0xff]
  %v829 = vld [vmem:[%s813 + $0x110] sm:$0xff]
  %v830 = vld [vmem:[%s813 + $0x1] sm:$0xff]
  %v831 = vld [vmem:[%s813 + $0x11] sm:$0xff]
  %v832 = vld [vmem:[%s813 + $0x21] sm:$0xff]
  %v833 = vld [vmem:[%s813 + $0x31] sm:$0xff]
  %v834 = vld [vmem:[%s813 + $0x41] sm:$0xff]
  %v835 = vld [vmem:[%s813 + $0x51] sm:$0xff]
  %v836 = vld [vmem:[%s813 + $0x61] sm:$0xff]
  %v837 = vld [vmem:[%s813 + $0x71] sm:$0xff]
  %v838 = vld [vmem:[%s813 + $0xa1] sm:$0xff]
  %v839 = vld [vmem:[%s813 + $0xb1] sm:$0xff]
  %v840 = vld [vmem:[%s813 + $0xc1] sm:$0xff]
  %v841 = vld [vmem:[%s813 + $0xd1] sm:$0xff]
  %v842 = vld [vmem:[%s813 + $0xe1] sm:$0xff]
  %v843 = vld [vmem:[%s813 + $0xf1] sm:$0xff]
  %v844 = vld [vmem:[%s813 + $0x101] sm:$0xff]
  %v845 = vld [vmem:[%s813 + $0x111] sm:$0xff]
  %v846 = vld [vmem:[%s813 + $0x2] sm:$0xff]
  %v847 = vld [vmem:[%s813 + $0x12] sm:$0xff]
  %v848 = vld [vmem:[%s813 + $0x22] sm:$0xff]
  %v849 = vld [vmem:[%s813 + $0x32] sm:$0xff]
  %v850 = vld [vmem:[%s813 + $0x42] sm:$0xff]
  %v851 = vld [vmem:[%s813 + $0x52] sm:$0xff]
  %v852 = vld [vmem:[%s813 + $0x62] sm:$0xff]
  %v853 = vld [vmem:[%s813 + $0x72] sm:$0xff]
  %v854 = vld [vmem:[%s813 + $0xa2] sm:$0xff]
  %v855 = vld [vmem:[%s813 + $0xb2] sm:$0xff]
  %v856 = vld [vmem:[%s813 + $0xc2] sm:$0xff]
  %v857 = vld [vmem:[%s813 + $0xd2] sm:$0xff]
  %v858 = vld [vmem:[%s813 + $0xe2] sm:$0xff]
  %v859 = vld [vmem:[%s813 + $0xf2] sm:$0xff]
  %v860 = vld [vmem:[%s813 + $0x102] sm:$0xff]
  %v861 = vld [vmem:[%s813 + $0x112] sm:$0xff]
  %878 = vrot.lane.b32.xlu0 %v830, 64
  %v879 = vpop.permute.xlu0 %878
  %880 = vrot.lane.b32.xlu0 %v831, 64
  %v881 = vpop.permute.xlu0 %880
  %882 = vrot.lane.b32.xlu0 %v832, 64
  %v883 = vpop.permute.xlu0 %882
  %884 = vrot.lane.b32.xlu0 %v833, 64
  %v885 = vpop.permute.xlu0 %884
  %886 = vrot.lane.b32.xlu0 %v834, 64
  %v887 = vpop.permute.xlu0 %886
  %888 = vrot.lane.b32.xlu0 %v835, 64
  %v889 = vpop.permute.xlu0 %888
  %890 = vrot.lane.b32.xlu0 %v836, 64
  %v891 = vpop.permute.xlu0 %890
  %892 = vrot.lane.b32.xlu0 %v837, 64
  %v893 = vpop.permute.xlu0 %892
  %894 = vrot.lane.b32.xlu0 %v838, 64
  %v895 = vpop.permute.xlu0 %894
  %896 = vrot.lane.b32.xlu0 %v839, 64
  %v897 = vpop.permute.xlu0 %896
  %898 = vrot.lane.b32.xlu0 %v840, 64
  %v899 = vpop.permute.xlu0 %898
  %900 = vrot.lane.b32.xlu0 %v841, 64
  %v901 = vpop.permute.xlu0 %900
  %902 = vrot.lane.b32.xlu0 %v842, 64
  %v903 = vpop.permute.xlu0 %902
  %904 = vrot.lane.b32.xlu0 %v843, 64
  %v905 = vpop.permute.xlu0 %904
  %906 = vrot.lane.b32.xlu0 %v844, 64
  %v907 = vpop.permute.xlu0 %906
  %908 = vrot.lane.b32.xlu0 %v845, 64
  %v909 = vpop.permute.xlu0 %908
  %v926 = vsel %vm15, %v814, %v879
  %v927 = vsel %vm15, %v815, %v881
  %v928 = vsel %vm15, %v816, %v883
  %v929 = vsel %vm15, %v817, %v885
  %v930 = vsel %vm15, %v818, %v887
  %v931 = vsel %vm15, %v819, %v889
  %v932 = vsel %vm15, %v820, %v891
  %v933 = vsel %vm15, %v821, %v893
  %v934 = vsel %vm15, %v822, %v895
  %v935 = vsel %vm15, %v823, %v897
  %v936 = vsel %vm15, %v824, %v899
  %v937 = vsel %vm15, %v825, %v901
  %v938 = vsel %vm15, %v826, %v903
  %v939 = vsel %vm15, %v827, %v905
  %v940 = vsel %vm15, %v828, %v907
  %v941 = vsel %vm15, %v829, %v909
  %v942 = vpack.c.bf16 %v927, %v926
  %v943 = vpack.c.bf16 %v847, %v846
  %v944 = vpack.c.bf16 %v929, %v928
  %v945 = vpack.c.bf16 %v849, %v848
  %v946 = vpack.c.bf16 %v931, %v930
  %v947 = vpack.c.bf16 %v851, %v850
  %v948 = vpack.c.bf16 %v933, %v932
  %v949 = vpack.c.bf16 %v853, %v852
  %v950 = vpack.c.bf16 %v935, %v934
  %v951 = vpack.c.bf16 %v855, %v854
  %v952 = vpack.c.bf16 %v937, %v936
  %v953 = vpack.c.bf16 %v857, %v856
  %v954 = vpack.c.bf16 %v939, %v938
  %v955 = vpack.c.bf16 %v859, %v858
  %v956 = vpack.c.bf16 %v941, %v940
  %v957 = vpack.c.bf16 %v861, %v860
  %s958 = scalar_lea.vmem %s1, 192
  %v959 = vld [vmem:[%s958] sm:$0xf]
  %v960 = vld [vmem:[%s958 + $0x4] sm:$0xf]
  %v961 = vld [vmem:[%s958 + $0x8] sm:$0xf]
  %v962 = vld [vmem:[%s958 + $0xc] sm:$0xf]
  %v963 = vld [vmem:[%s958 + $0x10] sm:$0xf]
  %v964 = vld [vmem:[%s958 + $0x14] sm:$0xf]
  %v965 = vld [vmem:[%s958 + $0x18] sm:$0xf]
  %v966 = vld [vmem:[%s958 + $0x1c] sm:$0xf]
  %v967 = vld [vmem:[%s958 + $0x20] sm:$0xf]
  %v968 = vld [vmem:[%s958 + $0x24] sm:$0xf]
  %v969 = vld [vmem:[%s958 + $0x28] sm:$0xf]
  %v970 = vld [vmem:[%s958 + $0x2c] sm:$0xf]
  %v971 = vld [vmem:[%s958 + $0x30] sm:$0xf]
  %v972 = vld [vmem:[%s958 + $0x34] sm:$0xf]
  %v973 = vld [vmem:[%s958 + $0x38] sm:$0xf]
  %v974 = vld [vmem:[%s958 + $0x3c] sm:$0xf]
  %v975 = vld [vmem:[%s958 + $0x40] sm:$0xf]
  %v976 = vld [vmem:[%s958 + $0x44] sm:$0xf]
  %v977 = vld [vmem:[%s958 + $0x48] sm:$0xf]
  %v978 = vld [vmem:[%s958 + $0x4c] sm:$0xf]
  %v979 = vld [vmem:[%s958 + $0x50] sm:$0xf]
  %v980 = vld [vmem:[%s958 + $0x54] sm:$0xf]
  %v981 = vld [vmem:[%s958 + $0x58] sm:$0xf]
  %v982 = vld [vmem:[%s958 + $0x5c] sm:$0xf]
  %v1007 = vunpack.c.l.b16 %v959
  %v1008 = vunpack.c.l.b16 %v960
  %v1009 = vunpack.c.l.b16 %v961
  %v1010 = vunpack.c.l.b16 %v962
  %v1011 = vunpack.c.l.b16 %v963
  %v1012 = vunpack.c.l.b16 %v964
  %v1013 = vunpack.c.l.b16 %v965
  %v1014 = vunpack.c.l.b16 %v966
  %v1015 = vunpack.c.l.b16 %v967
  %v1016 = vunpack.c.l.b16 %v968
  %v1017 = vunpack.c.l.b16 %v969
  %v1018 = vunpack.c.l.b16 %v970
  %v1019 = vunpack.c.l.b16 %v971
  %v1020 = vunpack.c.l.b16 %v972
  %v1021 = vunpack.c.l.b16 %v973
  %v1022 = vunpack.c.l.b16 %v974
  %v1023 = vunpack.c.l.b16 %v975
  %v1024 = vunpack.c.l.b16 %v976
  %v1025 = vunpack.c.l.b16 %v977
  %v1026 = vunpack.c.l.b16 %v978
  %v1027 = vunpack.c.l.b16 %v979
  %v1028 = vunpack.c.l.b16 %v980
  %v1029 = vunpack.c.l.b16 %v981
  %v1030 = vunpack.c.l.b16 %v982
  %v1031 = vpack.c.b16 %v1008, %v1007
  %v1032 = vpack.c.b16 %v1010, %v1009
  %v1033 = vpack.c.b16 %v1012, %v1011
  %v1034 = vpack.c.b16 %v1014, %v1013
  %v1035 = vpack.c.b16 %v1016, %v1015
  %v1036 = vpack.c.b16 %v1018, %v1017
  %v1037 = vpack.c.b16 %v1020, %v1019
  %v1038 = vpack.c.b16 %v1022, %v1021
  %v1039 = vpack.c.b16 %v1024, %v1023
  %v1040 = vpack.c.b16 %v1026, %v1025
  %v1041 = vpack.c.b16 %v1028, %v1027
  %v1042 = vpack.c.b16 %v1030, %v1029
  %v1056 = vsel %vm15, %v943, 0
  %v1059 = vsel %vm15, %v945, 0
  %v1062 = vsel %vm15, %v947, 0
  %v1065 = vsel %vm15, %v949, 0
  %v1068 = vsel %vm15, %v951, 0
  %v1071 = vsel %vm15, %v953, 0
  %v1074 = vsel %vm15, %v955, 0
  %v1077 = vsel %vm15, %v957, 0
  %1079 = vmatprep.subr.bf16.mxu0 0
  %1080 = vmatpush1.bf16.msra.mxu0 %v1031
  %1081 = vmatprep.subr.bf16.mxu0 0
  %1082 = vmatpush1.bf16.msra.mxu0 %v1032
  %1083 = vmatprep.subr.bf16.mxu0 0
  %1084 = vmatpush1.bf16.msra.mxu0 %v1033
  %1085 = vmatprep.subr.bf16.mxu0 0
  %1086 = vmatpush1.bf16.msra.mxu0 %v1034
  %1087 = vmatprep.subr.bf16.mxu0 0
  %1088 = vmatpush1.bf16.msra.mxu0 %v1035
  %1089 = vmatprep.subr.bf16.mxu0 0
  %1090 = vmatpush1.bf16.msra.mxu0 %v1036
  %1091 = vmatprep.subr.bf16.mxu0 0
  %1092 = vmatpush1.bf16.msra.mxu0 %v1037
  %1093 = vmatprep.subr.bf16.mxu0 0
  %1094 = vmatpush1.bf16.msra.mxu0 %v1038
  %1095 = vmatprep.subr.bf16.mxu0 0
  %1096 = vmatpush1.bf16.msra.mxu0 %v1039
  %1097 = vmatprep.subr.bf16.mxu0 0
  %1098 = vmatpush1.bf16.msra.mxu0 %v1040
  %1099 = vmatprep.subr.bf16.mxu0 0
  %1100 = vmatpush1.bf16.msra.mxu0 %v1041
  %1101 = vmatprep.subr.bf16.mxu0 0
  %1102 = vmatpush1.bf16.msra.mxu0 %v1042
  %1103 = vmatprep.subr.bf16.mxu0 0
  %1104 = vmatpush1.bf16.msra.mxu0 0
  %1105 = vmatprep.subr.bf16.mxu0 0
  %1106 = vmatpush1.bf16.msra.mxu0 0
  %1107 = vmatprep.subr.bf16.mxu0 0
  %1108 = vmatpush1.bf16.msra.mxu0 0
  %1109 = vmatprep.subr.bf16.mxu0 0
  %1110 = vmatpush1.bf16.msra.mxu0 0
  %1111 = vmatprep.mubr.bf16.mxu0 %v1056
  %1112 = vmatmul.mubr.bf16.gmra.mrb[0].mxu0 %v942
  %v1113 = vpop.f32.mrb[0].mxu0
  %v1114 = vadd.f32 0.0, %v1113
  %v1115 = vpop.f32.mrb[0].mxu0
  %v1116 = vpop.f32.mrb[0].mxu0
  %v1117 = vadd.f32 0.0, %v1116
  %v1118 = vpop.f32.mrb[0].mxu0
  %1119 = vmatprep.mubr.bf16.mxu0 %v1059
  %1120 = vmatmul.mubr.bf16.gmra.mrb[0].mxu0 %v944
  %v1121 = vpop.f32.mrb[0].mxu0
  %v1122 = vadd.f32 0.0, %v1121
  %v1123 = vpop.f32.mrb[0].mxu0
  %v1124 = vpop.f32.mrb[0].mxu0
  %v1125 = vadd.f32 0.0, %v1124
  %v1126 = vpop.f32.mrb[0].mxu0
  %1127 = vmatprep.mubr.bf16.mxu0 %v1062
  %1128 = vmatmul.mubr.bf16.gmra.mrb[0].mxu0 %v946
  %v1129 = vpop.f32.mrb[0].mxu0
  %v1130 = vadd.f32 0.0, %v1129
  %v1131 = vpop.f32.mrb[0].mxu0
  %v1132 = vpop.f32.mrb[0].mxu0
  %v1133 = vadd.f32 0.0, %v1132
  %v1134 = vpop.f32.mrb[0].mxu0
  %1135 = vmatprep.mubr.bf16.mxu0 %v1065
  %1136 = vmatmul.mubr.bf16.gmra.mrb[0].mxu0 %v948
  %v1137 = vpop.f32.mrb[0].mxu0
  %v1138 = vadd.f32 0.0, %v1137
  %v1139 = vpop.f32.mrb[0].mxu0
  %v1140 = vpop.f32.mrb[0].mxu0
  %v1141 = vadd.f32 0.0, %v1140
  %v1142 = vpop.f32.mrb[0].mxu0
  %1143 = vmatprep.mubr.bf16.mxu0 %v1068
  %1144 = vmatmul.mubr.bf16.gmra.mrb[0].mxu0 %v950
  %v1145 = vpop.f32.mrb[0].mxu0
  %v1146 = vadd.f32 0.0, %v1145
  %v1147 = vpop.f32.mrb[0].mxu0
  %v1148 = vpop.f32.mrb[0].mxu0
  %v1149 = vadd.f32 0.0, %v1148
  %v1150 = vpop.f32.mrb[0].mxu0
  %1151 = vmatprep.mubr.bf16.mxu0 %v1071
  %1152 = vmatmul.mubr.bf16.gmra.mrb[0].mxu0 %v952
  %v1153 = vpop.f32.mrb[0].mxu0
  %v1154 = vadd.f32 0.0, %v1153
  %v1155 = vpop.f32.mrb[0].mxu0
  %v1156 = vpop.f32.mrb[0].mxu0
  %v1157 = vadd.f32 0.0, %v1156
  %v1158 = vpop.f32.mrb[0].mxu0
  %1159 = vmatprep.mubr.bf16.mxu0 %v1074
  %1160 = vmatmul.mubr.bf16.gmra.mrb[0].mxu0 %v954
  %v1161 = vpop.f32.mrb[0].mxu0
  %v1162 = vadd.f32 0.0, %v1161
  %v1163 = vpop.f32.mrb[0].mxu0
  %v1164 = vpop.f32.mrb[0].mxu0
  %v1165 = vadd.f32 0.0, %v1164
  %v1166 = vpop.f32.mrb[0].mxu0
  %1167 = vmatprep.mubr.bf16.mxu0 %v1077
  %1168 = vmatmul.mubr.bf16.gmra.mrb[0].mxu0 %v956
  %v1169 = vpop.f32.mrb[0].mxu0
  %v1170 = vadd.f32 0.0, %v1169
  %v1171 = vpop.f32.mrb[0].mxu0
  %v1172 = vpop.f32.mrb[0].mxu0
  %v1173 = vadd.f32 0.0, %v1172
  %v1174 = vpop.f32.mrb[0].mxu0
  %1175 = vdwg.mxu0
  %v1176 = vadd.f32 %v751, %v1114
  %v1177 = vadd.f32 %v754, %v1117
  %v1178 = vadd.f32 %v759, %v1122
  %v1179 = vadd.f32 %v762, %v1125
  %v1180 = vadd.f32 %v767, %v1130
  %v1181 = vadd.f32 %v770, %v1133
  %v1182 = vadd.f32 %v775, %v1138
  %v1183 = vadd.f32 %v778, %v1141
  %v1184 = vadd.f32 %v783, %v1146
  %v1185 = vadd.f32 %v786, %v1149
  %v1186 = vadd.f32 %v791, %v1154
  %v1187 = vadd.f32 %v794, %v1157
  %v1188 = vadd.f32 %v799, %v1162
  %v1189 = vadd.f32 %v802, %v1165
  %v1190 = vadd.f32 %v807, %v1170
  %v1191 = vadd.f32 %v810, %v1173
  %v1192 = vld [vmem:[%s2] sm:$0x1]
  %v1194 = vlaneseq
  %v1195 = vshrl.u32 %v1194, 7
  %v1196 = vsub.s32 0, %v1195
  %v1197 = vrot.slane %v1192, %v1196
  %v1199 = vadd.f32 %v1176, %v1197
  %v1200 = vadd.f32 %v1177, %v1197
  %v1201 = vadd.f32 %v1178, %v1197
  %v1202 = vadd.f32 %v1179, %v1197
  %v1203 = vadd.f32 %v1180, %v1197
  %v1204 = vadd.f32 %v1181, %v1197
  %v1205 = vadd.f32 %v1182, %v1197
  %v1206 = vadd.f32 %v1183, %v1197
  %v1207 = vadd.f32 %v1184, %v1197
  %v1208 = vadd.f32 %v1185, %v1197
  %v1209 = vadd.f32 %v1186, %v1197
  %v1210 = vadd.f32 %v1187, %v1197
  %v1211 = vadd.f32 %v1188, %v1197
  %v1212 = vadd.f32 %v1189, %v1197
  %v1213 = vadd.f32 %v1190, %v1197
  %v1214 = vadd.f32 %v1191, %v1197
  %v1215 = vmax.f32 %v1199, 0.0
  %v1216 = vmax.f32 %v1200, 0.0
  %v1217 = vmax.f32 %v1201, 0.0
  %v1218 = vmax.f32 %v1202, 0.0
  %v1219 = vmax.f32 %v1203, 0.0
  %v1220 = vmax.f32 %v1204, 0.0
  %v1221 = vmax.f32 %v1205, 0.0
  %v1222 = vmax.f32 %v1206, 0.0
  %v1223 = vmax.f32 %v1207, 0.0
  %v1224 = vmax.f32 %v1208, 0.0
  %v1225 = vmax.f32 %v1209, 0.0
  %v1226 = vmax.f32 %v1210, 0.0
  %v1227 = vmax.f32 %v1211, 0.0
  %v1228 = vmax.f32 %v1212, 0.0
  %v1229 = vmax.f32 %v1213, 0.0
  %v1230 = vmax.f32 %v1214, 0.0
  %1231 = vst.msk [vmem:[%s73 + $0x1] sm:$0xff] %vm15, %v1215
  %1232 = vst.msk [vmem:[%s73 + $0x11] sm:$0xff] %vm15, %v1216
  %1233 = vst.msk [vmem:[%s73 + $0x21] sm:$0xff] %vm15, %v1217
  %1234 = vst.msk [vmem:[%s73 + $0x31] sm:$0xff] %vm15, %v1218
  %1235 = vst.msk [vmem:[%s73 + $0x41] sm:$0xff] %vm15, %v1219
  %1236 = vst.msk [vmem:[%s73 + $0x51] sm:$0xff] %vm15, %v1220
  %1237 = vst.msk [vmem:[%s73 + $0x61] sm:$0xff] %vm15, %v1221
  %1238 = vst.msk [vmem:[%s73 + $0x71] sm:$0xff] %vm15, %v1222
  %1239 = vst.msk [vmem:[%s73 + $0xa1] sm:$0xff] %vm15, %v1223
  %1240 = vst.msk [vmem:[%s73 + $0xb1] sm:$0xff] %vm15, %v1224
  %1241 = vst.msk [vmem:[%s73 + $0xc1] sm:$0xff] %vm15, %v1225
  %1242 = vst.msk [vmem:[%s73 + $0xd1] sm:$0xff] %vm15, %v1226
  %1243 = vst.msk [vmem:[%s73 + $0xe1] sm:$0xff] %vm15, %v1227
  %1244 = vst.msk [vmem:[%s73 + $0xf1] sm:$0xff] %vm15, %v1228
  %1245 = vst.msk [vmem:[%s73 + $0x101] sm:$0xff] %vm15, %v1229
  %1246 = vst.msk [vmem:[%s73 + $0x111] sm:$0xff] %vm15, %v1230
  %v1247 = vld [vmem:[#allocation2] sm:$0xff]
  %v1248 = vld [vmem:[#allocation2 + $0x10] sm:$0xff]
  %v1249 = vld [vmem:[#allocation2 + $0x20] sm:$0xff]
  %v1250 = vld [vmem:[#allocation2 + $0x30] sm:$0xff]
  %v1251 = vld [vmem:[#allocation2 + $0x40] sm:$0xff]
  %v1252 = vld [vmem:[#allocation2 + $0x50] sm:$0xff]
  %v1253 = vld [vmem:[#allocation2 + $0x60] sm:$0xff]
  %v1254 = vld [vmem:[#allocation2 + $0x70] sm:$0xff]
  %v1255 = vld [vmem:[#allocation2 + $0xa0] sm:$0xff]
  %v1256 = vld [vmem:[#allocation2 + $0xb0] sm:$0xff]
  %v1257 = vld [vmem:[#allocation2 + $0xc0] sm:$0xff]
  %v1258 = vld [vmem:[#allocation2 + $0xd0] sm:$0xff]
  %v1259 = vld [vmem:[#allocation2 + $0xe0] sm:$0xff]
  %v1260 = vld [vmem:[#allocation2 + $0xf0] sm:$0xff]
  %v1261 = vld [vmem:[#allocation2 + $0x100] sm:$0xff]
  %v1262 = vld [vmem:[#allocation2 + $0x110] sm:$0xff]
  %v1263 = vld [vmem:[#allocation2 + $0x1] sm:$0xff]
  %v1264 = vld [vmem:[#allocation2 + $0x11] sm:$0xff]
  %v1265 = vld [vmem:[#allocation2 + $0x21] sm:$0xff]
  %v1266 = vld [vmem:[#allocation2 + $0x31] sm:$0xff]
  %v1267 = vld [vmem:[#allocation2 + $0x41] sm:$0xff]
  %v1268 = vld [vmem:[#allocation2 + $0x51] sm:$0xff]
  %v1269 = vld [vmem:[#allocation2 + $0x61] sm:$0xff]
  %v1270 = vld [vmem:[#allocation2 + $0x71] sm:$0xff]
  %v1271 = vld [vmem:[#allocation2 + $0xa1] sm:$0xff]
  %v1272 = vld [vmem:[#allocation2 + $0xb1] sm:$0xff]
  %v1273 = vld [vmem:[#allocation2 + $0xc1] sm:$0xff]
  %v1274 = vld [vmem:[#allocation2 + $0xd1] sm:$0xff]
  %v1275 = vld [vmem:[#allocation2 + $0xe1] sm:$0xff]
  %v1276 = vld [vmem:[#allocation2 + $0xf1] sm:$0xff]
  %v1277 = vld [vmem:[#allocation2 + $0x101] sm:$0xff]
  %v1278 = vld [vmem:[#allocation2 + $0x111] sm:$0xff]
  %v1279 = vld [vmem:[#allocation2 + $0x2] sm:$0xff]
  %v1280 = vld [vmem:[#allocation2 + $0x12] sm:$0xff]
  %v1281 = vld [vmem:[#allocation2 + $0x22] sm:$0xff]
  %v1282 = vld [vmem:[#allocation2 + $0x32] sm:$0xff]
  %v1283 = vld [vmem:[#allocation2 + $0x42] sm:$0xff]
  %v1284 = vld [vmem:[#allocation2 + $0x52] sm:$0xff]
  %v1285 = vld [vmem:[#allocation2 + $0x62] sm:$0xff]
  %v1286 = vld [vmem:[#allocation2 + $0x72] sm:$0xff]
  %v1287 = vld [vmem:[#allocation2 + $0xa2] sm:$0xff]
  %v1288 = vld [vmem:[#allocation2 + $0xb2] sm:$0xff]
  %v1289 = vld [vmem:[#allocation2 + $0xc2] sm:$0xff]
  %v1290 = vld [vmem:[#allocation2 + $0xd2] sm:$0xff]
  %v1291 = vld [vmem:[#allocation2 + $0xe2] sm:$0xff]
  %v1292 = vld [vmem:[#allocation2 + $0xf2] sm:$0xff]
  %v1293 = vld [vmem:[#allocation2 + $0x102] sm:$0xff]
  %v1294 = vld [vmem:[#allocation2 + $0x112] sm:$0xff]
  %1311 = vrot.lane.b32.xlu0 %v1263, 64
  %v1312 = vpop.permute.xlu0 %1311
  %1313 = vrot.lane.b32.xlu0 %v1264, 64
  %v1314 = vpop.permute.xlu0 %1313
  %1315 = vrot.lane.b32.xlu0 %v1265, 64
  %v1316 = vpop.permute.xlu0 %1315
  %1317 = vrot.lane.b32.xlu0 %v1266, 64
  %v1318 = vpop.permute.xlu0 %1317
  %1319 = vrot.lane.b32.xlu0 %v1267, 64
  %v1320 = vpop.permute.xlu0 %1319
  %1321 = vrot.lane.b32.xlu0 %v1268, 64
  %v1322 = vpop.permute.xlu0 %1321
  %1323 = vrot.lane.b32.xlu0 %v1269, 64
  %v1324 = vpop.permute.xlu0 %1323
  %1325 = vrot.lane.b32.xlu0 %v1270, 64
  %v1326 = vpop.permute.xlu0 %1325
  %1327 = vrot.lane.b32.xlu0 %v1271, 64
  %v1328 = vpop.permute.xlu0 %1327
  %1329 = vrot.lane.b32.xlu0 %v1272, 64
  %v1330 = vpop.permute.xlu0 %1329
  %1331 = vrot.lane.b32.xlu0 %v1273, 64
  %v1332 = vpop.permute.xlu0 %1331
  %1333 = vrot.lane.b32.xlu0 %v1274, 64
  %v1334 = vpop.permute.xlu0 %1333
  %1335 = vrot.lane.b32.xlu0 %v1275, 64
  %v1336 = vpop.permute.xlu0 %1335
  %1337 = vrot.lane.b32.xlu0 %v1276, 64
  %v1338 = vpop.permute.xlu0 %1337
  %1339 = vrot.lane.b32.xlu0 %v1277, 64
  %v1340 = vpop.permute.xlu0 %1339
  %1341 = vrot.lane.b32.xlu0 %v1278, 64
  %v1342 = vpop.permute.xlu0 %1341
  %v1359 = vsel %vm15, %v1247, %v1312
  %v1360 = vsel %vm15, %v1248, %v1314
  %v1361 = vsel %vm15, %v1249, %v1316
  %v1362 = vsel %vm15, %v1250, %v1318
  %v1363 = vsel %vm15, %v1251, %v1320
  %v1364 = vsel %vm15, %v1252, %v1322
  %v1365 = vsel %vm15, %v1253, %v1324
  %v1366 = vsel %vm15, %v1254, %v1326
  %v1367 = vsel %vm15, %v1255, %v1328
  %v1368 = vsel %vm15, %v1256, %v1330
  %v1369 = vsel %vm15, %v1257, %v1332
  %v1370 = vsel %vm15, %v1258, %v1334
  %v1371 = vsel %vm15, %v1259, %v1336
  %v1372 = vsel %vm15, %v1260, %v1338
  %v1373 = vsel %vm15, %v1261, %v1340
  %v1374 = vsel %vm15, %v1262, %v1342
  %v1375 = vpack.c.bf16 %v1360, %v1359
  %v1376 = vpack.c.bf16 %v1280, %v1279
  %v1377 = vpack.c.bf16 %v1362, %v1361
  %v1378 = vpack.c.bf16 %v1282, %v1281
  %v1379 = vpack.c.bf16 %v1364, %v1363
  %v1380 = vpack.c.bf16 %v1284, %v1283
  %v1381 = vpack.c.bf16 %v1366, %v1365
  %v1382 = vpack.c.bf16 %v1286, %v1285
  %v1383 = vpack.c.bf16 %v1368, %v1367
  %v1384 = vpack.c.bf16 %v1288, %v1287
  %v1385 = vpack.c.bf16 %v1370, %v1369
  %v1386 = vpack.c.bf16 %v1290, %v1289
  %v1387 = vpack.c.bf16 %v1372, %v1371
  %v1388 = vpack.c.bf16 %v1292, %v1291
  %v1389 = vpack.c.bf16 %v1374, %v1373
  %v1390 = vpack.c.bf16 %v1294, %v1293
  %s1391 = scalar_lea.vmem %s1, 288
  %v1392 = vld [vmem:[%s1391] sm:$0xf]
  %v1393 = vld [vmem:[%s1391 + $0x4] sm:$0xf]
  %v1394 = vld [vmem:[%s1391 + $0x8] sm:$0xf]
  %v1395 = vld [vmem:[%s1391 + $0xc] sm:$0xf]
  %v1396 = vld [vmem:[%s1391 + $0x10] sm:$0xf]
  %v1397 = vld [vmem:[%s1391 + $0x14] sm:$0xf]
  %v1398 = vld [vmem:[%s1391 + $0x18] sm:$0xf]
  %v1399 = vld [vmem:[%s1391 + $0x1c] sm:$0xf]
  %v1400 = vld [vmem:[%s1391 + $0x20] sm:$0xf]
  %v1401 = vld [vmem:[%s1391 + $0x24] sm:$0xf]
  %v1402 = vld [vmem:[%s1391 + $0x28] sm:$0xf]
  %v1403 = vld [vmem:[%s1391 + $0x2c] sm:$0xf]
  %v1404 = vld [vmem:[%s1391 + $0x30] sm:$0xf]
  %v1405 = vld [vmem:[%s1391 + $0x34] sm:$0xf]
  %v1406 = vld [vmem:[%s1391 + $0x38] sm:$0xf]
  %v1407 = vld [vmem:[%s1391 + $0x3c] sm:$0xf]
  %v1408 = vld [vmem:[%s1391 + $0x40] sm:$0xf]
  %v1409 = vld [vmem:[%s1391 + $0x44] sm:$0xf]
  %v1410 = vld [vmem:[%s1391 + $0x48] sm:$0xf]
  %v1411 = vld [vmem:[%s1391 + $0x4c] sm:$0xf]
  %v1412 = vld [vmem:[%s1391 + $0x50] sm:$0xf]
  %v1413 = vld [vmem:[%s1391 + $0x54] sm:$0xf]
  %v1414 = vld [vmem:[%s1391 + $0x58] sm:$0xf]
  %v1415 = vld [vmem:[%s1391 + $0x5c] sm:$0xf]
  %v1416 = vld [vmem:[%s73] sm:$0xff]
  %v1417 = vld [vmem:[%s73 + $0x10] sm:$0xff]
  %v1418 = vld [vmem:[%s73 + $0x20] sm:$0xff]
  %v1419 = vld [vmem:[%s73 + $0x30] sm:$0xff]
  %v1420 = vld [vmem:[%s73 + $0x40] sm:$0xff]
  %v1421 = vld [vmem:[%s73 + $0x50] sm:$0xff]
  %v1422 = vld [vmem:[%s73 + $0x60] sm:$0xff]
  %v1423 = vld [vmem:[%s73 + $0x70] sm:$0xff]
  %v1424 = vld [vmem:[%s73 + $0xa0] sm:$0xff]
  %v1425 = vld [vmem:[%s73 + $0xb0] sm:$0xff]
  %v1426 = vld [vmem:[%s73 + $0xc0] sm:$0xff]
  %v1427 = vld [vmem:[%s73 + $0xd0] sm:$0xff]
  %v1428 = vld [vmem:[%s73 + $0xe0] sm:$0xff]
  %v1429 = vld [vmem:[%s73 + $0xf0] sm:$0xff]
  %v1430 = vld [vmem:[%s73 + $0x100] sm:$0xff]
  %v1431 = vld [vmem:[%s73 + $0x110] sm:$0xff]
  %v1432 = vld [vmem:[%s73 + $0x1] sm:$0xff]
  %v1433 = vld [vmem:[%s73 + $0x11] sm:$0xff]
  %v1434 = vld [vmem:[%s73 + $0x21] sm:$0xff]
  %v1435 = vld [vmem:[%s73 + $0x31] sm:$0xff]
  %v1436 = vld [vmem:[%s73 + $0x41] sm:$0xff]
  %v1437 = vld [vmem:[%s73 + $0x51] sm:$0xff]
  %v1438 = vld [vmem:[%s73 + $0x61] sm:$0xff]
  %v1439 = vld [vmem:[%s73 + $0x71] sm:$0xff]
  %v1440 = vld [vmem:[%s73 + $0xa1] sm:$0xff]
  %v1441 = vld [vmem:[%s73 + $0xb1] sm:$0xff]
  %v1442 = vld [vmem:[%s73 + $0xc1] sm:$0xff]
  %v1443 = vld [vmem:[%s73 + $0xd1] sm:$0xff]
  %v1444 = vld [vmem:[%s73 + $0xe1] sm:$0xff]
  %v1445 = vld [vmem:[%s73 + $0xf1] sm:$0xff]
  %v1446 = vld [vmem:[%s73 + $0x101] sm:$0xff]
  %v1447 = vld [vmem:[%s73 + $0x111] sm:$0xff]
  %v1448 = vld [vmem:[%s73 + $0x2] sm:$0xff]
  %v1449 = vld [vmem:[%s73 + $0x12] sm:$0xff]
  %v1450 = vld [vmem:[%s73 + $0x22] sm:$0xff]
  %v1451 = vld [vmem:[%s73 + $0x32] sm:$0xff]
  %v1452 = vld [vmem:[%s73 + $0x42] sm:$0xff]
  %v1453 = vld [vmem:[%s73 + $0x52] sm:$0xff]
  %v1454 = vld [vmem:[%s73 + $0x62] sm:$0xff]
  %v1455 = vld [vmem:[%s73 + $0x72] sm:$0xff]
  %v1456 = vld [vmem:[%s73 + $0xa2] sm:$0xff]
  %v1457 = vld [vmem:[%s73 + $0xb2] sm:$0xff]
  %v1458 = vld [vmem:[%s73 + $0xc2] sm:$0xff]
  %v1459 = vld [vmem:[%s73 + $0xd2] sm:$0xff]
  %v1460 = vld [vmem:[%s73 + $0xe2] sm:$0xff]
  %v1461 = vld [vmem:[%s73 + $0xf2] sm:$0xff]
  %v1462 = vld [vmem:[%s73 + $0x102] sm:$0xff]
  %v1463 = vld [vmem:[%s73 + $0x112] sm:$0xff]
  %1480 = vrot.lane.b32.xlu0 %v1432, 64
  %v1481 = vpop.permute.xlu0 %1480
  %1482 = vrot.lane.b32.xlu0 %v1433, 64
  %v1483 = vpop.permute.xlu0 %1482
  %1484 = vrot.lane.b32.xlu0 %v1434, 64
  %v1485 = vpop.permute.xlu0 %1484
  %1486 = vrot.lane.b32.xlu0 %v1435, 64
  %v1487 = vpop.permute.xlu0 %1486
  %1488 = vrot.lane.b32.xlu0 %v1436, 64
  %v1489 = vpop.permute.xlu0 %1488
  %1490 = vrot.lane.b32.xlu0 %v1437, 64
  %v1491 = vpop.permute.xlu0 %1490
  %1492 = vrot.lane.b32.xlu0 %v1438, 64
  %v1493 = vpop.permute.xlu0 %1492
  %1494 = vrot.lane.b32.xlu0 %v1439, 64
  %v1495 = vpop.permute.xlu0 %1494
  %1496 = vrot.lane.b32.xlu0 %v1440, 64
  %v1497 = vpop.permute.xlu0 %1496
  %1498 = vrot.lane.b32.xlu0 %v1441, 64
  %v1499 = vpop.permute.xlu0 %1498
  %1500 = vrot.lane.b32.xlu0 %v1442, 64
  %v1501 = vpop.permute.xlu0 %1500
  %1502 = vrot.lane.b32.xlu0 %v1443, 64
  %v1503 = vpop.permute.xlu0 %1502
  %1504 = vrot.lane.b32.xlu0 %v1444, 64
  %v1505 = vpop.permute.xlu0 %1504
  %1506 = vrot.lane.b32.xlu0 %v1445, 64
  %v1507 = vpop.permute.xlu0 %1506
  %1508 = vrot.lane.b32.xlu0 %v1446, 64
  %v1509 = vpop.permute.xlu0 %1508
  %1510 = vrot.lane.b32.xlu0 %v1447, 64
  %v1511 = vpop.permute.xlu0 %1510
  %v1528 = vsel %vm15, %v1416, %v1481
  %v1529 = vsel %vm15, %v1417, %v1483
  %v1530 = vsel %vm15, %v1418, %v1485
  %v1531 = vsel %vm15, %v1419, %v1487
  %v1532 = vsel %vm15, %v1420, %v1489
  %v1533 = vsel %vm15, %v1421, %v1491
  %v1534 = vsel %vm15, %v1422, %v1493
  %v1535 = vsel %vm15, %v1423, %v1495
  %v1536 = vsel %vm15, %v1424, %v1497
  %v1537 = vsel %vm15, %v1425, %v1499
  %v1538 = vsel %vm15, %v1426, %v1501
  %v1539 = vsel %vm15, %v1427, %v1503
  %v1540 = vsel %vm15, %v1428, %v1505
  %v1541 = vsel %vm15, %v1429, %v1507
  %v1542 = vsel %vm15, %v1430, %v1509
  %v1543 = vsel %vm15, %v1431, %v1511
  %v1544 = vpack.c.bf16 %v1529, %v1528
  %v1545 = vpack.c.bf16 %v1449, %v1448
  %v1546 = vpack.c.bf16 %v1531, %v1530
  %v1547 = vpack.c.bf16 %v1451, %v1450
  %v1548 = vpack.c.bf16 %v1533, %v1532
  %v1549 = vpack.c.bf16 %v1453, %v1452
  %v1550 = vpack.c.bf16 %v1535, %v1534
  %v1551 = vpack.c.bf16 %v1455, %v1454
  %v1552 = vpack.c.bf16 %v1537, %v1536
  %v1553 = vpack.c.bf16 %v1457, %v1456
  %v1554 = vpack.c.bf16 %v1539, %v1538
  %v1555 = vpack.c.bf16 %v1459, %v1458
  %v1556 = vpack.c.bf16 %v1541, %v1540
  %v1557 = vpack.c.bf16 %v1461, %v1460
  %v1558 = vpack.c.bf16 %v1543, %v1542
  %v1559 = vpack.c.bf16 %v1463, %v1462
  %s1560 = scalar_lea.vmem %s1, 384
  %v1561 = vld [vmem:[%s1560] sm:$0xf]
  %v1562 = vld [vmem:[%s1560 + $0x4] sm:$0xf]
  %v1563 = vld [vmem:[%s1560 + $0x8] sm:$0xf]
  %v1564 = vld [vmem:[%s1560 + $0xc] sm:$0xf]
  %v1565 = vld [vmem:[%s1560 + $0x10] sm:$0xf]
  %v1566 = vld [vmem:[%s1560 + $0x14] sm:$0xf]
  %v1567 = vld [vmem:[%s1560 + $0x18] sm:$0xf]
  %v1568 = vld [vmem:[%s1560 + $0x1c] sm:$0xf]
  %v1569 = vld [vmem:[%s1560 + $0x20] sm:$0xf]
  %v1570 = vld [vmem:[%s1560 + $0x24] sm:$0xf]
  %v1571 = vld [vmem:[%s1560 + $0x28] sm:$0xf]
  %v1572 = vld [vmem:[%s1560 + $0x2c] sm:$0xf]
  %v1573 = vld [vmem:[%s1560 + $0x30] sm:$0xf]
  %v1574 = vld [vmem:[%s1560 + $0x34] sm:$0xf]
  %v1575 = vld [vmem:[%s1560 + $0x38] sm:$0xf]
  %v1576 = vld [vmem:[%s1560 + $0x3c] sm:$0xf]
  %v1577 = vld [vmem:[%s1560 + $0x40] sm:$0xf]
  %v1578 = vld [vmem:[%s1560 + $0x44] sm:$0xf]
  %v1579 = vld [vmem:[%s1560 + $0x48] sm:$0xf]
  %v1580 = vld [vmem:[%s1560 + $0x4c] sm:$0xf]
  %v1581 = vld [vmem:[%s1560 + $0x50] sm:$0xf]
  %v1582 = vld [vmem:[%s1560 + $0x54] sm:$0xf]
  %v1583 = vld [vmem:[%s1560 + $0x58] sm:$0xf]
  %v1584 = vld [vmem:[%s1560 + $0x5c] sm:$0xf]
  %v1609 = vunpack.c.l.b16 %v1561
  %v1610 = vunpack.c.l.b16 %v1562
  %v1611 = vunpack.c.l.b16 %v1563
  %v1612 = vunpack.c.l.b16 %v1564
  %v1613 = vunpack.c.l.b16 %v1565
  %v1614 = vunpack.c.l.b16 %v1566
  %v1615 = vunpack.c.l.b16 %v1567
  %v1616 = vunpack.c.l.b16 %v1568
  %v1617 = vunpack.c.l.b16 %v1569
  %v1618 = vunpack.c.l.b16 %v1570
  %v1619 = vunpack.c.l.b16 %v1571
  %v1620 = vunpack.c.l.b16 %v1572
  %v1621 = vunpack.c.l.b16 %v1573
  %v1622 = vunpack.c.l.b16 %v1574
  %v1623 = vunpack.c.l.b16 %v1575
  %v1624 = vunpack.c.l.b16 %v1576
  %v1625 = vunpack.c.l.b16 %v1577
  %v1626 = vunpack.c.l.b16 %v1578
  %v1627 = vunpack.c.l.b16 %v1579
  %v1628 = vunpack.c.l.b16 %v1580
  %v1629 = vunpack.c.l.b16 %v1581
  %v1630 = vunpack.c.l.b16 %v1582
  %v1631 = vunpack.c.l.b16 %v1583
  %v1632 = vunpack.c.l.b16 %v1584
  %v1633 = vpack.c.b16 %v1610, %v1609
  %v1634 = vpack.c.b16 %v1612, %v1611
  %v1635 = vpack.c.b16 %v1614, %v1613
  %v1636 = vpack.c.b16 %v1616, %v1615
  %v1637 = vpack.c.b16 %v1618, %v1617
  %v1638 = vpack.c.b16 %v1620, %v1619
  %v1639 = vpack.c.b16 %v1622, %v1621
  %v1640 = vpack.c.b16 %v1624, %v1623
  %v1641 = vpack.c.b16 %v1626, %v1625
  %v1642 = vpack.c.b16 %v1628, %v1627
  %v1643 = vpack.c.b16 %v1630, %v1629
  %v1644 = vpack.c.b16 %v1632, %v1631
  %v1658 = vsel %vm15, %v1545, 0
  %v1661 = vsel %vm15, %v1547, 0
  %v1664 = vsel %vm15, %v1549, 0
  %v1667 = vsel %vm15, %v1551, 0
  %v1670 = vsel %vm15, %v1553, 0
  %v1673 = vsel %vm15, %v1555, 0
  %v1676 = vsel %vm15, %v1557, 0
  %v1679 = vsel %vm15, %v1559, 0
  %1681 = vmatprep.subr.bf16.mxu0 0
  %1682 = vmatpush1.bf16.msra.mxu0 %v1633
  %1683 = vmatprep.subr.bf16.mxu0 0
  %1684 = vmatpush1.bf16.msra.mxu0 %v1634
  %1685 = vmatprep.subr.bf16.mxu0 0
  %1686 = vmatpush1.bf16.msra.mxu0 %v1635
  %1687 = vmatprep.subr.bf16.mxu0 0
  %1688 = vmatpush1.bf16.msra.mxu0 %v1636
  %1689 = vmatprep.subr.bf16.mxu0 0
  %1690 = vmatpush1.bf16.msra.mxu0 %v1637
  %1691 = vmatprep.subr.bf16.mxu0 0
  %1692 = vmatpush1.bf16.msra.mxu0 %v1638
  %1693 = vmatprep.subr.bf16.mxu0 0
  %1694 = vmatpush1.bf16.msra.mxu0 %v1639
  %1695 = vmatprep.subr.bf16.mxu0 0
  %1696 = vmatpush1.bf16.msra.mxu0 %v1640
  %1697 = vmatprep.subr.bf16.mxu0 0
  %1698 = vmatpush1.bf16.msra.mxu0 %v1641
  %1699 = vmatprep.subr.bf16.mxu0 0
  %1700 = vmatpush1.bf16.msra.mxu0 %v1642
  %1701 = vmatprep.subr.bf16.mxu0 0
  %1702 = vmatpush1.bf16.msra.mxu0 %v1643
  %1703 = vmatprep.subr.bf16.mxu0 0
  %1704 = vmatpush1.bf16.msra.mxu0 %v1644
  %1705 = vmatprep.subr.bf16.mxu0 0
  %1706 = vmatpush1.bf16.msra.mxu0 0
  %1707 = vmatprep.subr.bf16.mxu0 0
  %1708 = vmatpush1.bf16.msra.mxu0 0
  %1709 = vmatprep.subr.bf16.mxu0 0
  %1710 = vmatpush1.bf16.msra.mxu0 0
  %1711 = vmatprep.subr.bf16.mxu0 0
  %1712 = vmatpush1.bf16.msra.mxu0 0
  %1713 = vmatprep.mubr.bf16.mxu0 %v1658
  %1714 = vmatmul.mubr.bf16.gmra.mrb[0].mxu0 %v1544
  %v1715 = vpop.f32.mrb[0].mxu0
  %v1716 = vadd.f32 0.0, %v1715
  %v1717 = vpop.f32.mrb[0].mxu0
  %v1718 = vpop.f32.mrb[0].mxu0
  %v1719 = vadd.f32 0.0, %v1718
  %v1720 = vpop.f32.mrb[0].mxu0
  %1721 = vmatprep.mubr.bf16.mxu0 %v1661
  %1722 = vmatmul.mubr.bf16.gmra.mrb[0].mxu0 %v1546
  %v1723 = vpop.f32.mrb[0].mxu0
  %v1724 = vadd.f32 0.0, %v1723
  %v1725 = vpop.f32.mrb[0].mxu0
  %v1726 = vpop.f32.mrb[0].mxu0
  %v1727 = vadd.f32 0.0, %v1726
  %v1728 = vpop.f32.mrb[0].mxu0
  %1729 = vmatprep.mubr.bf16.mxu0 %v1664
  %1730 = vmatmul.mubr.bf16.gmra.mrb[0].mxu0 %v1548
  %v1731 = vpop.f32.mrb[0].mxu0
  %v1732 = vadd.f32 0.0, %v1731
  %v1733 = vpop.f32.mrb[0].mxu0
  %v1734 = vpop.f32.mrb[0].mxu0
  %v1735 = vadd.f32 0.0, %v1734
  %v1736 = vpop.f32.mrb[0].mxu0
  %1737 = vmatprep.mubr.bf16.mxu0 %v1667
  %1738 = vmatmul.mubr.bf16.gmra.mrb[0].mxu0 %v1550
  %v1739 = vpop.f32.mrb[0].mxu0
  %v1740 = vadd.f32 0.0, %v1739
  %v1741 = vpop.f32.mrb[0].mxu0
  %v1742 = vpop.f32.mrb[0].mxu0
  %v1743 = vadd.f32 0.0, %v1742
  %v1744 = vpop.f32.mrb[0].mxu0
  %1745 = vmatprep.mubr.bf16.mxu0 %v1670
  %1746 = vmatmul.mubr.bf16.gmra.mrb[0].mxu0 %v1552
  %v1747 = vpop.f32.mrb[0].mxu0
  %v1748 = vadd.f32 0.0, %v1747
  %v1749 = vpop.f32.mrb[0].mxu0
  %v1750 = vpop.f32.mrb[0].mxu0
  %v1751 = vadd.f32 0.0, %v1750
  %v1752 = vpop.f32.mrb[0].mxu0
  %1753 = vmatprep.mubr.bf16.mxu0 %v1673
  %1754 = vmatmul.mubr.bf16.gmra.mrb[0].mxu0 %v1554
  %v1755 = vpop.f32.mrb[0].mxu0
  %v1756 = vadd.f32 0.0, %v1755
  %v1757 = vpop.f32.mrb[0].mxu0
  %v1758 = vpop.f32.mrb[0].mxu0
  %v1759 = vadd.f32 0.0, %v1758
  %v1760 = vpop.f32.mrb[0].mxu0
  %1761 = vmatprep.mubr.bf16.mxu0 %v1676
  %1762 = vmatmul.mubr.bf16.gmra.mrb[0].mxu0 %v1556
  %v1763 = vpop.f32.mrb[0].mxu0
  %v1764 = vadd.f32 0.0, %v1763
  %v1765 = vpop.f32.mrb[0].mxu0
  %v1766 = vpop.f32.mrb[0].mxu0
  %v1767 = vadd.f32 0.0, %v1766
  %v1768 = vpop.f32.mrb[0].mxu0
  %1769 = vmatprep.mubr.bf16.mxu0 %v1679
  %1770 = vmatmul.mubr.bf16.gmra.mrb[0].mxu0 %v1558
  %v1771 = vpop.f32.mrb[0].mxu0
  %v1772 = vadd.f32 0.0, %v1771
  %v1773 = vpop.f32.mrb[0].mxu0
  %v1774 = vpop.f32.mrb[0].mxu0
  %v1775 = vadd.f32 0.0, %v1774
  %v1776 = vpop.f32.mrb[0].mxu0
  %1777 = vdwg.mxu0
  %v1802 = vunpack.c.l.b16 %v1392
  %v1803 = vunpack.c.l.b16 %v1393
  %v1804 = vunpack.c.l.b16 %v1394
  %v1805 = vunpack.c.l.b16 %v1395
  %v1806 = vunpack.c.l.b16 %v1396
  %v1807 = vunpack.c.l.b16 %v1397
  %v1808 = vunpack.c.l.b16 %v1398
  %v1809 = vunpack.c.l.b16 %v1399
  %v1810 = vunpack.c.l.b16 %v1400
  %v1811 = vunpack.c.l.b16 %v1401
  %v1812 = vunpack.c.l.b16 %v1402
  %v1813 = vunpack.c.l.b16 %v1403
  %v1814 = vunpack.c.l.b16 %v1404
  %v1815 = vunpack.c.l.b16 %v1405
  %v1816 = vunpack.c.l.b16 %v1406
  %v1817 = vunpack.c.l.b16 %v1407
  %v1818 = vunpack.c.l.b16 %v1408
  %v1819 = vunpack.c.l.b16 %v1409
  %v1820 = vunpack.c.l.b16 %v1410
  %v1821 = vunpack.c.l.b16 %v1411
  %v1822 = vunpack.c.l.b16 %v1412
  %v1823 = vunpack.c.l.b16 %v1413
  %v1824 = vunpack.c.l.b16 %v1414
  %v1825 = vunpack.c.l.b16 %v1415
  %v1826 = vpack.c.b16 %v1803, %v1802
  %v1827 = vpack.c.b16 %v1805, %v1804
  %v1828 = vpack.c.b16 %v1807, %v1806
  %v1829 = vpack.c.b16 %v1809, %v1808
  %v1830 = vpack.c.b16 %v1811, %v1810
  %v1831 = vpack.c.b16 %v1813, %v1812
  %v1832 = vpack.c.b16 %v1815, %v1814
  %v1833 = vpack.c.b16 %v1817, %v1816
  %v1834 = vpack.c.b16 %v1819, %v1818
  %v1835 = vpack.c.b16 %v1821, %v1820
  %v1836 = vpack.c.b16 %v1823, %v1822
  %v1837 = vpack.c.b16 %v1825, %v1824
  %v1851 = vsel %vm15, %v1376, 0
  %v1854 = vsel %vm15, %v1378, 0
  %v1857 = vsel %vm15, %v1380, 0
  %v1860 = vsel %vm15, %v1382, 0
  %v1863 = vsel %vm15, %v1384, 0
  %v1866 = vsel %vm15, %v1386, 0
  %v1869 = vsel %vm15, %v1388, 0
  %v1872 = vsel %vm15, %v1390, 0
  %1874 = vmatprep.subr.bf16.mxu0 0
  %1875 = vmatpush1.bf16.msra.mxu0 %v1826
  %1876 = vmatprep.subr.bf16.mxu0 0
  %1877 = vmatpush1.bf16.msra.mxu0 %v1827
  %1878 = vmatprep.subr.bf16.mxu0 0
  %1879 = vmatpush1.bf16.msra.mxu0 %v1828
  %1880 = vmatprep.subr.bf16.mxu0 0
  %1881 = vmatpush1.bf16.msra.mxu0 %v1829
  %1882 = vmatprep.subr.bf16.mxu0 0
  %1883 = vmatpush1.bf16.msra.mxu0 %v1830
  %1884 = vmatprep.subr.bf16.mxu0 0
  %1885 = vmatpush1.bf16.msra.mxu0 %v1831
  %1886 = vmatprep.subr.bf16.mxu0 0
  %1887 = vmatpush1.bf16.msra.mxu0 %v1832
  %1888 = vmatprep.subr.bf16.mxu0 0
  %1889 = vmatpush1.bf16.msra.mxu0 %v1833
  %1890 = vmatprep.subr.bf16.mxu0 0
  %1891 = vmatpush1.bf16.msra.mxu0 %v1834
  %1892 = vmatprep.subr.bf16.mxu0 0
  %1893 = vmatpush1.bf16.msra.mxu0 %v1835
  %1894 = vmatprep.subr.bf16.mxu0 0
  %1895 = vmatpush1.bf16.msra.mxu0 %v1836
  %1896 = vmatprep.subr.bf16.mxu0 0
  %1897 = vmatpush1.bf16.msra.mxu0 %v1837
  %1898 = vmatprep.subr.bf16.mxu0 0
  %1899 = vmatpush1.bf16.msra.mxu0 0
  %1900 = vmatprep.subr.bf16.mxu0 0
  %1901 = vmatpush1.bf16.msra.mxu0 0
  %1902 = vmatprep.subr.bf16.mxu0 0
  %1903 = vmatpush1.bf16.msra.mxu0 0
  %1904 = vmatprep.subr.bf16.mxu0 0
  %1905 = vmatpush1.bf16.msra.mxu0 0
  %1906 = vmatprep.mubr.bf16.mxu0 %v1851
  %1907 = vmatmul.mubr.bf16.gmra.mrb[0].mxu0 %v1375
  %v1908 = vpop.f32.mrb[0].mxu0
  %v1909 = vadd.f32 %v1716, %v1908
  %v1910 = vpop.f32.mrb[0].mxu0
  %v1911 = vpop.f32.mrb[0].mxu0
  %v1912 = vadd.f32 %v1719, %v1911
  %v1913 = vpop.f32.mrb[0].mxu0
  %1914 = vmatprep.mubr.bf16.mxu0 %v1854
  %1915 = vmatmul.mubr.bf16.gmra.mrb[0].mxu0 %v1377
  %v1916 = vpop.f32.mrb[0].mxu0
  %v1917 = vadd.f32 %v1724, %v1916
  %v1918 = vpop.f32.mrb[0].mxu0
  %v1919 = vpop.f32.mrb[0].mxu0
  %v1920 = vadd.f32 %v1727, %v1919
  %v1921 = vpop.f32.mrb[0].mxu0
  %1922 = vmatprep.mubr.bf16.mxu0 %v1857
  %1923 = vmatmul.mubr.bf16.gmra.mrb[0].mxu0 %v1379
  %v1924 = vpop.f32.mrb[0].mxu0
  %v1925 = vadd.f32 %v1732, %v1924
  %v1926 = vpop.f32.mrb[0].mxu0
  %v1927 = vpop.f32.mrb[0].mxu0
  %v1928 = vadd.f32 %v1735, %v1927
  %v1929 = vpop.f32.mrb[0].mxu0
  %1930 = vmatprep.mubr.bf16.mxu0 %v1860
  %1931 = vmatmul.mubr.bf16.gmra.mrb[0].mxu0 %v1381
  %v1932 = vpop.f32.mrb[0].mxu0
  %v1933 = vadd.f32 %v1740, %v1932
  %v1934 = vpop.f32.mrb[0].mxu0
  %v1935 = vpop.f32.mrb[0].mxu0
  %v1936 = vadd.f32 %v1743, %v1935
  %v1937 = vpop.f32.mrb[0].mxu0
  %1938 = vmatprep.mubr.bf16.mxu0 %v1863
  %1939 = vmatmul.mubr.bf16.gmra.mrb[0].mxu0 %v1383
  %v1940 = vpop.f32.mrb[0].mxu0
  %v1941 = vadd.f32 %v1748, %v1940
  %v1942 = vpop.f32.mrb[0].mxu0
  %v1943 = vpop.f32.mrb[0].mxu0
  %v1944 = vadd.f32 %v1751, %v1943
  %v1945 = vpop.f32.mrb[0].mxu0
  %1946 = vmatprep.mubr.bf16.mxu0 %v1866
  %1947 = vmatmul.mubr.bf16.gmra.mrb[0].mxu0 %v1385
  %v1948 = vpop.f32.mrb[0].mxu0
  %v1949 = vadd.f32 %v1756, %v1948
  %v1950 = vpop.f32.mrb[0].mxu0
  %v1951 = vpop.f32.mrb[0].mxu0
  %v1952 = vadd.f32 %v1759, %v1951
  %v1953 = vpop.f32.mrb[0].mxu0
  %1954 = vmatprep.mubr.bf16.mxu0 %v1869
  %1955 = vmatmul.mubr.bf16.gmra.mrb[0].mxu0 %v1387
  %v1956 = vpop.f32.mrb[0].mxu0
  %v1957 = vadd.f32 %v1764, %v1956
  %v1958 = vpop.f32.mrb[0].mxu0
  %v1959 = vpop.f32.mrb[0].mxu0
  %v1960 = vadd.f32 %v1767, %v1959
  %v1961 = vpop.f32.mrb[0].mxu0
  %1962 = vmatprep.mubr.bf16.mxu0 %v1872
  %1963 = vmatmul.mubr.bf16.gmra.mrb[0].mxu0 %v1389
  %v1964 = vpop.f32.mrb[0].mxu0
  %v1965 = vadd.f32 %v1772, %v1964
  %v1966 = vpop.f32.mrb[0].mxu0
  %v1967 = vpop.f32.mrb[0].mxu0
  %v1968 = vadd.f32 %v1775, %v1967
  %v1969 = vpop.f32.mrb[0].mxu0
  %1970 = vdwg.mxu0
  %v1971 = vld [vmem:[%s813] sm:$0xff]
  %v1972 = vld [vmem:[%s813 + $0x10] sm:$0xff]
  %v1973 = vld [vmem:[%s813 + $0x20] sm:$0xff]
  %v1974 = vld [vmem:[%s813 + $0x30] sm:$0xff]
  %v1975 = vld [vmem:[%s813 + $0x40] sm:$0xff]
  %v1976 = vld [vmem:[%s813 + $0x50] sm:$0xff]
  %v1977 = vld [vmem:[%s813 + $0x60] sm:$0xff]
  %v1978 = vld [vmem:[%s813 + $0x70] sm:$0xff]
  %v1979 = vld [vmem:[%s813 + $0xa0] sm:$0xff]
  %v1980 = vld [vmem:[%s813 + $0xb0] sm:$0xff]
  %v1981 = vld [vmem:[%s813 + $0xc0] sm:$0xff]
  %v1982 = vld [vmem:[%s813 + $0xd0] sm:$0xff]
  %v1983 = vld [vmem:[%s813 + $0xe0] sm:$0xff]
  %v1984 = vld [vmem:[%s813 + $0xf0] sm:$0xff]
  %v1985 = vld [vmem:[%s813 + $0x100] sm:$0xff]
  %v1986 = vld [vmem:[%s813 + $0x110] sm:$0xff]
  %v1987 = vld [vmem:[%s813 + $0x1] sm:$0xff]
  %v1988 = vld [vmem:[%s813 + $0x11] sm:$0xff]
  %v1989 = vld [vmem:[%s813 + $0x21] sm:$0xff]
  %v1990 = vld [vmem:[%s813 + $0x31] sm:$0xff]
  %v1991 = vld [vmem:[%s813 + $0x41] sm:$0xff]
  %v1992 = vld [vmem:[%s813 + $0x51] sm:$0xff]
  %v1993 = vld [vmem:[%s813 + $0x61] sm:$0xff]
  %v1994 = vld [vmem:[%s813 + $0x71] sm:$0xff]
  %v1995 = vld [vmem:[%s813 + $0xa1] sm:$0xff]
  %v1996 = vld [vmem:[%s813 + $0xb1] sm:$0xff]
  %v1997 = vld [vmem:[%s813 + $0xc1] sm:$0xff]
  %v1998 = vld [vmem:[%s813 + $0xd1] sm:$0xff]
  %v1999 = vld [vmem:[%s813 + $0xe1] sm:$0xff]
  %v2000 = vld [vmem:[%s813 + $0xf1] sm:$0xff]
  %v2001 = vld [vmem:[%s813 + $0x101] sm:$0xff]
  %v2002 = vld [vmem:[%s813 + $0x111] sm:$0xff]
  %v2003 = vld [vmem:[%s813 + $0x2] sm:$0xff]
  %v2004 = vld [vmem:[%s813 + $0x12] sm:$0xff]
  %v2005 = vld [vmem:[%s813 + $0x22] sm:$0xff]
  %v2006 = vld [vmem:[%s813 + $0x32] sm:$0xff]
  %v2007 = vld [vmem:[%s813 + $0x42] sm:$0xff]
  %v2008 = vld [vmem:[%s813 + $0x52] sm:$0xff]
  %v2009 = vld [vmem:[%s813 + $0x62] sm:$0xff]
  %v2010 = vld [vmem:[%s813 + $0x72] sm:$0xff]
  %v2011 = vld [vmem:[%s813 + $0xa2] sm:$0xff]
  %v2012 = vld [vmem:[%s813 + $0xb2] sm:$0xff]
  %v2013 = vld [vmem:[%s813 + $0xc2] sm:$0xff]
  %v2014 = vld [vmem:[%s813 + $0xd2] sm:$0xff]
  %v2015 = vld [vmem:[%s813 + $0xe2] sm:$0xff]
  %v2016 = vld [vmem:[%s813 + $0xf2] sm:$0xff]
  %v2017 = vld [vmem:[%s813 + $0x102] sm:$0xff]
  %v2018 = vld [vmem:[%s813 + $0x112] sm:$0xff]
  %2035 = vrot.lane.b32.xlu0 %v1987, 64
  %v2036 = vpop.permute.xlu0 %2035
  %2037 = vrot.lane.b32.xlu0 %v1988, 64
  %v2038 = vpop.permute.xlu0 %2037
  %2039 = vrot.lane.b32.xlu0 %v1989, 64
  %v2040 = vpop.permute.xlu0 %2039
  %2041 = vrot.lane.b32.xlu0 %v1990, 64
  %v2042 = vpop.permute.xlu0 %2041
  %2043 = vrot.lane.b32.xlu0 %v1991, 64
  %v2044 = vpop.permute.xlu0 %2043
  %2045 = vrot.lane.b32.xlu0 %v1992, 64
  %v2046 = vpop.permute.xlu0 %2045
  %2047 = vrot.lane.b32.xlu0 %v1993, 64
  %v2048 = vpop.permute.xlu0 %2047
  %2049 = vrot.lane.b32.xlu0 %v1994, 64
  %v2050 = vpop.permute.xlu0 %2049
  %2051 = vrot.lane.b32.xlu0 %v1995, 64
  %v2052 = vpop.permute.xlu0 %2051
  %2053 = vrot.lane.b32.xlu0 %v1996, 64
  %v2054 = vpop.permute.xlu0 %2053
  %2055 = vrot.lane.b32.xlu0 %v1997, 64
  %v2056 = vpop.permute.xlu0 %2055
  %2057 = vrot.lane.b32.xlu0 %v1998, 64
  %v2058 = vpop.permute.xlu0 %2057
  %2059 = vrot.lane.b32.xlu0 %v1999, 64
  %v2060 = vpop.permute.xlu0 %2059
  %2061 = vrot.lane.b32.xlu0 %v2000, 64
  %v2062 = vpop.permute.xlu0 %2061
  %2063 = vrot.lane.b32.xlu0 %v2001, 64
  %v2064 = vpop.permute.xlu0 %2063
  %2065 = vrot.lane.b32.xlu0 %v2002, 64
  %v2066 = vpop.permute.xlu0 %2065
  %v2083 = vsel %vm15, %v1971, %v2036
  %v2084 = vsel %vm15, %v1972, %v2038
  %v2085 = vsel %vm15, %v1973, %v2040
  %v2086 = vsel %vm15, %v1974, %v2042
  %v2087 = vsel %vm15, %v1975, %v2044
  %v2088 = vsel %vm15, %v1976, %v2046
  %v2089 = vsel %vm15, %v1977, %v2048
  %v2090 = vsel %vm15, %v1978, %v2050
  %v2091 = vsel %vm15, %v1979, %v2052
  %v2092 = vsel %vm15, %v1980, %v2054
  %v2093 = vsel %vm15, %v1981, %v2056
  %v2094 = vsel %vm15, %v1982, %v2058
  %v2095 = vsel %vm15, %v1983, %v2060
  %v2096 = vsel %vm15, %v1984, %v2062
  %v2097 = vsel %vm15, %v1985, %v2064
  %v2098 = vsel %vm15, %v1986, %v2066
  %v2099 = vpack.c.bf16 %v2084, %v2083
  %v2100 = vpack.c.bf16 %v2004, %v2003
  %v2101 = vpack.c.bf16 %v2086, %v2085
  %v2102 = vpack.c.bf16 %v2006, %v2005
  %v2103 = vpack.c.bf16 %v2088, %v2087
  %v2104 = vpack.c.bf16 %v2008, %v2007
  %v2105 = vpack.c.bf16 %v2090, %v2089
  %v2106 = vpack.c.bf16 %v2010, %v2009
  %v2107 = vpack.c.bf16 %v2092, %v2091
  %v2108 = vpack.c.bf16 %v2012, %v2011
  %v2109 = vpack.c.bf16 %v2094, %v2093
  %v2110 = vpack.c.bf16 %v2014, %v2013
  %v2111 = vpack.c.bf16 %v2096, %v2095
  %v2112 = vpack.c.bf16 %v2016, %v2015
  %v2113 = vpack.c.bf16 %v2098, %v2097
  %v2114 = vpack.c.bf16 %v2018, %v2017
  %s2115 = scalar_lea.vmem %s1, 480
  %v2116 = vld [vmem:[%s2115] sm:$0xf]
  %v2117 = vld [vmem:[%s2115 + $0x4] sm:$0xf]
  %v2118 = vld [vmem:[%s2115 + $0x8] sm:$0xf]
  %v2119 = vld [vmem:[%s2115 + $0xc] sm:$0xf]
  %v2120 = vld [vmem:[%s2115 + $0x10] sm:$0xf]
  %v2121 = vld [vmem:[%s2115 + $0x14] sm:$0xf]
  %v2122 = vld [vmem:[%s2115 + $0x18] sm:$0xf]
  %v2123 = vld [vmem:[%s2115 + $0x1c] sm:$0xf]
  %v2124 = vld [vmem:[%s2115 + $0x20] sm:$0xf]
  %v2125 = vld [vmem:[%s2115 + $0x24] sm:$0xf]
  %v2126 = vld [vmem:[%s2115 + $0x28] sm:$0xf]
  %v2127 = vld [vmem:[%s2115 + $0x2c] sm:$0xf]
  %v2128 = vld [vmem:[%s2115 + $0x30] sm:$0xf]
  %v2129 = vld [vmem:[%s2115 + $0x34] sm:$0xf]
  %v2130 = vld [vmem:[%s2115 + $0x38] sm:$0xf]
  %v2131 = vld [vmem:[%s2115 + $0x3c] sm:$0xf]
  %v2132 = vld [vmem:[%s2115 + $0x40] sm:$0xf]
  %v2133 = vld [vmem:[%s2115 + $0x44] sm:$0xf]
  %v2134 = vld [vmem:[%s2115 + $0x48] sm:$0xf]
  %v2135 = vld [vmem:[%s2115 + $0x4c] sm:$0xf]
  %v2136 = vld [vmem:[%s2115 + $0x50] sm:$0xf]
  %v2137 = vld [vmem:[%s2115 + $0x54] sm:$0xf]
  %v2138 = vld [vmem:[%s2115 + $0x58] sm:$0xf]
  %v2139 = vld [vmem:[%s2115 + $0x5c] sm:$0xf]
  %v2164 = vunpack.c.l.b16 %v2116
  %v2165 = vunpack.c.l.b16 %v2117
  %v2166 = vunpack.c.l.b16 %v2118
  %v2167 = vunpack.c.l.b16 %v2119
  %v2168 = vunpack.c.l.b16 %v2120
  %v2169 = vunpack.c.l.b16 %v2121
  %v2170 = vunpack.c.l.b16 %v2122
  %v2171 = vunpack.c.l.b16 %v2123
  %v2172 = vunpack.c.l.b16 %v2124
  %v2173 = vunpack.c.l.b16 %v2125
  %v2174 = vunpack.c.l.b16 %v2126
  %v2175 = vunpack.c.l.b16 %v2127
  %v2176 = vunpack.c.l.b16 %v2128
  %v2177 = vunpack.c.l.b16 %v2129
  %v2178 = vunpack.c.l.b16 %v2130
  %v2179 = vunpack.c.l.b16 %v2131
  %v2180 = vunpack.c.l.b16 %v2132
  %v2181 = vunpack.c.l.b16 %v2133
  %v2182 = vunpack.c.l.b16 %v2134
  %v2183 = vunpack.c.l.b16 %v2135
  %v2184 = vunpack.c.l.b16 %v2136
  %v2185 = vunpack.c.l.b16 %v2137
  %v2186 = vunpack.c.l.b16 %v2138
  %v2187 = vunpack.c.l.b16 %v2139
  %v2188 = vpack.c.b16 %v2165, %v2164
  %v2189 = vpack.c.b16 %v2167, %v2166
  %v2190 = vpack.c.b16 %v2169, %v2168
  %v2191 = vpack.c.b16 %v2171, %v2170
  %v2192 = vpack.c.b16 %v2173, %v2172
  %v2193 = vpack.c.b16 %v2175, %v2174
  %v2194 = vpack.c.b16 %v2177, %v2176
  %v2195 = vpack.c.b16 %v2179, %v2178
  %v2196 = vpack.c.b16 %v2181, %v2180
  %v2197 = vpack.c.b16 %v2183, %v2182
  %v2198 = vpack.c.b16 %v2185, %v2184
  %v2199 = vpack.c.b16 %v2187, %v2186
  %v2213 = vsel %vm15, %v2100, 0
  %v2216 = vsel %vm15, %v2102, 0
  %v2219 = vsel %vm15, %v2104, 0
  %v2222 = vsel %vm15, %v2106, 0
  %v2225 = vsel %vm15, %v2108, 0
  %v2228 = vsel %vm15, %v2110, 0
  %v2231 = vsel %vm15, %v2112, 0
  %v2234 = vsel %vm15, %v2114, 0
  %2236 = vmatprep.subr.bf16.mxu0 0
  %2237 = vmatpush1.bf16.msra.mxu0 %v2188
  %2238 = vmatprep.subr.bf16.mxu0 0
  %2239 = vmatpush1.bf16.msra.mxu0 %v2189
  %2240 = vmatprep.subr.bf16.mxu0 0
  %2241 = vmatpush1.bf16.msra.mxu0 %v2190
  %2242 = vmatprep.subr.bf16.mxu0 0
  %2243 = vmatpush1.bf16.msra.mxu0 %v2191
  %2244 = vmatprep.subr.bf16.mxu0 0
  %2245 = vmatpush1.bf16.msra.mxu0 %v2192
  %2246 = vmatprep.subr.bf16.mxu0 0
  %2247 = vmatpush1.bf16.msra.mxu0 %v2193
  %2248 = vmatprep.subr.bf16.mxu0 0
  %2249 = vmatpush1.bf16.msra.mxu0 %v2194
  %2250 = vmatprep.subr.bf16.mxu0 0
  %2251 = vmatpush1.bf16.msra.mxu0 %v2195
  %2252 = vmatprep.subr.bf16.mxu0 0
  %2253 = vmatpush1.bf16.msra.mxu0 %v2196
  %2254 = vmatprep.subr.bf16.mxu0 0
  %2255 = vmatpush1.bf16.msra.mxu0 %v2197
  %2256 = vmatprep.subr.bf16.mxu0 0
  %2257 = vmatpush1.bf16.msra.mxu0 %v2198
  %2258 = vmatprep.subr.bf16.mxu0 0
  %2259 = vmatpush1.bf16.msra.mxu0 %v2199
  %2260 = vmatprep.subr.bf16.mxu0 0
  %2261 = vmatpush1.bf16.msra.mxu0 0
  %2262 = vmatprep.subr.bf16.mxu0 0
  %2263 = vmatpush1.bf16.msra.mxu0 0
  %2264 = vmatprep.subr.bf16.mxu0 0
  %2265 = vmatpush1.bf16.msra.mxu0 0
  %2266 = vmatprep.subr.bf16.mxu0 0
  %2267 = vmatpush1.bf16.msra.mxu0 0
  %2268 = vmatprep.mubr.bf16.mxu0 %v2213
  %2269 = vmatmul.mubr.bf16.gmra.mrb[0].mxu0 %v2099
  %v2270 = vpop.f32.mrb[0].mxu0
  %v2271 = vadd.f32 0.0, %v2270
  %v2272 = vpop.f32.mrb[0].mxu0
  %v2273 = vpop.f32.mrb[0].mxu0
  %v2274 = vadd.f32 0.0, %v2273
  %v2275 = vpop.f32.mrb[0].mxu0
  %2276 = vmatprep.mubr.bf16.mxu0 %v2216
  %2277 = vmatmul.mubr.bf16.gmra.mrb[0].mxu0 %v2101
  %v2278 = vpop.f32.mrb[0].mxu0
  %v2279 = vadd.f32 0.0, %v2278
  %v2280 = vpop.f32.mrb[0].mxu0
  %v2281 = vpop.f32.mrb[0].mxu0
  %v2282 = vadd.f32 0.0, %v2281
  %v2283 = vpop.f32.mrb[0].mxu0
  %2284 = vmatprep.mubr.bf16.mxu0 %v2219
  %2285 = vmatmul.mubr.bf16.gmra.mrb[0].mxu0 %v2103
  %v2286 = vpop.f32.mrb[0].mxu0
  %v2287 = vadd.f32 0.0, %v2286
  %v2288 = vpop.f32.mrb[0].mxu0
  %v2289 = vpop.f32.mrb[0].mxu0
  %v2290 = vadd.f32 0.0, %v2289
  %v2291 = vpop.f32.mrb[0].mxu0
  %2292 = vmatprep.mubr.bf16.mxu0 %v2222
  %2293 = vmatmul.mubr.bf16.gmra.mrb[0].mxu0 %v2105
  %v2294 = vpop.f32.mrb[0].mxu0
  %v2295 = vadd.f32 0.0, %v2294
  %v2296 = vpop.f32.mrb[0].mxu0
  %v2297 = vpop.f32.mrb[0].mxu0
  %v2298 = vadd.f32 0.0, %v2297
  %v2299 = vpop.f32.mrb[0].mxu0
  %2300 = vmatprep.mubr.bf16.mxu0 %v2225
  %2301 = vmatmul.mubr.bf16.gmra.mrb[0].mxu0 %v2107
  %v2302 = vpop.f32.mrb[0].mxu0
  %v2303 = vadd.f32 0.0, %v2302
  %v2304 = vpop.f32.mrb[0].mxu0
  %v2305 = vpop.f32.mrb[0].mxu0
  %v2306 = vadd.f32 0.0, %v2305
  %v2307 = vpop.f32.mrb[0].mxu0
  %2308 = vmatprep.mubr.bf16.mxu0 %v2228
  %2309 = vmatmul.mubr.bf16.gmra.mrb[0].mxu0 %v2109
  %v2310 = vpop.f32.mrb[0].mxu0
  %v2311 = vadd.f32 0.0, %v2310
  %v2312 = vpop.f32.mrb[0].mxu0
  %v2313 = vpop.f32.mrb[0].mxu0
  %v2314 = vadd.f32 0.0, %v2313
  %v2315 = vpop.f32.mrb[0].mxu0
  %2316 = vmatprep.mubr.bf16.mxu0 %v2231
  %2317 = vmatmul.mubr.bf16.gmra.mrb[0].mxu0 %v2111
  %v2318 = vpop.f32.mrb[0].mxu0
  %v2319 = vadd.f32 0.0, %v2318
  %v2320 = vpop.f32.mrb[0].mxu0
  %v2321 = vpop.f32.mrb[0].mxu0
  %v2322 = vadd.f32 0.0, %v2321
  %v2323 = vpop.f32.mrb[0].mxu0
  %2324 = vmatprep.mubr.bf16.mxu0 %v2234
  %2325 = vmatmul.mubr.bf16.gmra.mrb[0].mxu0 %v2113
  %v2326 = vpop.f32.mrb[0].mxu0
  %v2327 = vadd.f32 0.0, %v2326
  %v2328 = vpop.f32.mrb[0].mxu0
  %v2329 = vpop.f32.mrb[0].mxu0
  %v2330 = vadd.f32 0.0, %v2329
  %v2331 = vpop.f32.mrb[0].mxu0
  %2332 = vdwg.mxu0
  %v2333 = vadd.f32 %v1909, %v2271
  %v2334 = vadd.f32 %v1912, %v2274
  %v2335 = vadd.f32 %v1917, %v2279
  %v2336 = vadd.f32 %v1920, %v2282
  %v2337 = vadd.f32 %v1925, %v2287
  %v2338 = vadd.f32 %v1928, %v2290
  %v2339 = vadd.f32 %v1933, %v2295
  %v2340 = vadd.f32 %v1936, %v2298
  %v2341 = vadd.f32 %v1941, %v2303
  %v2342 = vadd.f32 %v1944, %v2306
  %v2343 = vadd.f32 %v1949, %v2311
  %v2344 = vadd.f32 %v1952, %v2314
  %v2345 = vadd.f32 %v1957, %v2319
  %v2346 = vadd.f32 %v1960, %v2322
  %v2347 = vadd.f32 %v1965, %v2327
  %v2348 = vadd.f32 %v1968, %v2330
  %s2349 = scalar_lea.vmem %s2, 1
  %v2350 = vld [vmem:[%s2349] sm:$0x1]
  %v2352 = vlaneseq
  %v2353 = vshrl.u32 %v2352, 7
  %v2354 = vsub.s32 0, %v2353
  %v2355 = vrot.slane %v2350, %v2354
  %v2357 = vadd.f32 %v2333, %v2355
  %v2358 = vadd.f32 %v2334, %v2355
  %v2359 = vadd.f32 %v2335, %v2355
  %v2360 = vadd.f32 %v2336, %v2355
  %v2361 = vadd.f32 %v2337, %v2355
  %v2362 = vadd.f32 %v2338, %v2355
  %v2363 = vadd.f32 %v2339, %v2355
  %v2364 = vadd.f32 %v2340, %v2355
  %v2365 = vadd.f32 %v2341, %v2355
  %v2366 = vadd.f32 %v2342, %v2355
  %v2367 = vadd.f32 %v2343, %v2355
  %v2368 = vadd.f32 %v2344, %v2355
  %v2369 = vadd.f32 %v2345, %v2355
  %v2370 = vadd.f32 %v2346, %v2355
  %v2371 = vadd.f32 %v2347, %v2355
  %v2372 = vadd.f32 %v2348, %v2355
  %v2373 = vadd.f32 %v2357, %v57
  %v2374 = vadd.f32 %v2358, %v58
  %v2375 = vadd.f32 %v2359, %v59
  %v2376 = vadd.f32 %v2360, %v60
  %v2377 = vadd.f32 %v2361, %v61
  %v2378 = vadd.f32 %v2362, %v62
  %v2379 = vadd.f32 %v2363, %v63
  %v2380 = vadd.f32 %v2364, %v64
  %v2381 = vadd.f32 %v2365, %v65
  %v2382 = vadd.f32 %v2366, %v66
  %v2383 = vadd.f32 %v2367, %v67
  %v2384 = vadd.f32 %v2368, %v68
  %v2385 = vadd.f32 %v2369, %v69
  %v2386 = vadd.f32 %v2370, %v70
  %v2387 = vadd.f32 %v2371, %v71
  %v2388 = vadd.f32 %v2372, %v72
  %v2389 = vmax.f32 %v2373, 0.0
  %v2390 = vmax.f32 %v2374, 0.0
  %v2391 = vmax.f32 %v2375, 0.0
  %v2392 = vmax.f32 %v2376, 0.0
  %v2393 = vmax.f32 %v2377, 0.0
  %v2394 = vmax.f32 %v2378, 0.0
  %v2395 = vmax.f32 %v2379, 0.0
  %v2396 = vmax.f32 %v2380, 0.0
  %v2397 = vmax.f32 %v2381, 0.0
  %v2398 = vmax.f32 %v2382, 0.0
  %v2399 = vmax.f32 %v2383, 0.0
  %v2400 = vmax.f32 %v2384, 0.0
  %v2401 = vmax.f32 %v2385, 0.0
  %v2402 = vmax.f32 %v2386, 0.0
  %v2403 = vmax.f32 %v2387, 0.0
  %v2404 = vmax.f32 %v2388, 0.0
  %2405 = vst.msk [vmem:[%s73 + $0x1] sm:$0xff] %vm15, %v2389
  %2406 = vst.msk [vmem:[%s73 + $0x11] sm:$0xff] %vm15, %v2390
  %2407 = vst.msk [vmem:[%s73 + $0x21] sm:$0xff] %vm15, %v2391
  %2408 = vst.msk [vmem:[%s73 + $0x31] sm:$0xff] %vm15, %v2392
  %2409 = vst.msk [vmem:[%s73 + $0x41] sm:$0xff] %vm15, %v2393
  %2410 = vst.msk [vmem:[%s73 + $0x51] sm:$0xff] %vm15, %v2394
  %2411 = vst.msk [vmem:[%s73 + $0x61] sm:$0xff] %vm15, %v2395
  %2412 = vst.msk [vmem:[%s73 + $0x71] sm:$0xff] %vm15, %v2396
  %2413 = vst.msk [vmem:[%s73 + $0xa1] sm:$0xff] %vm15, %v2397
  %2414 = vst.msk [vmem:[%s73 + $0xb1] sm:$0xff] %vm15, %v2398
  %2415 = vst.msk [vmem:[%s73 + $0xc1] sm:$0xff] %vm15, %v2399
  %2416 = vst.msk [vmem:[%s73 + $0xd1] sm:$0xff] %vm15, %v2400
  %2417 = vst.msk [vmem:[%s73 + $0xe1] sm:$0xff] %vm15, %v2401
  %2418 = vst.msk [vmem:[%s73 + $0xf1] sm:$0xff] %vm15, %v2402
  %2419 = vst.msk [vmem:[%s73 + $0x101] sm:$0xff] %vm15, %v2403
  %2420 = vst.msk [vmem:[%s73 + $0x111] sm:$0xff] %vm15, %v2404
  %v2421 = vld [vmem:[#allocation2] sm:$0xff]
  %v2422 = vld [vmem:[#allocation2 + $0x10] sm:$0xff]
  %v2423 = vld [vmem:[#allocation2 + $0x20] sm:$0xff]
  %v2424 = vld [vmem:[#allocation2 + $0x30] sm:$0xff]
  %v2425 = vld [vmem:[#allocation2 + $0x40] sm:$0xff]
  %v2426 = vld [vmem:[#allocation2 + $0x50] sm:$0xff]
  %v2427 = vld [vmem:[#allocation2 + $0x60] sm:$0xff]
  %v2428 = vld [vmem:[#allocation2 + $0x70] sm:$0xff]
  %v2429 = vld [vmem:[#allocation2 + $0xa0] sm:$0xff]
  %v2430 = vld [vmem:[#allocation2 + $0xb0] sm:$0xff]
  %v2431 = vld [vmem:[#allocation2 + $0xc0] sm:$0xff]
  %v2432 = vld [vmem:[#allocation2 + $0xd0] sm:$0xff]
  %v2433 = vld [vmem:[#allocation2 + $0xe0] sm:$0xff]
  %v2434 = vld [vmem:[#allocation2 + $0xf0] sm:$0xff]
  %v2435 = vld [vmem:[#allocation2 + $0x100] sm:$0xff]
  %v2436 = vld [vmem:[#allocation2 + $0x110] sm:$0xff]
  %v2437 = vld [vmem:[#allocation2 + $0x1] sm:$0xff]
  %v2438 = vld [vmem:[#allocation2 + $0x11] sm:$0xff]
  %v2439 = vld [vmem:[#allocation2 + $0x21] sm:$0xff]
  %v2440 = vld [vmem:[#allocation2 + $0x31] sm:$0xff]
  %v2441 = vld [vmem:[#allocation2 + $0x41] sm:$0xff]
  %v2442 = vld [vmem:[#allocation2 + $0x51] sm:$0xff]
  %v2443 = vld [vmem:[#allocation2 + $0x61] sm:$0xff]
  %v2444 = vld [vmem:[#allocation2 + $0x71] sm:$0xff]
  %v2445 = vld [vmem:[#allocation2 + $0xa1] sm:$0xff]
  %v2446 = vld [vmem:[#allocation2 + $0xb1] sm:$0xff]
  %v2447 = vld [vmem:[#allocation2 + $0xc1] sm:$0xff]
  %v2448 = vld [vmem:[#allocation2 + $0xd1] sm:$0xff]
  %v2449 = vld [vmem:[#allocation2 + $0xe1] sm:$0xff]
  %v2450 = vld [vmem:[#allocation2 + $0xf1] sm:$0xff]
  %v2451 = vld [vmem:[#allocation2 + $0x101] sm:$0xff]
  %v2452 = vld [vmem:[#allocation2 + $0x111] sm:$0xff]
  %v2453 = vld [vmem:[#allocation2 + $0x2] sm:$0xff]
  %v2454 = vld [vmem:[#allocation2 + $0x12] sm:$0xff]
  %v2455 = vld [vmem:[#allocation2 + $0x22] sm:$0xff]
  %v2456 = vld [vmem:[#allocation2 + $0x32] sm:$0xff]
  %v2457 = vld [vmem:[#allocation2 + $0x42] sm:$0xff]
  %v2458 = vld [vmem:[#allocation2 + $0x52] sm:$0xff]
  %v2459 = vld [vmem:[#allocation2 + $0x62] sm:$0xff]
  %v2460 = vld [vmem:[#allocation2 + $0x72] sm:$0xff]
  %v2461 = vld [vmem:[#allocation2 + $0xa2] sm:$0xff]
  %v2462 = vld [vmem:[#allocation2 + $0xb2] sm:$0xff]
  %v2463 = vld [vmem:[#allocation2 + $0xc2] sm:$0xff]
  %v2464 = vld [vmem:[#allocation2 + $0xd2] sm:$0xff]
  %v2465 = vld [vmem:[#allocation2 + $0xe2] sm:$0xff]
  %v2466 = vld [vmem:[#allocation2 + $0xf2] sm:$0xff]
  %v2467 = vld [vmem:[#allocation2 + $0x102] sm:$0xff]
  %v2468 = vld [vmem:[#allocation2 + $0x112] sm:$0xff]
  %2485 = vrot.lane.b32.xlu0 %v2437, 64
  %v2486 = vpop.permute.xlu0 %2485
  %2487 = vrot.lane.b32.xlu0 %v2438, 64
  %v2488 = vpop.permute.xlu0 %2487
  %2489 = vrot.lane.b32.xlu0 %v2439, 64
  %v2490 = vpop.permute.xlu0 %2489
  %2491 = vrot.lane.b32.xlu0 %v2440, 64
  %v2492 = vpop.permute.xlu0 %2491
  %2493 = vrot.lane.b32.xlu0 %v2441, 64
  %v2494 = vpop.permute.xlu0 %2493
  %2495 = vrot.lane.b32.xlu0 %v2442, 64
  %v2496 = vpop.permute.xlu0 %2495
  %2497 = vrot.lane.b32.xlu0 %v2443, 64
  %v2498 = vpop.permute.xlu0 %2497
  %2499 = vrot.lane.b32.xlu0 %v2444, 64
  %v2500 = vpop.permute.xlu0 %2499
  %2501 = vrot.lane.b32.xlu0 %v2445, 64
  %v2502 = vpop.permute.xlu0 %2501
  %2503 = vrot.lane.b32.xlu0 %v2446, 64
  %v2504 = vpop.permute.xlu0 %2503
  %2505 = vrot.lane.b32.xlu0 %v2447, 64
  %v2506 = vpop.permute.xlu0 %2505
  %2507 = vrot.lane.b32.xlu0 %v2448, 64
  %v2508 = vpop.permute.xlu0 %2507
  %2509 = vrot.lane.b32.xlu0 %v2449, 64
  %v2510 = vpop.permute.xlu0 %2509
  %2511 = vrot.lane.b32.xlu0 %v2450, 64
  %v2512 = vpop.permute.xlu0 %2511
  %2513 = vrot.lane.b32.xlu0 %v2451, 64
  %v2514 = vpop.permute.xlu0 %2513
  %2515 = vrot.lane.b32.xlu0 %v2452, 64
  %v2516 = vpop.permute.xlu0 %2515
  %v2533 = vsel %vm15, %v2421, %v2486
  %v2534 = vsel %vm15, %v2422, %v2488
  %v2535 = vsel %vm15, %v2423, %v2490
  %v2536 = vsel %vm15, %v2424, %v2492
  %v2537 = vsel %vm15, %v2425, %v2494
  %v2538 = vsel %vm15, %v2426, %v2496
  %v2539 = vsel %vm15, %v2427, %v2498
  %v2540 = vsel %vm15, %v2428, %v2500
  %v2541 = vsel %vm15, %v2429, %v2502
  %v2542 = vsel %vm15, %v2430, %v2504
  %v2543 = vsel %vm15, %v2431, %v2506
  %v2544 = vsel %vm15, %v2432, %v2508
  %v2545 = vsel %vm15, %v2433, %v2510
  %v2546 = vsel %vm15, %v2434, %v2512
  %v2547 = vsel %vm15, %v2435, %v2514
  %v2548 = vsel %vm15, %v2436, %v2516
  %v2549 = vpack.c.bf16 %v2534, %v2533
  %v2550 = vpack.c.bf16 %v2454, %v2453
  %v2551 = vpack.c.bf16 %v2536, %v2535
  %v2552 = vpack.c.bf16 %v2456, %v2455
  %v2553 = vpack.c.bf16 %v2538, %v2537
  %v2554 = vpack.c.bf16 %v2458, %v2457
  %v2555 = vpack.c.bf16 %v2540, %v2539
  %v2556 = vpack.c.bf16 %v2460, %v2459
  %v2557 = vpack.c.bf16 %v2542, %v2541
  %v2558 = vpack.c.bf16 %v2462, %v2461
  %v2559 = vpack.c.bf16 %v2544, %v2543
  %v2560 = vpack.c.bf16 %v2464, %v2463
  %v2561 = vpack.c.bf16 %v2546, %v2545
  %v2562 = vpack.c.bf16 %v2466, %v2465
  %v2563 = vpack.c.bf16 %v2548, %v2547
  %v2564 = vpack.c.bf16 %v2468, %v2467
  %s2565 = scalar_lea.vmem %s1, 576
  %v2566 = vld [vmem:[%s2565] sm:$0xf]
  %v2567 = vld [vmem:[%s2565 + $0x4] sm:$0xf]
  %v2568 = vld [vmem:[%s2565 + $0x8] sm:$0xf]
  %v2569 = vld [vmem:[%s2565 + $0xc] sm:$0xf]
  %v2570 = vld [vmem:[%s2565 + $0x10] sm:$0xf]
  %v2571 = vld [vmem:[%s2565 + $0x14] sm:$0xf]
  %v2572 = vld [vmem:[%s2565 + $0x18] sm:$0xf]
  %v2573 = vld [vmem:[%s2565 + $0x1c] sm:$0xf]
  %v2574 = vld [vmem:[%s2565 + $0x20] sm:$0xf]
  %v2575 = vld [vmem:[%s2565 + $0x24] sm:$0xf]
  %v2576 = vld [vmem:[%s2565 + $0x28] sm:$0xf]
  %v2577 = vld [vmem:[%s2565 + $0x2c] sm:$0xf]
  %v2578 = vld [vmem:[%s2565 + $0x30] sm:$0xf]
  %v2579 = vld [vmem:[%s2565 + $0x34] sm:$0xf]
  %v2580 = vld [vmem:[%s2565 + $0x38] sm:$0xf]
  %v2581 = vld [vmem:[%s2565 + $0x3c] sm:$0xf]
  %v2582 = vld [vmem:[%s2565 + $0x40] sm:$0xf]
  %v2583 = vld [vmem:[%s2565 + $0x44] sm:$0xf]
  %v2584 = vld [vmem:[%s2565 + $0x48] sm:$0xf]
  %v2585 = vld [vmem:[%s2565 + $0x4c] sm:$0xf]
  %v2586 = vld [vmem:[%s2565 + $0x50] sm:$0xf]
  %v2587 = vld [vmem:[%s2565 + $0x54] sm:$0xf]
  %v2588 = vld [vmem:[%s2565 + $0x58] sm:$0xf]
  %v2589 = vld [vmem:[%s2565 + $0x5c] sm:$0xf]
  %v2590 = vld [vmem:[%s73] sm:$0xff]
  %v2591 = vld [vmem:[%s73 + $0x10] sm:$0xff]
  %v2592 = vld [vmem:[%s73 + $0x20] sm:$0xff]
  %v2593 = vld [vmem:[%s73 + $0x30] sm:$0xff]
  %v2594 = vld [vmem:[%s73 + $0x40] sm:$0xff]
  %v2595 = vld [vmem:[%s73 + $0x50] sm:$0xff]
  %v2596 = vld [vmem:[%s73 + $0x60] sm:$0xff]
  %v2597 = vld [vmem:[%s73 + $0x70] sm:$0xff]
  %v2598 = vld [vmem:[%s73 + $0xa0] sm:$0xff]
  %v2599 = vld [vmem:[%s73 + $0xb0] sm:$0xff]
  %v2600 = vld [vmem:[%s73 + $0xc0] sm:$0xff]
  %v2601 = vld [vmem:[%s73 + $0xd0] sm:$0xff]
  %v2602 = vld [vmem:[%s73 + $0xe0] sm:$0xff]
  %v2603 = vld [vmem:[%s73 + $0xf0] sm:$0xff]
  %v2604 = vld [vmem:[%s73 + $0x100] sm:$0xff]
  %v2605 = vld [vmem:[%s73 + $0x110] sm:$0xff]
  %v2606 = vld [vmem:[%s73 + $0x1] sm:$0xff]
  %v2607 = vld [vmem:[%s73 + $0x11] sm:$0xff]
  %v2608 = vld [vmem:[%s73 + $0x21] sm:$0xff]
  %v2609 = vld [vmem:[%s73 + $0x31] sm:$0xff]
  %v2610 = vld [vmem:[%s73 + $0x41] sm:$0xff]
  %v2611 = vld [vmem:[%s73 + $0x51] sm:$0xff]
  %v2612 = vld [vmem:[%s73 + $0x61] sm:$0xff]
  %v2613 = vld [vmem:[%s73 + $0x71] sm:$0xff]
  %v2614 = vld [vmem:[%s73 + $0xa1] sm:$0xff]
  %v2615 = vld [vmem:[%s73 + $0xb1] sm:$0xff]
  %v2616 = vld [vmem:[%s73 + $0xc1] sm:$0xff]
  %v2617 = vld [vmem:[%s73 + $0xd1] sm:$0xff]
  %v2618 = vld [vmem:[%s73 + $0xe1] sm:$0xff]
  %v2619 = vld [vmem:[%s73 + $0xf1] sm:$0xff]
  %v2620 = vld [vmem:[%s73 + $0x101] sm:$0xff]
  %v2621 = vld [vmem:[%s73 + $0x111] sm:$0xff]
  %v2622 = vld [vmem:[%s73 + $0x2] sm:$0xff]
  %v2623 = vld [vmem:[%s73 + $0x12] sm:$0xff]
  %v2624 = vld [vmem:[%s73 + $0x22] sm:$0xff]
  %v2625 = vld [vmem:[%s73 + $0x32] sm:$0xff]
  %v2626 = vld [vmem:[%s73 + $0x42] sm:$0xff]
  %v2627 = vld [vmem:[%s73 + $0x52] sm:$0xff]
  %v2628 = vld [vmem:[%s73 + $0x62] sm:$0xff]
  %v2629 = vld [vmem:[%s73 + $0x72] sm:$0xff]
  %v2630 = vld [vmem:[%s73 + $0xa2] sm:$0xff]
  %v2631 = vld [vmem:[%s73 + $0xb2] sm:$0xff]
  %v2632 = vld [vmem:[%s73 + $0xc2] sm:$0xff]
  %v2633 = vld [vmem:[%s73 + $0xd2] sm:$0xff]
  %v2634 = vld [vmem:[%s73 + $0xe2] sm:$0xff]
  %v2635 = vld [vmem:[%s73 + $0xf2] sm:$0xff]
  %v2636 = vld [vmem:[%s73 + $0x102] sm:$0xff]
  %v2637 = vld [vmem:[%s73 + $0x112] sm:$0xff]
  %2654 = vrot.lane.b32.xlu0 %v2606, 64
  %v2655 = vpop.permute.xlu0 %2654
  %2656 = vrot.lane.b32.xlu0 %v2607, 64
  %v2657 = vpop.permute.xlu0 %2656
  %2658 = vrot.lane.b32.xlu0 %v2608, 64
  %v2659 = vpop.permute.xlu0 %2658
  %2660 = vrot.lane.b32.xlu0 %v2609, 64
  %v2661 = vpop.permute.xlu0 %2660
  %2662 = vrot.lane.b32.xlu0 %v2610, 64
  %v2663 = vpop.permute.xlu0 %2662
  %2664 = vrot.lane.b32.xlu0 %v2611, 64
  %v2665 = vpop.permute.xlu0 %2664
  %2666 = vrot.lane.b32.xlu0 %v2612, 64
  %v2667 = vpop.permute.xlu0 %2666
  %2668 = vrot.lane.b32.xlu0 %v2613, 64
  %v2669 = vpop.permute.xlu0 %2668
  %2670 = vrot.lane.b32.xlu0 %v2614, 64
  %v2671 = vpop.permute.xlu0 %2670
  %2672 = vrot.lane.b32.xlu0 %v2615, 64
  %v2673 = vpop.permute.xlu0 %2672
  %2674 = vrot.lane.b32.xlu0 %v2616, 64
  %v2675 = vpop.permute.xlu0 %2674
  %2676 = vrot.lane.b32.xlu0 %v2617, 64
  %v2677 = vpop.permute.xlu0 %2676
  %2678 = vrot.lane.b32.xlu0 %v2618, 64
  %v2679 = vpop.permute.xlu0 %2678
  %2680 = vrot.lane.b32.xlu0 %v2619, 64
  %v2681 = vpop.permute.xlu0 %2680
  %2682 = vrot.lane.b32.xlu0 %v2620, 64
  %v2683 = vpop.permute.xlu0 %2682
  %2684 = vrot.lane.b32.xlu0 %v2621, 64
  %v2685 = vpop.permute.xlu0 %2684
  %v2702 = vsel %vm15, %v2590, %v2655
  %v2703 = vsel %vm15, %v2591, %v2657
  %v2704 = vsel %vm15, %v2592, %v2659
  %v2705 = vsel %vm15, %v2593, %v2661
  %v2706 = vsel %vm15, %v2594, %v2663
  %v2707 = vsel %vm15, %v2595, %v2665
  %v2708 = vsel %vm15, %v2596, %v2667
  %v2709 = vsel %vm15, %v2597, %v2669
  %v2710 = vsel %vm15, %v2598, %v2671
  %v2711 = vsel %vm15, %v2599, %v2673
  %v2712 = vsel %vm15, %v2600, %v2675
  %v2713 = vsel %vm15, %v2601, %v2677
  %v2714 = vsel %vm15, %v2602, %v2679
  %v2715 = vsel %vm15, %v2603, %v2681
  %v2716 = vsel %vm15, %v2604, %v2683
  %v2717 = vsel %vm15, %v2605, %v2685
  %v2718 = vpack.c.bf16 %v2703, %v2702
  %v2719 = vpack.c.bf16 %v2623, %v2622
  %v2720 = vpack.c.bf16 %v2705, %v2704
  %v2721 = vpack.c.bf16 %v2625, %v2624
  %v2722 = vpack.c.bf16 %v2707, %v2706
  %v2723 = vpack.c.bf16 %v2627, %v2626
  %v2724 = vpack.c.bf16 %v2709, %v2708
  %v2725 = vpack.c.bf16 %v2629, %v2628
  %v2726 = vpack.c.bf16 %v2711, %v2710
  %v2727 = vpack.c.bf16 %v2631, %v2630
  %v2728 = vpack.c.bf16 %v2713, %v2712
  %v2729 = vpack.c.bf16 %v2633, %v2632
  %v2730 = vpack.c.bf16 %v2715, %v2714
  %v2731 = vpack.c.bf16 %v2635, %v2634
  %v2732 = vpack.c.bf16 %v2717, %v2716
  %v2733 = vpack.c.bf16 %v2637, %v2636
  %s2734 = scalar_lea.vmem %s1, 672
  %v2735 = vld [vmem:[%s2734] sm:$0xf]
  %v2736 = vld [vmem:[%s2734 + $0x4] sm:$0xf]
  %v2737 = vld [vmem:[%s2734 + $0x8] sm:$0xf]
  %v2738 = vld [vmem:[%s2734 + $0xc] sm:$0xf]
  %v2739 = vld [vmem:[%s2734 + $0x10] sm:$0xf]
  %v2740 = vld [vmem:[%s2734 + $0x14] sm:$0xf]
  %v2741 = vld [vmem:[%s2734 + $0x18] sm:$0xf]
  %v2742 = vld [vmem:[%s2734 + $0x1c] sm:$0xf]
  %v2743 = vld [vmem:[%s2734 + $0x20] sm:$0xf]
  %v2744 = vld [vmem:[%s2734 + $0x24] sm:$0xf]
  %v2745 = vld [vmem:[%s2734 + $0x28] sm:$0xf]
  %v2746 = vld [vmem:[%s2734 + $0x2c] sm:$0xf]
  %v2747 = vld [vmem:[%s2734 + $0x30] sm:$0xf]
  %v2748 = vld [vmem:[%s2734 + $0x34] sm:$0xf]
  %v2749 = vld [vmem:[%s2734 + $0x38] sm:$0xf]
  %v2750 = vld [vmem:[%s2734 + $0x3c] sm:$0xf]
  %v2751 = vld [vmem:[%s2734 + $0x40] sm:$0xf]
  %v2752 = vld [vmem:[%s2734 + $0x44] sm:$0xf]
  %v2753 = vld [vmem:[%s2734 + $0x48] sm:$0xf]
  %v2754 = vld [vmem:[%s2734 + $0x4c] sm:$0xf]
  %v2755 = vld [vmem:[%s2734 + $0x50] sm:$0xf]
  %v2756 = vld [vmem:[%s2734 + $0x54] sm:$0xf]
  %v2757 = vld [vmem:[%s2734 + $0x58] sm:$0xf]
  %v2758 = vld [vmem:[%s2734 + $0x5c] sm:$0xf]
  %v2783 = vunpack.c.l.b16 %v2735
  %v2784 = vunpack.c.l.b16 %v2736
  %v2785 = vunpack.c.l.b16 %v2737
  %v2786 = vunpack.c.l.b16 %v2738
  %v2787 = vunpack.c.l.b16 %v2739
  %v2788 = vunpack.c.l.b16 %v2740
  %v2789 = vunpack.c.l.b16 %v2741
  %v2790 = vunpack.c.l.b16 %v2742
  %v2791 = vunpack.c.l.b16 %v2743
  %v2792 = vunpack.c.l.b16 %v2744
  %v2793 = vunpack.c.l.b16 %v2745
  %v2794 = vunpack.c.l.b16 %v2746
  %v2795 = vunpack.c.l.b16 %v2747
  %v2796 = vunpack.c.l.b16 %v2748
  %v2797 = vunpack.c.l.b16 %v2749
  %v2798 = vunpack.c.l.b16 %v2750
  %v2799 = vunpack.c.l.b16 %v2751
  %v2800 = vunpack.c.l.b16 %v2752
  %v2801 = vunpack.c.l.b16 %v2753
  %v2802 = vunpack.c.l.b16 %v2754
  %v2803 = vunpack.c.l.b16 %v2755
  %v2804 = vunpack.c.l.b16 %v2756
  %v2805 = vunpack.c.l.b16 %v2757
  %v2806 = vunpack.c.l.b16 %v2758
  %v2807 = vpack.c.b16 %v2784, %v2783
  %v2808 = vpack.c.b16 %v2786, %v2785
  %v2809 = vpack.c.b16 %v2788, %v2787
  %v2810 = vpack.c.b16 %v2790, %v2789
  %v2811 = vpack.c.b16 %v2792, %v2791
  %v2812 = vpack.c.b16 %v2794, %v2793
  %v2813 = vpack.c.b16 %v2796, %v2795
  %v2814 = vpack.c.b16 %v2798, %v2797
  %v2815 = vpack.c.b16 %v2800, %v2799
  %v2816 = vpack.c.b16 %v2802, %v2801
  %v2817 = vpack.c.b16 %v2804, %v2803
  %v2818 = vpack.c.b16 %v2806, %v2805
  %v2832 = vsel %vm15, %v2719, 0
  %v2835 = vsel %vm15, %v2721, 0
  %v2838 = vsel %vm15, %v2723, 0
  %v2841 = vsel %vm15, %v2725, 0
  %v2844 = vsel %vm15, %v2727, 0
  %v2847 = vsel %vm15, %v2729, 0
  %v2850 = vsel %vm15, %v2731, 0
  %v2853 = vsel %vm15, %v2733, 0
  %2855 = vmatprep.subr.bf16.mxu0 0
  %2856 = vmatpush1.bf16.msra.mxu0 %v2807
  %2857 = vmatprep.subr.bf16.mxu0 0
  %2858 = vmatpush1.bf16.msra.mxu0 %v2808
  %2859 = vmatprep.subr.bf16.mxu0 0
  %2860 = vmatpush1.bf16.msra.mxu0 %v2809
  %2861 = vmatprep.subr.bf16.mxu0 0
  %2862 = vmatpush1.bf16.msra.mxu0 %v2810
  %2863 = vmatprep.subr.bf16.mxu0 0
  %2864 = vmatpush1.bf16.msra.mxu0 %v2811
  %2865 = vmatprep.subr.bf16.mxu0 0
  %2866 = vmatpush1.bf16.msra.mxu0 %v2812
  %2867 = vmatprep.subr.bf16.mxu0 0
  %2868 = vmatpush1.bf16.msra.mxu0 %v2813
  %2869 = vmatprep.subr.bf16.mxu0 0
  %2870 = vmatpush1.bf16.msra.mxu0 %v2814
  %2871 = vmatprep.subr.bf16.mxu0 0
  %2872 = vmatpush1.bf16.msra.mxu0 %v2815
  %2873 = vmatprep.subr.bf16.mxu0 0
  %2874 = vmatpush1.bf16.msra.mxu0 %v2816
  %2875 = vmatprep.subr.bf16.mxu0 0
  %2876 = vmatpush1.bf16.msra.mxu0 %v2817
  %2877 = vmatprep.subr.bf16.mxu0 0
  %2878 = vmatpush1.bf16.msra.mxu0 %v2818
  %2879 = vmatprep.subr.bf16.mxu0 0
  %2880 = vmatpush1.bf16.msra.mxu0 0
  %2881 = vmatprep.subr.bf16.mxu0 0
  %2882 = vmatpush1.bf16.msra.mxu0 0
  %2883 = vmatprep.subr.bf16.mxu0 0
  %2884 = vmatpush1.bf16.msra.mxu0 0
  %2885 = vmatprep.subr.bf16.mxu0 0
  %2886 = vmatpush1.bf16.msra.mxu0 0
  %2887 = vmatprep.mubr.bf16.mxu0 %v2832
  %2888 = vmatmul.mubr.bf16.gmra.mrb[0].mxu0 %v2718
  %v2889 = vpop.f32.mrb[0].mxu0
  %v2890 = vadd.f32 0.0, %v2889
  %v2891 = vpop.f32.mrb[0].mxu0
  %v2892 = vpop.f32.mrb[0].mxu0
  %v2893 = vadd.f32 0.0, %v2892
  %v2894 = vpop.f32.mrb[0].mxu0
  %2895 = vmatprep.mubr.bf16.mxu0 %v2835
  %2896 = vmatmul.mubr.bf16.gmra.mrb[0].mxu0 %v2720
  %v2897 = vpop.f32.mrb[0].mxu0
  %v2898 = vadd.f32 0.0, %v2897
  %v2899 = vpop.f32.mrb[0].mxu0
  %v2900 = vpop.f32.mrb[0].mxu0
  %v2901 = vadd.f32 0.0, %v2900
  %v2902 = vpop.f32.mrb[0].mxu0
  %2903 = vmatprep.mubr.bf16.mxu0 %v2838
  %2904 = vmatmul.mubr.bf16.gmra.mrb[0].mxu0 %v2722
  %v2905 = vpop.f32.mrb[0].mxu0
  %v2906 = vadd.f32 0.0, %v2905
  %v2907 = vpop.f32.mrb[0].mxu0
  %v2908 = vpop.f32.mrb[0].mxu0
  %v2909 = vadd.f32 0.0, %v2908
  %v2910 = vpop.f32.mrb[0].mxu0
  %2911 = vmatprep.mubr.bf16.mxu0 %v2841
  %2912 = vmatmul.mubr.bf16.gmra.mrb[0].mxu0 %v2724
  %v2913 = vpop.f32.mrb[0].mxu0
  %v2914 = vadd.f32 0.0, %v2913
  %v2915 = vpop.f32.mrb[0].mxu0
  %v2916 = vpop.f32.mrb[0].mxu0
  %v2917 = vadd.f32 0.0, %v2916
  %v2918 = vpop.f32.mrb[0].mxu0
  %2919 = vmatprep.mubr.bf16.mxu0 %v2844
  %2920 = vmatmul.mubr.bf16.gmra.mrb[0].mxu0 %v2726
  %v2921 = vpop.f32.mrb[0].mxu0
  %v2922 = vadd.f32 0.0, %v2921
  %v2923 = vpop.f32.mrb[0].mxu0
  %v2924 = vpop.f32.mrb[0].mxu0
  %v2925 = vadd.f32 0.0, %v2924
  %v2926 = vpop.f32.mrb[0].mxu0
  %2927 = vmatprep.mubr.bf16.mxu0 %v2847
  %2928 = vmatmul.mubr.bf16.gmra.mrb[0].mxu0 %v2728
  %v2929 = vpop.f32.mrb[0].mxu0
  %v2930 = vadd.f32 0.0, %v2929
  %v2931 = vpop.f32.mrb[0].mxu0
  %v2932 = vpop.f32.mrb[0].mxu0
  %v2933 = vadd.f32 0.0, %v2932
  %v2934 = vpop.f32.mrb[0].mxu0
  %2935 = vmatprep.mubr.bf16.mxu0 %v2850
  %2936 = vmatmul.mubr.bf16.gmra.mrb[0].mxu0 %v2730
  %v2937 = vpop.f32.mrb[0].mxu0
  %v2938 = vadd.f32 0.0, %v2937
  %v2939 = vpop.f32.mrb[0].mxu0
  %v2940 = vpop.f32.mrb[0].mxu0
  %v2941 = vadd.f32 0.0, %v2940
  %v2942 = vpop.f32.mrb[0].mxu0
  %2943 = vmatprep.mubr.bf16.mxu0 %v2853
  %2944 = vmatmul.mubr.bf16.gmra.mrb[0].mxu0 %v2732
  %v2945 = vpop.f32.mrb[0].mxu0
  %v2946 = vadd.f32 0.0, %v2945
  %v2947 = vpop.f32.mrb[0].mxu0
  %v2948 = vpop.f32.mrb[0].mxu0
  %v2949 = vadd.f32 0.0, %v2948
  %v2950 = vpop.f32.mrb[0].mxu0
  %2951 = vdwg.mxu0
  %v2976 = vunpack.c.l.b16 %v2566
  %v2977 = vunpack.c.l.b16 %v2567
  %v2978 = vunpack.c.l.b16 %v2568
  %v2979 = vunpack.c.l.b16 %v2569
  %v2980 = vunpack.c.l.b16 %v2570
  %v2981 = vunpack.c.l.b16 %v2571
  %v2982 = vunpack.c.l.b16 %v2572
  %v2983 = vunpack.c.l.b16 %v2573
  %v2984 = vunpack.c.l.b16 %v2574
  %v2985 = vunpack.c.l.b16 %v2575
  %v2986 = vunpack.c.l.b16 %v2576
  %v2987 = vunpack.c.l.b16 %v2577
  %v2988 = vunpack.c.l.b16 %v2578
  %v2989 = vunpack.c.l.b16 %v2579
  %v2990 = vunpack.c.l.b16 %v2580
  %v2991 = vunpack.c.l.b16 %v2581
  %v2992 = vunpack.c.l.b16 %v2582
  %v2993 = vunpack.c.l.b16 %v2583
  %v2994 = vunpack.c.l.b16 %v2584
  %v2995 = vunpack.c.l.b16 %v2585
  %v2996 = vunpack.c.l.b16 %v2586
  %v2997 = vunpack.c.l.b16 %v2587
  %v2998 = vunpack.c.l.b16 %v2588
  %v2999 = vunpack.c.l.b16 %v2589
  %v3000 = vpack.c.b16 %v2977, %v2976
  %v3001 = vpack.c.b16 %v2979, %v2978
  %v3002 = vpack.c.b16 %v2981, %v2980
  %v3003 = vpack.c.b16 %v2983, %v2982
  %v3004 = vpack.c.b16 %v2985, %v2984
  %v3005 = vpack.c.b16 %v2987, %v2986
  %v3006 = vpack.c.b16 %v2989, %v2988
  %v3007 = vpack.c.b16 %v2991, %v2990
  %v3008 = vpack.c.b16 %v2993, %v2992
  %v3009 = vpack.c.b16 %v2995, %v2994
  %v3010 = vpack.c.b16 %v2997, %v2996
  %v3011 = vpack.c.b16 %v2999, %v2998
  %v3025 = vsel %vm15, %v2550, 0
  %v3028 = vsel %vm15, %v2552, 0
  %v3031 = vsel %vm15, %v2554, 0
  %v3034 = vsel %vm15, %v2556, 0
  %v3037 = vsel %vm15, %v2558, 0
  %v3040 = vsel %vm15, %v2560, 0
  %v3043 = vsel %vm15, %v2562, 0
  %v3046 = vsel %vm15, %v2564, 0
  %3048 = vmatprep.subr.bf16.mxu0 0
  %3049 = vmatpush1.bf16.msra.mxu0 %v3000
  %3050 = vmatprep.subr.bf16.mxu0 0
  %3051 = vmatpush1.bf16.msra.mxu0 %v3001
  %3052 = vmatprep.subr.bf16.mxu0 0
  %3053 = vmatpush1.bf16.msra.mxu0 %v3002
  %3054 = vmatprep.subr.bf16.mxu0 0
  %3055 = vmatpush1.bf16.msra.mxu0 %v3003
  %3056 = vmatprep.subr.bf16.mxu0 0
  %3057 = vmatpush1.bf16.msra.mxu0 %v3004
  %3058 = vmatprep.subr.bf16.mxu0 0
  %3059 = vmatpush1.bf16.msra.mxu0 %v3005
  %3060 = vmatprep.subr.bf16.mxu0 0
  %3061 = vmatpush1.bf16.msra.mxu0 %v3006
  %3062 = vmatprep.subr.bf16.mxu0 0
  %3063 = vmatpush1.bf16.msra.mxu0 %v3007
  %3064 = vmatprep.subr.bf16.mxu0 0
  %3065 = vmatpush1.bf16.msra.mxu0 %v3008
  %3066 = vmatprep.subr.bf16.mxu0 0
  %3067 = vmatpush1.bf16.msra.mxu0 %v3009
  %3068 = vmatprep.subr.bf16.mxu0 0
  %3069 = vmatpush1.bf16.msra.mxu0 %v3010
  %3070 = vmatprep.subr.bf16.mxu0 0
  %3071 = vmatpush1.bf16.msra.mxu0 %v3011
  %3072 = vmatprep.subr.bf16.mxu0 0
  %3073 = vmatpush1.bf16.msra.mxu0 0
  %3074 = vmatprep.subr.bf16.mxu0 0
  %3075 = vmatpush1.bf16.msra.mxu0 0
  %3076 = vmatprep.subr.bf16.mxu0 0
  %3077 = vmatpush1.bf16.msra.mxu0 0
  %3078 = vmatprep.subr.bf16.mxu0 0
  %3079 = vmatpush1.bf16.msra.mxu0 0
  %3080 = vmatprep.mubr.bf16.mxu0 %v3025
  %3081 = vmatmul.mubr.bf16.gmra.mrb[0].mxu0 %v2549
  %v3082 = vpop.f32.mrb[0].mxu0
  %v3083 = vadd.f32 %v2890, %v3082
  %v3084 = vpop.f32.mrb[0].mxu0
  %v3085 = vpop.f32.mrb[0].mxu0
  %v3086 = vadd.f32 %v2893, %v3085
  %v3087 = vpop.f32.mrb[0].mxu0
  %3088 = vmatprep.mubr.bf16.mxu0 %v3028
  %3089 = vmatmul.mubr.bf16.gmra.mrb[0].mxu0 %v2551
  %v3090 = vpop.f32.mrb[0].mxu0
  %v3091 = vadd.f32 %v2898, %v3090
  %v3092 = vpop.f32.mrb[0].mxu0
  %v3093 = vpop.f32.mrb[0].mxu0
  %v3094 = vadd.f32 %v2901, %v3093
  %v3095 = vpop.f32.mrb[0].mxu0
  %3096 = vmatprep.mubr.bf16.mxu0 %v3031
  %3097 = vmatmul.mubr.bf16.gmra.mrb[0].mxu0 %v2553
  %v3098 = vpop.f32.mrb[0].mxu0
  %v3099 = vadd.f32 %v2906, %v3098
  %v3100 = vpop.f32.mrb[0].mxu0
  %v3101 = vpop.f32.mrb[0].mxu0
  %v3102 = vadd.f32 %v2909, %v3101
  %v3103 = vpop.f32.mrb[0].mxu0
  %3104 = vmatprep.mubr.bf16.mxu0 %v3034
  %3105 = vmatmul.mubr.bf16.gmra.mrb[0].mxu0 %v2555
  %v3106 = vpop.f32.mrb[0].mxu0
  %v3107 = vadd.f32 %v2914, %v3106
  %v3108 = vpop.f32.mrb[0].mxu0
  %v3109 = vpop.f32.mrb[0].mxu0
  %v3110 = vadd.f32 %v2917, %v3109
  %v3111 = vpop.f32.mrb[0].mxu0
  %3112 = vmatprep.mubr.bf16.mxu0 %v3037
  %3113 = vmatmul.mubr.bf16.gmra.mrb[0].mxu0 %v2557
  %v3114 = vpop.f32.mrb[0].mxu0
  %v3115 = vadd.f32 %v2922, %v3114
  %v3116 = vpop.f32.mrb[0].mxu0
  %v3117 = vpop.f32.mrb[0].mxu0
  %v3118 = vadd.f32 %v2925, %v3117
  %v3119 = vpop.f32.mrb[0].mxu0
  %3120 = vmatprep.mubr.bf16.mxu0 %v3040
  %3121 = vmatmul.mubr.bf16.gmra.mrb[0].mxu0 %v2559
  %v3122 = vpop.f32.mrb[0].mxu0
  %v3123 = vadd.f32 %v2930, %v3122
  %v3124 = vpop.f32.mrb[0].mxu0
  %v3125 = vpop.f32.mrb[0].mxu0
  %v3126 = vadd.f32 %v2933, %v3125
  %v3127 = vpop.f32.mrb[0].mxu0
  %3128 = vmatprep.mubr.bf16.mxu0 %v3043
  %3129 = vmatmul.mubr.bf16.gmra.mrb[0].mxu0 %v2561
  %v3130 = vpop.f32.mrb[0].mxu0
  %v3131 = vadd.f32 %v2938, %v3130
  %v3132 = vpop.f32.mrb[0].mxu0
  %v3133 = vpop.f32.mrb[0].mxu0
  %v3134 = vadd.f32 %v2941, %v3133
  %v3135 = vpop.f32.mrb[0].mxu0
  %3136 = vmatprep.mubr.bf16.mxu0 %v3046
  %3137 = vmatmul.mubr.bf16.gmra.mrb[0].mxu0 %v2563
  %v3138 = vpop.f32.mrb[0].mxu0
  %v3139 = vadd.f32 %v2946, %v3138
  %v3140 = vpop.f32.mrb[0].mxu0
  %v3141 = vpop.f32.mrb[0].mxu0
  %v3142 = vadd.f32 %v2949, %v3141
  %v3143 = vpop.f32.mrb[0].mxu0
  %3144 = vdwg.mxu0
  %v3145 = vld [vmem:[%s813] sm:$0xff]
  %v3146 = vld [vmem:[%s813 + $0x10] sm:$0xff]
  %v3147 = vld [vmem:[%s813 + $0x20] sm:$0xff]
  %v3148 = vld [vmem:[%s813 + $0x30] sm:$0xff]
  %v3149 = vld [vmem:[%s813 + $0x40] sm:$0xff]
  %v3150 = vld [vmem:[%s813 + $0x50] sm:$0xff]
  %v3151 = vld [vmem:[%s813 + $0x60] sm:$0xff]
  %v3152 = vld [vmem:[%s813 + $0x70] sm:$0xff]
  %v3153 = vld [vmem:[%s813 + $0xa0] sm:$0xff]
  %v3154 = vld [vmem:[%s813 + $0xb0] sm:$0xff]
  %v3155 = vld [vmem:[%s813 + $0xc0] sm:$0xff]
  %v3156 = vld [vmem:[%s813 + $0xd0] sm:$0xff]
  %v3157 = vld [vmem:[%s813 + $0xe0] sm:$0xff]
  %v3158 = vld [vmem:[%s813 + $0xf0] sm:$0xff]
  %v3159 = vld [vmem:[%s813 + $0x100] sm:$0xff]
  %v3160 = vld [vmem:[%s813 + $0x110] sm:$0xff]
  %v3161 = vld [vmem:[%s813 + $0x1] sm:$0xff]
  %v3162 = vld [vmem:[%s813 + $0x11] sm:$0xff]
  %v3163 = vld [vmem:[%s813 + $0x21] sm:$0xff]
  %v3164 = vld [vmem:[%s813 + $0x31] sm:$0xff]
  %v3165 = vld [vmem:[%s813 + $0x41] sm:$0xff]
  %v3166 = vld [vmem:[%s813 + $0x51] sm:$0xff]
  %v3167 = vld [vmem:[%s813 + $0x61] sm:$0xff]
  %v3168 = vld [vmem:[%s813 + $0x71] sm:$0xff]
  %v3169 = vld [vmem:[%s813 + $0xa1] sm:$0xff]
  %v3170 = vld [vmem:[%s813 + $0xb1] sm:$0xff]
  %v3171 = vld [vmem:[%s813 + $0xc1] sm:$0xff]
  %v3172 = vld [vmem:[%s813 + $0xd1] sm:$0xff]
  %v3173 = vld [vmem:[%s813 + $0xe1] sm:$0xff]
  %v3174 = vld [vmem:[%s813 + $0xf1] sm:$0xff]
  %v3175 = vld [vmem:[%s813 + $0x101] sm:$0xff]
  %v3176 = vld [vmem:[%s813 + $0x111] sm:$0xff]
  %v3177 = vld [vmem:[%s813 + $0x2] sm:$0xff]
  %v3178 = vld [vmem:[%s813 + $0x12] sm:$0xff]
  %v3179 = vld [vmem:[%s813 + $0x22] sm:$0xff]
  %v3180 = vld [vmem:[%s813 + $0x32] sm:$0xff]
  %v3181 = vld [vmem:[%s813 + $0x42] sm:$0xff]
  %v3182 = vld [vmem:[%s813 + $0x52] sm:$0xff]
  %v3183 = vld [vmem:[%s813 + $0x62] sm:$0xff]
  %v3184 = vld [vmem:[%s813 + $0x72] sm:$0xff]
  %v3185 = vld [vmem:[%s813 + $0xa2] sm:$0xff]
  %v3186 = vld [vmem:[%s813 + $0xb2] sm:$0xff]
  %v3187 = vld [vmem:[%s813 + $0xc2] sm:$0xff]
  %v3188 = vld [vmem:[%s813 + $0xd2] sm:$0xff]
  %v3189 = vld [vmem:[%s813 + $0xe2] sm:$0xff]
  %v3190 = vld [vmem:[%s813 + $0xf2] sm:$0xff]
  %v3191 = vld [vmem:[%s813 + $0x102] sm:$0xff]
  %v3192 = vld [vmem:[%s813 + $0x112] sm:$0xff]
  %3209 = vrot.lane.b32.xlu0 %v3161, 64
  %v3210 = vpop.permute.xlu0 %3209
  %3211 = vrot.lane.b32.xlu0 %v3162, 64
  %v3212 = vpop.permute.xlu0 %3211
  %3213 = vrot.lane.b32.xlu0 %v3163, 64
  %v3214 = vpop.permute.xlu0 %3213
  %3215 = vrot.lane.b32.xlu0 %v3164, 64
  %v3216 = vpop.permute.xlu0 %3215
  %3217 = vrot.lane.b32.xlu0 %v3165, 64
  %v3218 = vpop.permute.xlu0 %3217
  %3219 = vrot.lane.b32.xlu0 %v3166, 64
  %v3220 = vpop.permute.xlu0 %3219
  %3221 = vrot.lane.b32.xlu0 %v3167, 64
  %v3222 = vpop.permute.xlu0 %3221
  %3223 = vrot.lane.b32.xlu0 %v3168, 64
  %v3224 = vpop.permute.xlu0 %3223
  %3225 = vrot.lane.b32.xlu0 %v3169, 64
  %v3226 = vpop.permute.xlu0 %3225
  %3227 = vrot.lane.b32.xlu0 %v3170, 64
  %v3228 = vpop.permute.xlu0 %3227
  %3229 = vrot.lane.b32.xlu0 %v3171, 64
  %v3230 = vpop.permute.xlu0 %3229
  %3231 = vrot.lane.b32.xlu0 %v3172, 64
  %v3232 = vpop.permute.xlu0 %3231
  %3233 = vrot.lane.b32.xlu0 %v3173, 64
  %v3234 = vpop.permute.xlu0 %3233
  %3235 = vrot.lane.b32.xlu0 %v3174, 64
  %v3236 = vpop.permute.xlu0 %3235
  %3237 = vrot.lane.b32.xlu0 %v3175, 64
  %v3238 = vpop.permute.xlu0 %3237
  %3239 = vrot.lane.b32.xlu0 %v3176, 64
  %v3240 = vpop.permute.xlu0 %3239
  %v3257 = vsel %vm15, %v3145, %v3210
  %v3258 = vsel %vm15, %v3146, %v3212
  %v3259 = vsel %vm15, %v3147, %v3214
  %v3260 = vsel %vm15, %v3148, %v3216
  %v3261 = vsel %vm15, %v3149, %v3218
  %v3262 = vsel %vm15, %v3150, %v3220
  %v3263 = vsel %vm15, %v3151, %v3222
  %v3264 = vsel %vm15, %v3152, %v3224
  %v3265 = vsel %vm15, %v3153, %v3226
  %v3266 = vsel %vm15, %v3154, %v3228
  %v3267 = vsel %vm15, %v3155, %v3230
  %v3268 = vsel %vm15, %v3156, %v3232
  %v3269 = vsel %vm15, %v3157, %v3234
  %v3270 = vsel %vm15, %v3158, %v3236
  %v3271 = vsel %vm15, %v3159, %v3238
  %v3272 = vsel %vm15, %v3160, %v3240
  %v3273 = vpack.c.bf16 %v3258, %v3257
  %v3274 = vpack.c.bf16 %v3178, %v3177
  %v3275 = vpack.c.bf16 %v3260, %v3259
  %v3276 = vpack.c.bf16 %v3180, %v3179
  %v3277 = vpack.c.bf16 %v3262, %v3261
  %v3278 = vpack.c.bf16 %v3182, %v3181
  %v3279 = vpack.c.bf16 %v3264, %v3263
  %v3280 = vpack.c.bf16 %v3184, %v3183
  %v3281 = vpack.c.bf16 %v3266, %v3265
  %v3282 = vpack.c.bf16 %v3186, %v3185
  %v3283 = vpack.c.bf16 %v3268, %v3267
  %v3284 = vpack.c.bf16 %v3188, %v3187
  %v3285 = vpack.c.bf16 %v3270, %v3269
  %v3286 = vpack.c.bf16 %v3190, %v3189
  %v3287 = vpack.c.bf16 %v3272, %v3271
  %v3288 = vpack.c.bf16 %v3192, %v3191
  %s3289 = scalar_lea.vmem %s1, 768
  %v3290 = vld [vmem:[%s3289] sm:$0xf]
  %v3291 = vld [vmem:[%s3289 + $0x4] sm:$0xf]
  %v3292 = vld [vmem:[%s3289 + $0x8] sm:$0xf]
  %v3293 = vld [vmem:[%s3289 + $0xc] sm:$0xf]
  %v3294 = vld [vmem:[%s3289 + $0x10] sm:$0xf]
  %v3295 = vld [vmem:[%s3289 + $0x14] sm:$0xf]
  %v3296 = vld [vmem:[%s3289 + $0x18] sm:$0xf]
  %v3297 = vld [vmem:[%s3289 + $0x1c] sm:$0xf]
  %v3298 = vld [vmem:[%s3289 + $0x20] sm:$0xf]
  %v3299 = vld [vmem:[%s3289 + $0x24] sm:$0xf]
  %v3300 = vld [vmem:[%s3289 + $0x28] sm:$0xf]
  %v3301 = vld [vmem:[%s3289 + $0x2c] sm:$0xf]
  %v3302 = vld [vmem:[%s3289 + $0x30] sm:$0xf]
  %v3303 = vld [vmem:[%s3289 + $0x34] sm:$0xf]
  %v3304 = vld [vmem:[%s3289 + $0x38] sm:$0xf]
  %v3305 = vld [vmem:[%s3289 + $0x3c] sm:$0xf]
  %v3306 = vld [vmem:[%s3289 + $0x40] sm:$0xf]
  %v3307 = vld [vmem:[%s3289 + $0x44] sm:$0xf]
  %v3308 = vld [vmem:[%s3289 + $0x48] sm:$0xf]
  %v3309 = vld [vmem:[%s3289 + $0x4c] sm:$0xf]
  %v3310 = vld [vmem:[%s3289 + $0x50] sm:$0xf]
  %v3311 = vld [vmem:[%s3289 + $0x54] sm:$0xf]
  %v3312 = vld [vmem:[%s3289 + $0x58] sm:$0xf]
  %v3313 = vld [vmem:[%s3289 + $0x5c] sm:$0xf]
  %v3338 = vunpack.c.l.b16 %v3290
  %v3339 = vunpack.c.l.b16 %v3291
  %v3340 = vunpack.c.l.b16 %v3292
  %v3341 = vunpack.c.l.b16 %v3293
  %v3342 = vunpack.c.l.b16 %v3294
  %v3343 = vunpack.c.l.b16 %v3295
  %v3344 = vunpack.c.l.b16 %v3296
  %v3345 = vunpack.c.l.b16 %v3297
  %v3346 = vunpack.c.l.b16 %v3298
  %v3347 = vunpack.c.l.b16 %v3299
  %v3348 = vunpack.c.l.b16 %v3300
  %v3349 = vunpack.c.l.b16 %v3301
  %v3350 = vunpack.c.l.b16 %v3302
  %v3351 = vunpack.c.l.b16 %v3303
  %v3352 = vunpack.c.l.b16 %v3304
  %v3353 = vunpack.c.l.b16 %v3305
  %v3354 = vunpack.c.l.b16 %v3306
  %v3355 = vunpack.c.l.b16 %v3307
  %v3356 = vunpack.c.l.b16 %v3308
  %v3357 = vunpack.c.l.b16 %v3309
  %v3358 = vunpack.c.l.b16 %v3310
  %v3359 = vunpack.c.l.b16 %v3311
  %v3360 = vunpack.c.l.b16 %v3312
  %v3361 = vunpack.c.l.b16 %v3313
  %v3362 = vpack.c.b16 %v3339, %v3338
  %v3363 = vpack.c.b16 %v3341, %v3340
  %v3364 = vpack.c.b16 %v3343, %v3342
  %v3365 = vpack.c.b16 %v3345, %v3344
  %v3366 = vpack.c.b16 %v3347, %v3346
  %v3367 = vpack.c.b16 %v3349, %v3348
  %v3368 = vpack.c.b16 %v3351, %v3350
  %v3369 = vpack.c.b16 %v3353, %v3352
  %v3370 = vpack.c.b16 %v3355, %v3354
  %v3371 = vpack.c.b16 %v3357, %v3356
  %v3372 = vpack.c.b16 %v3359, %v3358
  %v3373 = vpack.c.b16 %v3361, %v3360
  %v3387 = vsel %vm15, %v3274, 0
  %v3390 = vsel %vm15, %v3276, 0
  %v3393 = vsel %vm15, %v3278, 0
  %v3396 = vsel %vm15, %v3280, 0
  %v3399 = vsel %vm15, %v3282, 0
  %v3402 = vsel %vm15, %v3284, 0
  %v3405 = vsel %vm15, %v3286, 0
  %v3408 = vsel %vm15, %v3288, 0
  %3410 = vmatprep.subr.bf16.mxu0 0
  %3411 = vmatpush1.bf16.msra.mxu0 %v3362
  %3412 = vmatprep.subr.bf16.mxu0 0
  %3413 = vmatpush1.bf16.msra.mxu0 %v3363
  %3414 = vmatprep.subr.bf16.mxu0 0
  %3415 = vmatpush1.bf16.msra.mxu0 %v3364
  %3416 = vmatprep.subr.bf16.mxu0 0
  %3417 = vmatpush1.bf16.msra.mxu0 %v3365
  %3418 = vmatprep.subr.bf16.mxu0 0
  %3419 = vmatpush1.bf16.msra.mxu0 %v3366
  %3420 = vmatprep.subr.bf16.mxu0 0
  %3421 = vmatpush1.bf16.msra.mxu0 %v3367
  %3422 = vmatprep.subr.bf16.mxu0 0
  %3423 = vmatpush1.bf16.msra.mxu0 %v3368
  %3424 = vmatprep.subr.bf16.mxu0 0
  %3425 = vmatpush1.bf16.msra.mxu0 %v3369
  %3426 = vmatprep.subr.bf16.mxu0 0
  %3427 = vmatpush1.bf16.msra.mxu0 %v3370
  %3428 = vmatprep.subr.bf16.mxu0 0
  %3429 = vmatpush1.bf16.msra.mxu0 %v3371
  %3430 = vmatprep.subr.bf16.mxu0 0
  %3431 = vmatpush1.bf16.msra.mxu0 %v3372
  %3432 = vmatprep.subr.bf16.mxu0 0
  %3433 = vmatpush1.bf16.msra.mxu0 %v3373
  %3434 = vmatprep.subr.bf16.mxu0 0
  %3435 = vmatpush1.bf16.msra.mxu0 0
  %3436 = vmatprep.subr.bf16.mxu0 0
  %3437 = vmatpush1.bf16.msra.mxu0 0
  %3438 = vmatprep.subr.bf16.mxu0 0
  %3439 = vmatpush1.bf16.msra.mxu0 0
  %3440 = vmatprep.subr.bf16.mxu0 0
  %3441 = vmatpush1.bf16.msra.mxu0 0
  %3442 = vmatprep.mubr.bf16.mxu0 %v3387
  %3443 = vmatmul.mubr.bf16.gmra.mrb[0].mxu0 %v3273
  %v3444 = vpop.f32.mrb[0].mxu0
  %v3445 = vadd.f32 0.0, %v3444
  %v3446 = vpop.f32.mrb[0].mxu0
  %v3447 = vpop.f32.mrb[0].mxu0
  %v3448 = vadd.f32 0.0, %v3447
  %v3449 = vpop.f32.mrb[0].mxu0
  %3450 = vmatprep.mubr.bf16.mxu0 %v3390
  %3451 = vmatmul.mubr.bf16.gmra.mrb[0].mxu0 %v3275
  %v3452 = vpop.f32.mrb[0].mxu0
  %v3453 = vadd.f32 0.0, %v3452
  %v3454 = vpop.f32.mrb[0].mxu0
  %v3455 = vpop.f32.mrb[0].mxu0
  %v3456 = vadd.f32 0.0, %v3455
  %v3457 = vpop.f32.mrb[0].mxu0
  %3458 = vmatprep.mubr.bf16.mxu0 %v3393
  %3459 = vmatmul.mubr.bf16.gmra.mrb[0].mxu0 %v3277
  %v3460 = vpop.f32.mrb[0].mxu0
  %v3461 = vadd.f32 0.0, %v3460
  %v3462 = vpop.f32.mrb[0].mxu0
  %v3463 = vpop.f32.mrb[0].mxu0
  %v3464 = vadd.f32 0.0, %v3463
  %v3465 = vpop.f32.mrb[0].mxu0
  %3466 = vmatprep.mubr.bf16.mxu0 %v3396
  %3467 = vmatmul.mubr.bf16.gmra.mrb[0].mxu0 %v3279
  %v3468 = vpop.f32.mrb[0].mxu0
  %v3469 = vadd.f32 0.0, %v3468
  %v3470 = vpop.f32.mrb[0].mxu0
  %v3471 = vpop.f32.mrb[0].mxu0
  %v3472 = vadd.f32 0.0, %v3471
  %v3473 = vpop.f32.mrb[0].mxu0
  %3474 = vmatprep.mubr.bf16.mxu0 %v3399
  %3475 = vmatmul.mubr.bf16.gmra.mrb[0].mxu0 %v3281
  %v3476 = vpop.f32.mrb[0].mxu0
  %v3477 = vadd.f32 0.0, %v3476
  %v3478 = vpop.f32.mrb[0].mxu0
  %v3479 = vpop.f32.mrb[0].mxu0
  %v3480 = vadd.f32 0.0, %v3479
  %v3481 = vpop.f32.mrb[0].mxu0
  %3482 = vmatprep.mubr.bf16.mxu0 %v3402
  %3483 = vmatmul.mubr.bf16.gmra.mrb[0].mxu0 %v3283
  %v3484 = vpop.f32.mrb[0].mxu0
  %v3485 = vadd.f32 0.0, %v3484
  %v3486 = vpop.f32.mrb[0].mxu0
  %v3487 = vpop.f32.mrb[0].mxu0
  %v3488 = vadd.f32 0.0, %v3487
  %v3489 = vpop.f32.mrb[0].mxu0
  %3490 = vmatprep.mubr.bf16.mxu0 %v3405
  %3491 = vmatmul.mubr.bf16.gmra.mrb[0].mxu0 %v3285
  %v3492 = vpop.f32.mrb[0].mxu0
  %v3493 = vadd.f32 0.0, %v3492
  %v3494 = vpop.f32.mrb[0].mxu0
  %v3495 = vpop.f32.mrb[0].mxu0
  %v3496 = vadd.f32 0.0, %v3495
  %v3497 = vpop.f32.mrb[0].mxu0
  %3498 = vmatprep.mubr.bf16.mxu0 %v3408
  %3499 = vmatmul.mubr.bf16.gmra.mrb[0].mxu0 %v3287
  %v3500 = vpop.f32.mrb[0].mxu0
  %v3501 = vadd.f32 0.0, %v3500
  %v3502 = vpop.f32.mrb[0].mxu0
  %v3503 = vpop.f32.mrb[0].mxu0
  %v3504 = vadd.f32 0.0, %v3503
  %v3505 = vpop.f32.mrb[0].mxu0
  %3506 = vdwg.mxu0
  %v3507 = vadd.f32 %v3083, %v3445
  %v3508 = vadd.f32 %v3086, %v3448
  %v3509 = vadd.f32 %v3091, %v3453
  %v3510 = vadd.f32 %v3094, %v3456
  %v3511 = vadd.f32 %v3099, %v3461
  %v3512 = vadd.f32 %v3102, %v3464
  %v3513 = vadd.f32 %v3107, %v3469
  %v3514 = vadd.f32 %v3110, %v3472
  %v3515 = vadd.f32 %v3115, %v3477
  %v3516 = vadd.f32 %v3118, %v3480
  %v3517 = vadd.f32 %v3123, %v3485
  %v3518 = vadd.f32 %v3126, %v3488
  %v3519 = vadd.f32 %v3131, %v3493
  %v3520 = vadd.f32 %v3134, %v3496
  %v3521 = vadd.f32 %v3139, %v3501
  %v3522 = vadd.f32 %v3142, %v3504
  %s3523 = scalar_lea.vmem %s2, 2
  %v3524 = vld [vmem:[%s3523] sm:$0x1]
  %v3526 = vlaneseq
  %v3527 = vshrl.u32 %v3526, 7
  %v3528 = vsub.s32 0, %v3527
  %v3529 = vrot.slane %v3524, %v3528
  %v3531 = vadd.f32 %v3507, %v3529
  %v3532 = vadd.f32 %v3508, %v3529
  %v3533 = vadd.f32 %v3509, %v3529
  %v3534 = vadd.f32 %v3510, %v3529
  %v3535 = vadd.f32 %v3511, %v3529
  %v3536 = vadd.f32 %v3512, %v3529
  %v3537 = vadd.f32 %v3513, %v3529
  %v3538 = vadd.f32 %v3514, %v3529
  %v3539 = vadd.f32 %v3515, %v3529
  %v3540 = vadd.f32 %v3516, %v3529
  %v3541 = vadd.f32 %v3517, %v3529
  %v3542 = vadd.f32 %v3518, %v3529
  %v3543 = vadd.f32 %v3519, %v3529
  %v3544 = vadd.f32 %v3520, %v3529
  %v3545 = vadd.f32 %v3521, %v3529
  %v3546 = vadd.f32 %v3522, %v3529
  %v3547 = vmax.f32 %v3531, 0.0
  %v3548 = vmax.f32 %v3532, 0.0
  %v3549 = vmax.f32 %v3533, 0.0
  %v3550 = vmax.f32 %v3534, 0.0
  %v3551 = vmax.f32 %v3535, 0.0
  %v3552 = vmax.f32 %v3536, 0.0
  %v3553 = vmax.f32 %v3537, 0.0
  %v3554 = vmax.f32 %v3538, 0.0
  %v3555 = vmax.f32 %v3539, 0.0
  %v3556 = vmax.f32 %v3540, 0.0
  %v3557 = vmax.f32 %v3541, 0.0
  %v3558 = vmax.f32 %v3542, 0.0
  %v3559 = vmax.f32 %v3543, 0.0
  %v3560 = vmax.f32 %v3544, 0.0
  %v3561 = vmax.f32 %v3545, 0.0
  %v3562 = vmax.f32 %v3546, 0.0
  %3563 = vst.msk [vmem:[%s73 + $0x1] sm:$0xff] %vm15, %v3547
  %3564 = vst.msk [vmem:[%s73 + $0x11] sm:$0xff] %vm15, %v3548
  %3565 = vst.msk [vmem:[%s73 + $0x21] sm:$0xff] %vm15, %v3549
  %3566 = vst.msk [vmem:[%s73 + $0x31] sm:$0xff] %vm15, %v3550
  %3567 = vst.msk [vmem:[%s73 + $0x41] sm:$0xff] %vm15, %v3551
  %3568 = vst.msk [vmem:[%s73 + $0x51] sm:$0xff] %vm15, %v3552
  %3569 = vst.msk [vmem:[%s73 + $0x61] sm:$0xff] %vm15, %v3553
  %3570 = vst.msk [vmem:[%s73 + $0x71] sm:$0xff] %vm15, %v3554
  %3571 = vst.msk [vmem:[%s73 + $0xa1] sm:$0xff] %vm15, %v3555
  %3572 = vst.msk [vmem:[%s73 + $0xb1] sm:$0xff] %vm15, %v3556
  %3573 = vst.msk [vmem:[%s73 + $0xc1] sm:$0xff] %vm15, %v3557
  %3574 = vst.msk [vmem:[%s73 + $0xd1] sm:$0xff] %vm15, %v3558
  %3575 = vst.msk [vmem:[%s73 + $0xe1] sm:$0xff] %vm15, %v3559
  %3576 = vst.msk [vmem:[%s73 + $0xf1] sm:$0xff] %vm15, %v3560
  %3577 = vst.msk [vmem:[%s73 + $0x101] sm:$0xff] %vm15, %v3561
  %3578 = vst.msk [vmem:[%s73 + $0x111] sm:$0xff] %vm15, %v3562
  %v3579 = vld [vmem:[#allocation2] sm:$0xff]
  %v3580 = vld [vmem:[#allocation2 + $0x10] sm:$0xff]
  %v3581 = vld [vmem:[#allocation2 + $0x20] sm:$0xff]
  %v3582 = vld [vmem:[#allocation2 + $0x30] sm:$0xff]
  %v3583 = vld [vmem:[#allocation2 + $0x40] sm:$0xff]
  %v3584 = vld [vmem:[#allocation2 + $0x50] sm:$0xff]
  %v3585 = vld [vmem:[#allocation2 + $0x60] sm:$0xff]
  %v3586 = vld [vmem:[#allocation2 + $0x70] sm:$0xff]
  %v3587 = vld [vmem:[#allocation2 + $0xa0] sm:$0xff]
  %v3588 = vld [vmem:[#allocation2 + $0xb0] sm:$0xff]
  %v3589 = vld [vmem:[#allocation2 + $0xc0] sm:$0xff]
  %v3590 = vld [vmem:[#allocation2 + $0xd0] sm:$0xff]
  %v3591 = vld [vmem:[#allocation2 + $0xe0] sm:$0xff]
  %v3592 = vld [vmem:[#allocation2 + $0xf0] sm:$0xff]
  %v3593 = vld [vmem:[#allocation2 + $0x100] sm:$0xff]
  %v3594 = vld [vmem:[#allocation2 + $0x110] sm:$0xff]
  %v3595 = vld [vmem:[#allocation2 + $0x1] sm:$0xff]
  %v3596 = vld [vmem:[#allocation2 + $0x11] sm:$0xff]
  %v3597 = vld [vmem:[#allocation2 + $0x21] sm:$0xff]
  %v3598 = vld [vmem:[#allocation2 + $0x31] sm:$0xff]
  %v3599 = vld [vmem:[#allocation2 + $0x41] sm:$0xff]
  %v3600 = vld [vmem:[#allocation2 + $0x51] sm:$0xff]
  %v3601 = vld [vmem:[#allocation2 + $0x61] sm:$0xff]
  %v3602 = vld [vmem:[#allocation2 + $0x71] sm:$0xff]
  %v3603 = vld [vmem:[#allocation2 + $0xa1] sm:$0xff]
  %v3604 = vld [vmem:[#allocation2 + $0xb1] sm:$0xff]
  %v3605 = vld [vmem:[#allocation2 + $0xc1] sm:$0xff]
  %v3606 = vld [vmem:[#allocation2 + $0xd1] sm:$0xff]
  %v3607 = vld [vmem:[#allocation2 + $0xe1] sm:$0xff]
  %v3608 = vld [vmem:[#allocation2 + $0xf1] sm:$0xff]
  %v3609 = vld [vmem:[#allocation2 + $0x101] sm:$0xff]
  %v3610 = vld [vmem:[#allocation2 + $0x111] sm:$0xff]
  %v3611 = vld [vmem:[#allocation2 + $0x2] sm:$0xff]
  %v3612 = vld [vmem:[#allocation2 + $0x12] sm:$0xff]
  %v3613 = vld [vmem:[#allocation2 + $0x22] sm:$0xff]
  %v3614 = vld [vmem:[#allocation2 + $0x32] sm:$0xff]
  %v3615 = vld [vmem:[#allocation2 + $0x42] sm:$0xff]
  %v3616 = vld [vmem:[#allocation2 + $0x52] sm:$0xff]
  %v3617 = vld [vmem:[#allocation2 + $0x62] sm:$0xff]
  %v3618 = vld [vmem:[#allocation2 + $0x72] sm:$0xff]
  %v3619 = vld [vmem:[#allocation2 + $0xa2] sm:$0xff]
  %v3620 = vld [vmem:[#allocation2 + $0xb2] sm:$0xff]
  %v3621 = vld [vmem:[#allocation2 + $0xc2] sm:$0xff]
  %v3622 = vld [vmem:[#allocation2 + $0xd2] sm:$0xff]
  %v3623 = vld [vmem:[#allocation2 + $0xe2] sm:$0xff]
  %v3624 = vld [vmem:[#allocation2 + $0xf2] sm:$0xff]
  %v3625 = vld [vmem:[#allocation2 + $0x102] sm:$0xff]
  %v3626 = vld [vmem:[#allocation2 + $0x112] sm:$0xff]
  %3643 = vrot.lane.b32.xlu0 %v3595, 64
  %v3644 = vpop.permute.xlu0 %3643
  %3645 = vrot.lane.b32.xlu0 %v3596, 64
  %v3646 = vpop.permute.xlu0 %3645
  %3647 = vrot.lane.b32.xlu0 %v3597, 64
  %v3648 = vpop.permute.xlu0 %3647
  %3649 = vrot.lane.b32.xlu0 %v3598, 64
  %v3650 = vpop.permute.xlu0 %3649
  %3651 = vrot.lane.b32.xlu0 %v3599, 64
  %v3652 = vpop.permute.xlu0 %3651
  %3653 = vrot.lane.b32.xlu0 %v3600, 64
  %v3654 = vpop.permute.xlu0 %3653
  %3655 = vrot.lane.b32.xlu0 %v3601, 64
  %v3656 = vpop.permute.xlu0 %3655
  %3657 = vrot.lane.b32.xlu0 %v3602, 64
  %v3658 = vpop.permute.xlu0 %3657
  %3659 = vrot.lane.b32.xlu0 %v3603, 64
  %v3660 = vpop.permute.xlu0 %3659
  %3661 = vrot.lane.b32.xlu0 %v3604, 64
  %v3662 = vpop.permute.xlu0 %3661
  %3663 = vrot.lane.b32.xlu0 %v3605, 64
  %v3664 = vpop.permute.xlu0 %3663
  %3665 = vrot.lane.b32.xlu0 %v3606, 64
  %v3666 = vpop.permute.xlu0 %3665
  %3667 = vrot.lane.b32.xlu0 %v3607, 64
  %v3668 = vpop.permute.xlu0 %3667
  %3669 = vrot.lane.b32.xlu0 %v3608, 64
  %v3670 = vpop.permute.xlu0 %3669
  %3671 = vrot.lane.b32.xlu0 %v3609, 64
  %v3672 = vpop.permute.xlu0 %3671
  %3673 = vrot.lane.b32.xlu0 %v3610, 64
  %v3674 = vpop.permute.xlu0 %3673
  %v3691 = vsel %vm15, %v3579, %v3644
  %v3692 = vsel %vm15, %v3580, %v3646
  %v3693 = vsel %vm15, %v3581, %v3648
  %v3694 = vsel %vm15, %v3582, %v3650
  %v3695 = vsel %vm15, %v3583, %v3652
  %v3696 = vsel %vm15, %v3584, %v3654
  %v3697 = vsel %vm15, %v3585, %v3656
  %v3698 = vsel %vm15, %v3586, %v3658
  %v3699 = vsel %vm15, %v3587, %v3660
  %v3700 = vsel %vm15, %v3588, %v3662
  %v3701 = vsel %vm15, %v3589, %v3664
  %v3702 = vsel %vm15, %v3590, %v3666
  %v3703 = vsel %vm15, %v3591, %v3668
  %v3704 = vsel %vm15, %v3592, %v3670
  %v3705 = vsel %vm15, %v3593, %v3672
  %v3706 = vsel %vm15, %v3594, %v3674
  %v3707 = vpack.c.bf16 %v3692, %v3691
  %v3708 = vpack.c.bf16 %v3612, %v3611
  %v3709 = vpack.c.bf16 %v3694, %v3693
  %v3710 = vpack.c.bf16 %v3614, %v3613
  %v3711 = vpack.c.bf16 %v3696, %v3695
  %v3712 = vpack.c.bf16 %v3616, %v3615
  %v3713 = vpack.c.bf16 %v3698, %v3697
  %v3714 = vpack.c.bf16 %v3618, %v3617
  %v3715 = vpack.c.bf16 %v3700, %v3699
  %v3716 = vpack.c.bf16 %v3620, %v3619
  %v3717 = vpack.c.bf16 %v3702, %v3701
  %v3718 = vpack.c.bf16 %v3622, %v3621
  %v3719 = vpack.c.bf16 %v3704, %v3703
  %v3720 = vpack.c.bf16 %v3624, %v3623
  %v3721 = vpack.c.bf16 %v3706, %v3705
  %v3722 = vpack.c.bf16 %v3626, %v3625
  %s3723 = scalar_lea.vmem %s1, 864
  %v3724 = vld [vmem:[%s3723] sm:$0xf]
  %v3725 = vld [vmem:[%s3723 + $0x4] sm:$0xf]
  %v3726 = vld [vmem:[%s3723 + $0x8] sm:$0xf]
  %v3727 = vld [vmem:[%s3723 + $0xc] sm:$0xf]
  %v3728 = vld [vmem:[%s3723 + $0x10] sm:$0xf]
  %v3729 = vld [vmem:[%s3723 + $0x14] sm:$0xf]
  %v3730 = vld [vmem:[%s3723 + $0x18] sm:$0xf]
  %v3731 = vld [vmem:[%s3723 + $0x1c] sm:$0xf]
  %v3732 = vld [vmem:[%s3723 + $0x20] sm:$0xf]
  %v3733 = vld [vmem:[%s3723 + $0x24] sm:$0xf]
  %v3734 = vld [vmem:[%s3723 + $0x28] sm:$0xf]
  %v3735 = vld [vmem:[%s3723 + $0x2c] sm:$0xf]
  %v3736 = vld [vmem:[%s3723 + $0x30] sm:$0xf]
  %v3737 = vld [vmem:[%s3723 + $0x34] sm:$0xf]
  %v3738 = vld [vmem:[%s3723 + $0x38] sm:$0xf]
  %v3739 = vld [vmem:[%s3723 + $0x3c] sm:$0xf]
  %v3740 = vld [vmem:[%s3723 + $0x40] sm:$0xf]
  %v3741 = vld [vmem:[%s3723 + $0x44] sm:$0xf]
  %v3742 = vld [vmem:[%s3723 + $0x48] sm:$0xf]
  %v3743 = vld [vmem:[%s3723 + $0x4c] sm:$0xf]
  %v3744 = vld [vmem:[%s3723 + $0x50] sm:$0xf]
  %v3745 = vld [vmem:[%s3723 + $0x54] sm:$0xf]
  %v3746 = vld [vmem:[%s3723 + $0x58] sm:$0xf]
  %v3747 = vld [vmem:[%s3723 + $0x5c] sm:$0xf]
  %v3748 = vld [vmem:[%s73] sm:$0xff]
  %v3749 = vld [vmem:[%s73 + $0x10] sm:$0xff]
  %v3750 = vld [vmem:[%s73 + $0x20] sm:$0xff]
  %v3751 = vld [vmem:[%s73 + $0x30] sm:$0xff]
  %v3752 = vld [vmem:[%s73 + $0x40] sm:$0xff]
  %v3753 = vld [vmem:[%s73 + $0x50] sm:$0xff]
  %v3754 = vld [vmem:[%s73 + $0x60] sm:$0xff]
  %v3755 = vld [vmem:[%s73 + $0x70] sm:$0xff]
  %v3756 = vld [vmem:[%s73 + $0xa0] sm:$0xff]
  %v3757 = vld [vmem:[%s73 + $0xb0] sm:$0xff]
  %v3758 = vld [vmem:[%s73 + $0xc0] sm:$0xff]
  %v3759 = vld [vmem:[%s73 + $0xd0] sm:$0xff]
  %v3760 = vld [vmem:[%s73 + $0xe0] sm:$0xff]
  %v3761 = vld [vmem:[%s73 + $0xf0] sm:$0xff]
  %v3762 = vld [vmem:[%s73 + $0x100] sm:$0xff]
  %v3763 = vld [vmem:[%s73 + $0x110] sm:$0xff]
  %v3764 = vld [vmem:[%s73 + $0x1] sm:$0xff]
  %v3765 = vld [vmem:[%s73 + $0x11] sm:$0xff]
  %v3766 = vld [vmem:[%s73 + $0x21] sm:$0xff]
  %v3767 = vld [vmem:[%s73 + $0x31] sm:$0xff]
  %v3768 = vld [vmem:[%s73 + $0x41] sm:$0xff]
  %v3769 = vld [vmem:[%s73 + $0x51] sm:$0xff]
  %v3770 = vld [vmem:[%s73 + $0x61] sm:$0xff]
  %v3771 = vld [vmem:[%s73 + $0x71] sm:$0xff]
  %v3772 = vld [vmem:[%s73 + $0xa1] sm:$0xff]
  %v3773 = vld [vmem:[%s73 + $0xb1] sm:$0xff]
  %v3774 = vld [vmem:[%s73 + $0xc1] sm:$0xff]
  %v3775 = vld [vmem:[%s73 + $0xd1] sm:$0xff]
  %v3776 = vld [vmem:[%s73 + $0xe1] sm:$0xff]
  %v3777 = vld [vmem:[%s73 + $0xf1] sm:$0xff]
  %v3778 = vld [vmem:[%s73 + $0x101] sm:$0xff]
  %v3779 = vld [vmem:[%s73 + $0x111] sm:$0xff]
  %v3780 = vld [vmem:[%s73 + $0x2] sm:$0xff]
  %v3781 = vld [vmem:[%s73 + $0x12] sm:$0xff]
  %v3782 = vld [vmem:[%s73 + $0x22] sm:$0xff]
  %v3783 = vld [vmem:[%s73 + $0x32] sm:$0xff]
  %v3784 = vld [vmem:[%s73 + $0x42] sm:$0xff]
  %v3785 = vld [vmem:[%s73 + $0x52] sm:$0xff]
  %v3786 = vld [vmem:[%s73 + $0x62] sm:$0xff]
  %v3787 = vld [vmem:[%s73 + $0x72] sm:$0xff]
  %v3788 = vld [vmem:[%s73 + $0xa2] sm:$0xff]
  %v3789 = vld [vmem:[%s73 + $0xb2] sm:$0xff]
  %v3790 = vld [vmem:[%s73 + $0xc2] sm:$0xff]
  %v3791 = vld [vmem:[%s73 + $0xd2] sm:$0xff]
  %v3792 = vld [vmem:[%s73 + $0xe2] sm:$0xff]
  %v3793 = vld [vmem:[%s73 + $0xf2] sm:$0xff]
  %v3794 = vld [vmem:[%s73 + $0x102] sm:$0xff]
  %v3795 = vld [vmem:[%s73 + $0x112] sm:$0xff]
  %3812 = vrot.lane.b32.xlu0 %v3764, 64
  %v3813 = vpop.permute.xlu0 %3812
  %3814 = vrot.lane.b32.xlu0 %v3765, 64
  %v3815 = vpop.permute.xlu0 %3814
  %3816 = vrot.lane.b32.xlu0 %v3766, 64
  %v3817 = vpop.permute.xlu0 %3816
  %3818 = vrot.lane.b32.xlu0 %v3767, 64
  %v3819 = vpop.permute.xlu0 %3818
  %3820 = vrot.lane.b32.xlu0 %v3768, 64
  %v3821 = vpop.permute.xlu0 %3820
  %3822 = vrot.lane.b32.xlu0 %v3769, 64
  %v3823 = vpop.permute.xlu0 %3822
  %3824 = vrot.lane.b32.xlu0 %v3770, 64
  %v3825 = vpop.permute.xlu0 %3824
  %3826 = vrot.lane.b32.xlu0 %v3771, 64
  %v3827 = vpop.permute.xlu0 %3826
  %3828 = vrot.lane.b32.xlu0 %v3772, 64
  %v3829 = vpop.permute.xlu0 %3828
  %3830 = vrot.lane.b32.xlu0 %v3773, 64
  %v3831 = vpop.permute.xlu0 %3830
  %3832 = vrot.lane.b32.xlu0 %v3774, 64
  %v3833 = vpop.permute.xlu0 %3832
  %3834 = vrot.lane.b32.xlu0 %v3775, 64
  %v3835 = vpop.permute.xlu0 %3834
  %3836 = vrot.lane.b32.xlu0 %v3776, 64
  %v3837 = vpop.permute.xlu0 %3836
  %3838 = vrot.lane.b32.xlu0 %v3777, 64
  %v3839 = vpop.permute.xlu0 %3838
  %3840 = vrot.lane.b32.xlu0 %v3778, 64
  %v3841 = vpop.permute.xlu0 %3840
  %3842 = vrot.lane.b32.xlu0 %v3779, 64
  %v3843 = vpop.permute.xlu0 %3842
  %v3860 = vsel %vm15, %v3748, %v3813
  %v3861 = vsel %vm15, %v3749, %v3815
  %v3862 = vsel %vm15, %v3750, %v3817
  %v3863 = vsel %vm15, %v3751, %v3819
  %v3864 = vsel %vm15, %v3752, %v3821
  %v3865 = vsel %vm15, %v3753, %v3823
  %v3866 = vsel %vm15, %v3754, %v3825
  %v3867 = vsel %vm15, %v3755, %v3827
  %v3868 = vsel %vm15, %v3756, %v3829
  %v3869 = vsel %vm15, %v3757, %v3831
  %v3870 = vsel %vm15, %v3758, %v3833
  %v3871 = vsel %vm15, %v3759, %v3835
  %v3872 = vsel %vm15, %v3760, %v3837
  %v3873 = vsel %vm15, %v3761, %v3839
  %v3874 = vsel %vm15, %v3762, %v3841
  %v3875 = vsel %vm15, %v3763, %v3843
  %v3876 = vpack.c.bf16 %v3861, %v3860
  %v3877 = vpack.c.bf16 %v3781, %v3780
  %v3878 = vpack.c.bf16 %v3863, %v3862
  %v3879 = vpack.c.bf16 %v3783, %v3782
  %v3880 = vpack.c.bf16 %v3865, %v3864
  %v3881 = vpack.c.bf16 %v3785, %v3784
  %v3882 = vpack.c.bf16 %v3867, %v3866
  %v3883 = vpack.c.bf16 %v3787, %v3786
  %v3884 = vpack.c.bf16 %v3869, %v3868
  %v3885 = vpack.c.bf16 %v3789, %v3788
  %v3886 = vpack.c.bf16 %v3871, %v3870
  %v3887 = vpack.c.bf16 %v3791, %v3790
  %v3888 = vpack.c.bf16 %v3873, %v3872
  %v3889 = vpack.c.bf16 %v3793, %v3792
  %v3890 = vpack.c.bf16 %v3875, %v3874
  %v3891 = vpack.c.bf16 %v3795, %v3794
  %s3892 = scalar_lea.vmem %s1, 960
  %v3893 = vld [vmem:[%s3892] sm:$0xf]
  %v3894 = vld [vmem:[%s3892 + $0x4] sm:$0xf]
  %v3895 = vld [vmem:[%s3892 + $0x8] sm:$0xf]
  %v3896 = vld [vmem:[%s3892 + $0xc] sm:$0xf]
  %v3897 = vld [vmem:[%s3892 + $0x10] sm:$0xf]
  %v3898 = vld [vmem:[%s3892 + $0x14] sm:$0xf]
  %v3899 = vld [vmem:[%s3892 + $0x18] sm:$0xf]
  %v3900 = vld [vmem:[%s3892 + $0x1c] sm:$0xf]
  %v3901 = vld [vmem:[%s3892 + $0x20] sm:$0xf]
  %v3902 = vld [vmem:[%s3892 + $0x24] sm:$0xf]
  %v3903 = vld [vmem:[%s3892 + $0x28] sm:$0xf]
  %v3904 = vld [vmem:[%s3892 + $0x2c] sm:$0xf]
  %v3905 = vld [vmem:[%s3892 + $0x30] sm:$0xf]
  %v3906 = vld [vmem:[%s3892 + $0x34] sm:$0xf]
  %v3907 = vld [vmem:[%s3892 + $0x38] sm:$0xf]
  %v3908 = vld [vmem:[%s3892 + $0x3c] sm:$0xf]
  %v3909 = vld [vmem:[%s3892 + $0x40] sm:$0xf]
  %v3910 = vld [vmem:[%s3892 + $0x44] sm:$0xf]
  %v3911 = vld [vmem:[%s3892 + $0x48] sm:$0xf]
  %v3912 = vld [vmem:[%s3892 + $0x4c] sm:$0xf]
  %v3913 = vld [vmem:[%s3892 + $0x50] sm:$0xf]
  %v3914 = vld [vmem:[%s3892 + $0x54] sm:$0xf]
  %v3915 = vld [vmem:[%s3892 + $0x58] sm:$0xf]
  %v3916 = vld [vmem:[%s3892 + $0x5c] sm:$0xf]
  %v3941 = vunpack.c.l.b16 %v3893
  %v3942 = vunpack.c.l.b16 %v3894
  %v3943 = vunpack.c.l.b16 %v3895
  %v3944 = vunpack.c.l.b16 %v3896
  %v3945 = vunpack.c.l.b16 %v3897
  %v3946 = vunpack.c.l.b16 %v3898
  %v3947 = vunpack.c.l.b16 %v3899
  %v3948 = vunpack.c.l.b16 %v3900
  %v3949 = vunpack.c.l.b16 %v3901
  %v3950 = vunpack.c.l.b16 %v3902
  %v3951 = vunpack.c.l.b16 %v3903
  %v3952 = vunpack.c.l.b16 %v3904
  %v3953 = vunpack.c.l.b16 %v3905
  %v3954 = vunpack.c.l.b16 %v3906
  %v3955 = vunpack.c.l.b16 %v3907
  %v3956 = vunpack.c.l.b16 %v3908
  %v3957 = vunpack.c.l.b16 %v3909
  %v3958 = vunpack.c.l.b16 %v3910
  %v3959 = vunpack.c.l.b16 %v3911
  %v3960 = vunpack.c.l.b16 %v3912
  %v3961 = vunpack.c.l.b16 %v3913
  %v3962 = vunpack.c.l.b16 %v3914
  %v3963 = vunpack.c.l.b16 %v3915
  %v3964 = vunpack.c.l.b16 %v3916
  %v3965 = vpack.c.b16 %v3942, %v3941
  %v3966 = vpack.c.b16 %v3944, %v3943
  %v3967 = vpack.c.b16 %v3946, %v3945
  %v3968 = vpack.c.b16 %v3948, %v3947
  %v3969 = vpack.c.b16 %v3950, %v3949
  %v3970 = vpack.c.b16 %v3952, %v3951
  %v3971 = vpack.c.b16 %v3954, %v3953
  %v3972 = vpack.c.b16 %v3956, %v3955
  %v3973 = vpack.c.b16 %v3958, %v3957
  %v3974 = vpack.c.b16 %v3960, %v3959
  %v3975 = vpack.c.b16 %v3962, %v3961
  %v3976 = vpack.c.b16 %v3964, %v3963
  %v3990 = vsel %vm15, %v3877, 0
  %v3993 = vsel %vm15, %v3879, 0
  %v3996 = vsel %vm15, %v3881, 0
  %v3999 = vsel %vm15, %v3883, 0
  %v4002 = vsel %vm15, %v3885, 0
  %v4005 = vsel %vm15, %v3887, 0
  %v4008 = vsel %vm15, %v3889, 0
  %v4011 = vsel %vm15, %v3891, 0
  %4013 = vmatprep.subr.bf16.mxu0 0
  %4014 = vmatpush1.bf16.msra.mxu0 %v3965
  %4015 = vmatprep.subr.bf16.mxu0 0
  %4016 = vmatpush1.bf16.msra.mxu0 %v3966
  %4017 = vmatprep.subr.bf16.mxu0 0
  %4018 = vmatpush1.bf16.msra.mxu0 %v3967
  %4019 = vmatprep.subr.bf16.mxu0 0
  %4020 = vmatpush1.bf16.msra.mxu0 %v3968
  %4021 = vmatprep.subr.bf16.mxu0 0
  %4022 = vmatpush1.bf16.msra.mxu0 %v3969
  %4023 = vmatprep.subr.bf16.mxu0 0
  %4024 = vmatpush1.bf16.msra.mxu0 %v3970
  %4025 = vmatprep.subr.bf16.mxu0 0
  %4026 = vmatpush1.bf16.msra.mxu0 %v3971
  %4027 = vmatprep.subr.bf16.mxu0 0
  %4028 = vmatpush1.bf16.msra.mxu0 %v3972
  %4029 = vmatprep.subr.bf16.mxu0 0
  %4030 = vmatpush1.bf16.msra.mxu0 %v3973
  %4031 = vmatprep.subr.bf16.mxu0 0
  %4032 = vmatpush1.bf16.msra.mxu0 %v3974
  %4033 = vmatprep.subr.bf16.mxu0 0
  %4034 = vmatpush1.bf16.msra.mxu0 %v3975
  %4035 = vmatprep.subr.bf16.mxu0 0
  %4036 = vmatpush1.bf16.msra.mxu0 %v3976
  %4037 = vmatprep.subr.bf16.mxu0 0
  %4038 = vmatpush1.bf16.msra.mxu0 0
  %4039 = vmatprep.subr.bf16.mxu0 0
  %4040 = vmatpush1.bf16.msra.mxu0 0
  %4041 = vmatprep.subr.bf16.mxu0 0
  %4042 = vmatpush1.bf16.msra.mxu0 0
  %4043 = vmatprep.subr.bf16.mxu0 0
  %4044 = vmatpush1.bf16.msra.mxu0 0
  %4045 = vmatprep.mubr.bf16.mxu0 %v3990
  %4046 = vmatmul.mubr.bf16.gmra.mrb[0].mxu0 %v3876
  %v4047 = vpop.f32.mrb[0].mxu0
  %v4048 = vadd.f32 0.0, %v4047
  %v4049 = vpop.f32.mrb[0].mxu0
  %v4050 = vpop.f32.mrb[0].mxu0
  %v4051 = vadd.f32 0.0, %v4050
  %v4052 = vpop.f32.mrb[0].mxu0
  %4053 = vmatprep.mubr.bf16.mxu0 %v3993
  %4054 = vmatmul.mubr.bf16.gmra.mrb[0].mxu0 %v3878
  %v4055 = vpop.f32.mrb[0].mxu0
  %v4056 = vadd.f32 0.0, %v4055
  %v4057 = vpop.f32.mrb[0].mxu0
  %v4058 = vpop.f32.mrb[0].mxu0
  %v4059 = vadd.f32 0.0, %v4058
  %v4060 = vpop.f32.mrb[0].mxu0
  %4061 = vmatprep.mubr.bf16.mxu0 %v3996
  %4062 = vmatmul.mubr.bf16.gmra.mrb[0].mxu0 %v3880
  %v4063 = vpop.f32.mrb[0].mxu0
  %v4064 = vadd.f32 0.0, %v4063
  %v4065 = vpop.f32.mrb[0].mxu0
  %v4066 = vpop.f32.mrb[0].mxu0
  %v4067 = vadd.f32 0.0, %v4066
  %v4068 = vpop.f32.mrb[0].mxu0
  %4069 = vmatprep.mubr.bf16.mxu0 %v3999
  %4070 = vmatmul.mubr.bf16.gmra.mrb[0].mxu0 %v3882
  %v4071 = vpop.f32.mrb[0].mxu0
  %v4072 = vadd.f32 0.0, %v4071
  %v4073 = vpop.f32.mrb[0].mxu0
  %v4074 = vpop.f32.mrb[0].mxu0
  %v4075 = vadd.f32 0.0, %v4074
  %v4076 = vpop.f32.mrb[0].mxu0
  %4077 = vmatprep.mubr.bf16.mxu0 %v4002
  %4078 = vmatmul.mubr.bf16.gmra.mrb[0].mxu0 %v3884
  %v4079 = vpop.f32.mrb[0].mxu0
  %v4080 = vadd.f32 0.0, %v4079
  %v4081 = vpop.f32.mrb[0].mxu0
  %v4082 = vpop.f32.mrb[0].mxu0
  %v4083 = vadd.f32 0.0, %v4082
  %v4084 = vpop.f32.mrb[0].mxu0
  %4085 = vmatprep.mubr.bf16.mxu0 %v4005
  %4086 = vmatmul.mubr.bf16.gmra.mrb[0].mxu0 %v3886
  %v4087 = vpop.f32.mrb[0].mxu0
  %v4088 = vadd.f32 0.0, %v4087
  %v4089 = vpop.f32.mrb[0].mxu0
  %v4090 = vpop.f32.mrb[0].mxu0
  %v4091 = vadd.f32 0.0, %v4090
  %v4092 = vpop.f32.mrb[0].mxu0
  %4093 = vmatprep.mubr.bf16.mxu0 %v4008
  %4094 = vmatmul.mubr.bf16.gmra.mrb[0].mxu0 %v3888
  %v4095 = vpop.f32.mrb[0].mxu0
  %v4096 = vadd.f32 0.0, %v4095
  %v4097 = vpop.f32.mrb[0].mxu0
  %v4098 = vpop.f32.mrb[0].mxu0
  %v4099 = vadd.f32 0.0, %v4098
  %v4100 = vpop.f32.mrb[0].mxu0
  %4101 = vmatprep.mubr.bf16.mxu0 %v4011
  %4102 = vmatmul.mubr.bf16.gmra.mrb[0].mxu0 %v3890
  %v4103 = vpop.f32.mrb[0].mxu0
  %v4104 = vadd.f32 0.0, %v4103
  %v4105 = vpop.f32.mrb[0].mxu0
  %v4106 = vpop.f32.mrb[0].mxu0
  %v4107 = vadd.f32 0.0, %v4106
  %v4108 = vpop.f32.mrb[0].mxu0
  %4109 = vdwg.mxu0
  %v4134 = vunpack.c.l.b16 %v3724
  %v4135 = vunpack.c.l.b16 %v3725
  %v4136 = vunpack.c.l.b16 %v3726
  %v4137 = vunpack.c.l.b16 %v3727
  %v4138 = vunpack.c.l.b16 %v3728
  %v4139 = vunpack.c.l.b16 %v3729
  %v4140 = vunpack.c.l.b16 %v3730
  %v4141 = vunpack.c.l.b16 %v3731
  %v4142 = vunpack.c.l.b16 %v3732
  %v4143 = vunpack.c.l.b16 %v3733
  %v4144 = vunpack.c.l.b16 %v3734
  %v4145 = vunpack.c.l.b16 %v3735
  %v4146 = vunpack.c.l.b16 %v3736
  %v4147 = vunpack.c.l.b16 %v3737
  %v4148 = vunpack.c.l.b16 %v3738
  %v4149 = vunpack.c.l.b16 %v3739
  %v4150 = vunpack.c.l.b16 %v3740
  %v4151 = vunpack.c.l.b16 %v3741
  %v4152 = vunpack.c.l.b16 %v3742
  %v4153 = vunpack.c.l.b16 %v3743
  %v4154 = vunpack.c.l.b16 %v3744
  %v4155 = vunpack.c.l.b16 %v3745
  %v4156 = vunpack.c.l.b16 %v3746
  %v4157 = vunpack.c.l.b16 %v3747
  %v4158 = vpack.c.b16 %v4135, %v4134
  %v4159 = vpack.c.b16 %v4137, %v4136
  %v4160 = vpack.c.b16 %v4139, %v4138
  %v4161 = vpack.c.b16 %v4141, %v4140
  %v4162 = vpack.c.b16 %v4143, %v4142
  %v4163 = vpack.c.b16 %v4145, %v4144
  %v4164 = vpack.c.b16 %v4147, %v4146
  %v4165 = vpack.c.b16 %v4149, %v4148
  %v4166 = vpack.c.b16 %v4151, %v4150
  %v4167 = vpack.c.b16 %v4153, %v4152
  %v4168 = vpack.c.b16 %v4155, %v4154
  %v4169 = vpack.c.b16 %v4157, %v4156
  %v4183 = vsel %vm15, %v3708, 0
  %v4186 = vsel %vm15, %v3710, 0
  %v4189 = vsel %vm15, %v3712, 0
  %v4192 = vsel %vm15, %v3714, 0
  %v4195 = vsel %vm15, %v3716, 0
  %v4198 = vsel %vm15, %v3718, 0
  %v4201 = vsel %vm15, %v3720, 0
  %v4204 = vsel %vm15, %v3722, 0
  %4206 = vmatprep.subr.bf16.mxu0 0
  %4207 = vmatpush1.bf16.msra.mxu0 %v4158
  %4208 = vmatprep.subr.bf16.mxu0 0
  %4209 = vmatpush1.bf16.msra.mxu0 %v4159
  %4210 = vmatprep.subr.bf16.mxu0 0
  %4211 = vmatpush1.bf16.msra.mxu0 %v4160
  %4212 = vmatprep.subr.bf16.mxu0 0
  %4213 = vmatpush1.bf16.msra.mxu0 %v4161
  %4214 = vmatprep.subr.bf16.mxu0 0
  %4215 = vmatpush1.bf16.msra.mxu0 %v4162
  %4216 = vmatprep.subr.bf16.mxu0 0
  %4217 = vmatpush1.bf16.msra.mxu0 %v4163
  %4218 = vmatprep.subr.bf16.mxu0 0
  %4219 = vmatpush1.bf16.msra.mxu0 %v4164
  %4220 = vmatprep.subr.bf16.mxu0 0
  %4221 = vmatpush1.bf16.msra.mxu0 %v4165
  %4222 = vmatprep.subr.bf16.mxu0 0
  %4223 = vmatpush1.bf16.msra.mxu0 %v4166
  %4224 = vmatprep.subr.bf16.mxu0 0
  %4225 = vmatpush1.bf16.msra.mxu0 %v4167
  %4226 = vmatprep.subr.bf16.mxu0 0
  %4227 = vmatpush1.bf16.msra.mxu0 %v4168
  %4228 = vmatprep.subr.bf16.mxu0 0
  %4229 = vmatpush1.bf16.msra.mxu0 %v4169
  %4230 = vmatprep.subr.bf16.mxu0 0
  %4231 = vmatpush1.bf16.msra.mxu0 0
  %4232 = vmatprep.subr.bf16.mxu0 0
  %4233 = vmatpush1.bf16.msra.mxu0 0
  %4234 = vmatprep.subr.bf16.mxu0 0
  %4235 = vmatpush1.bf16.msra.mxu0 0
  %4236 = vmatprep.subr.bf16.mxu0 0
  %4237 = vmatpush1.bf16.msra.mxu0 0
  %4238 = vmatprep.mubr.bf16.mxu0 %v4183
  %4239 = vmatmul.mubr.bf16.gmra.mrb[0].mxu0 %v3707
  %v4240 = vpop.f32.mrb[0].mxu0
  %v4241 = vadd.f32 %v4048, %v4240
  %v4242 = vpop.f32.mrb[0].mxu0
  %v4243 = vpop.f32.mrb[0].mxu0
  %v4244 = vadd.f32 %v4051, %v4243
  %v4245 = vpop.f32.mrb[0].mxu0
  %4246 = vmatprep.mubr.bf16.mxu0 %v4186
  %4247 = vmatmul.mubr.bf16.gmra.mrb[0].mxu0 %v3709
  %v4248 = vpop.f32.mrb[0].mxu0
  %v4249 = vadd.f32 %v4056, %v4248
  %v4250 = vpop.f32.mrb[0].mxu0
  %v4251 = vpop.f32.mrb[0].mxu0
  %v4252 = vadd.f32 %v4059, %v4251
  %v4253 = vpop.f32.mrb[0].mxu0
  %4254 = vmatprep.mubr.bf16.mxu0 %v4189
  %4255 = vmatmul.mubr.bf16.gmra.mrb[0].mxu0 %v3711
  %v4256 = vpop.f32.mrb[0].mxu0
  %v4257 = vadd.f32 %v4064, %v4256
  %v4258 = vpop.f32.mrb[0].mxu0
  %v4259 = vpop.f32.mrb[0].mxu0
  %v4260 = vadd.f32 %v4067, %v4259
  %v4261 = vpop.f32.mrb[0].mxu0
  %4262 = vmatprep.mubr.bf16.mxu0 %v4192
  %4263 = vmatmul.mubr.bf16.gmra.mrb[0].mxu0 %v3713
  %v4264 = vpop.f32.mrb[0].mxu0
  %v4265 = vadd.f32 %v4072, %v4264
  %v4266 = vpop.f32.mrb[0].mxu0
  %v4267 = vpop.f32.mrb[0].mxu0
  %v4268 = vadd.f32 %v4075, %v4267
  %v4269 = vpop.f32.mrb[0].mxu0
  %4270 = vmatprep.mubr.bf16.mxu0 %v4195
  %4271 = vmatmul.mubr.bf16.gmra.mrb[0].mxu0 %v3715
  %v4272 = vpop.f32.mrb[0].mxu0
  %v4273 = vadd.f32 %v4080, %v4272
  %v4274 = vpop.f32.mrb[0].mxu0
  %v4275 = vpop.f32.mrb[0].mxu0
  %v4276 = vadd.f32 %v4083, %v4275
  %v4277 = vpop.f32.mrb[0].mxu0
  %4278 = vmatprep.mubr.bf16.mxu0 %v4198
  %4279 = vmatmul.mubr.bf16.gmra.mrb[0].mxu0 %v3717
  %v4280 = vpop.f32.mrb[0].mxu0
  %v4281 = vadd.f32 %v4088, %v4280
  %v4282 = vpop.f32.mrb[0].mxu0
  %v4283 = vpop.f32.mrb[0].mxu0
  %v4284 = vadd.f32 %v4091, %v4283
  %v4285 = vpop.f32.mrb[0].mxu0
  %4286 = vmatprep.mubr.bf16.mxu0 %v4201
  %4287 = vmatmul.mubr.bf16.gmra.mrb[0].mxu0 %v3719
  %v4288 = vpop.f32.mrb[0].mxu0
  %v4289 = vadd.f32 %v4096, %v4288
  %v4290 = vpop.f32.mrb[0].mxu0
  %v4291 = vpop.f32.mrb[0].mxu0
  %v4292 = vadd.f32 %v4099, %v4291
  %v4293 = vpop.f32.mrb[0].mxu0
  %4294 = vmatprep.mubr.bf16.mxu0 %v4204
  %4295 = vmatmul.mubr.bf16.gmra.mrb[0].mxu0 %v3721
  %v4296 = vpop.f32.mrb[0].mxu0
  %v4297 = vadd.f32 %v4104, %v4296
  %v4298 = vpop.f32.mrb[0].mxu0
  %v4299 = vpop.f32.mrb[0].mxu0
  %v4300 = vadd.f32 %v4107, %v4299
  %v4301 = vpop.f32.mrb[0].mxu0
  %4302 = vdwg.mxu0
  %v4303 = vld [vmem:[%s813] sm:$0xff]
  %v4304 = vld [vmem:[%s813 + $0x10] sm:$0xff]
  %v4305 = vld [vmem:[%s813 + $0x20] sm:$0xff]
  %v4306 = vld [vmem:[%s813 + $0x30] sm:$0xff]
  %v4307 = vld [vmem:[%s813 + $0x40] sm:$0xff]
  %v4308 = vld [vmem:[%s813 + $0x50] sm:$0xff]
  %v4309 = vld [vmem:[%s813 + $0x60] sm:$0xff]
  %v4310 = vld [vmem:[%s813 + $0x70] sm:$0xff]
  %v4311 = vld [vmem:[%s813 + $0xa0] sm:$0xff]
  %v4312 = vld [vmem:[%s813 + $0xb0] sm:$0xff]
  %v4313 = vld [vmem:[%s813 + $0xc0] sm:$0xff]
  %v4314 = vld [vmem:[%s813 + $0xd0] sm:$0xff]
  %v4315 = vld [vmem:[%s813 + $0xe0] sm:$0xff]
  %v4316 = vld [vmem:[%s813 + $0xf0] sm:$0xff]
  %v4317 = vld [vmem:[%s813 + $0x100] sm:$0xff]
  %v4318 = vld [vmem:[%s813 + $0x110] sm:$0xff]
  %v4319 = vld [vmem:[%s813 + $0x1] sm:$0xff]
  %v4320 = vld [vmem:[%s813 + $0x11] sm:$0xff]
  %v4321 = vld [vmem:[%s813 + $0x21] sm:$0xff]
  %v4322 = vld [vmem:[%s813 + $0x31] sm:$0xff]
  %v4323 = vld [vmem:[%s813 + $0x41] sm:$0xff]
  %v4324 = vld [vmem:[%s813 + $0x51] sm:$0xff]
  %v4325 = vld [vmem:[%s813 + $0x61] sm:$0xff]
  %v4326 = vld [vmem:[%s813 + $0x71] sm:$0xff]
  %v4327 = vld [vmem:[%s813 + $0xa1] sm:$0xff]
  %v4328 = vld [vmem:[%s813 + $0xb1] sm:$0xff]
  %v4329 = vld [vmem:[%s813 + $0xc1] sm:$0xff]
  %v4330 = vld [vmem:[%s813 + $0xd1] sm:$0xff]
  %v4331 = vld [vmem:[%s813 + $0xe1] sm:$0xff]
  %v4332 = vld [vmem:[%s813 + $0xf1] sm:$0xff]
  %v4333 = vld [vmem:[%s813 + $0x101] sm:$0xff]
  %v4334 = vld [vmem:[%s813 + $0x111] sm:$0xff]
  %v4335 = vld [vmem:[%s813 + $0x2] sm:$0xff]
  %v4336 = vld [vmem:[%s813 + $0x12] sm:$0xff]
  %v4337 = vld [vmem:[%s813 + $0x22] sm:$0xff]
  %v4338 = vld [vmem:[%s813 + $0x32] sm:$0xff]
  %v4339 = vld [vmem:[%s813 + $0x42] sm:$0xff]
  %v4340 = vld [vmem:[%s813 + $0x52] sm:$0xff]
  %v4341 = vld [vmem:[%s813 + $0x62] sm:$0xff]
  %v4342 = vld [vmem:[%s813 + $0x72] sm:$0xff]
  %v4343 = vld [vmem:[%s813 + $0xa2] sm:$0xff]
  %v4344 = vld [vmem:[%s813 + $0xb2] sm:$0xff]
  %v4345 = vld [vmem:[%s813 + $0xc2] sm:$0xff]
  %v4346 = vld [vmem:[%s813 + $0xd2] sm:$0xff]
  %v4347 = vld [vmem:[%s813 + $0xe2] sm:$0xff]
  %v4348 = vld [vmem:[%s813 + $0xf2] sm:$0xff]
  %v4349 = vld [vmem:[%s813 + $0x102] sm:$0xff]
  %v4350 = vld [vmem:[%s813 + $0x112] sm:$0xff]
  %4367 = vrot.lane.b32.xlu0 %v4319, 64
  %v4368 = vpop.permute.xlu0 %4367
  %4369 = vrot.lane.b32.xlu0 %v4320, 64
  %v4370 = vpop.permute.xlu0 %4369
  %4371 = vrot.lane.b32.xlu0 %v4321, 64
  %v4372 = vpop.permute.xlu0 %4371
  %4373 = vrot.lane.b32.xlu0 %v4322, 64
  %v4374 = vpop.permute.xlu0 %4373
  %4375 = vrot.lane.b32.xlu0 %v4323, 64
  %v4376 = vpop.permute.xlu0 %4375
  %4377 = vrot.lane.b32.xlu0 %v4324, 64
  %v4378 = vpop.permute.xlu0 %4377
  %4379 = vrot.lane.b32.xlu0 %v4325, 64
  %v4380 = vpop.permute.xlu0 %4379
  %4381 = vrot.lane.b32.xlu0 %v4326, 64
  %v4382 = vpop.permute.xlu0 %4381
  %4383 = vrot.lane.b32.xlu0 %v4327, 64
  %v4384 = vpop.permute.xlu0 %4383
  %4385 = vrot.lane.b32.xlu0 %v4328, 64
  %v4386 = vpop.permute.xlu0 %4385
  %4387 = vrot.lane.b32.xlu0 %v4329, 64
  %v4388 = vpop.permute.xlu0 %4387
  %4389 = vrot.lane.b32.xlu0 %v4330, 64
  %v4390 = vpop.permute.xlu0 %4389
  %4391 = vrot.lane.b32.xlu0 %v4331, 64
  %v4392 = vpop.permute.xlu0 %4391
  %4393 = vrot.lane.b32.xlu0 %v4332, 64
  %v4394 = vpop.permute.xlu0 %4393
  %4395 = vrot.lane.b32.xlu0 %v4333, 64
  %v4396 = vpop.permute.xlu0 %4395
  %4397 = vrot.lane.b32.xlu0 %v4334, 64
  %v4398 = vpop.permute.xlu0 %4397
  %v4415 = vsel %vm15, %v4303, %v4368
  %v4416 = vsel %vm15, %v4304, %v4370
  %v4417 = vsel %vm15, %v4305, %v4372
  %v4418 = vsel %vm15, %v4306, %v4374
  %v4419 = vsel %vm15, %v4307, %v4376
  %v4420 = vsel %vm15, %v4308, %v4378
  %v4421 = vsel %vm15, %v4309, %v4380
  %v4422 = vsel %vm15, %v4310, %v4382
  %v4423 = vsel %vm15, %v4311, %v4384
  %v4424 = vsel %vm15, %v4312, %v4386
  %v4425 = vsel %vm15, %v4313, %v4388
  %v4426 = vsel %vm15, %v4314, %v4390
  %v4427 = vsel %vm15, %v4315, %v4392
  %v4428 = vsel %vm15, %v4316, %v4394
  %v4429 = vsel %vm15, %v4317, %v4396
  %v4430 = vsel %vm15, %v4318, %v4398
  %v4431 = vpack.c.bf16 %v4416, %v4415
  %v4432 = vpack.c.bf16 %v4336, %v4335
  %v4433 = vpack.c.bf16 %v4418, %v4417
  %v4434 = vpack.c.bf16 %v4338, %v4337
  %v4435 = vpack.c.bf16 %v4420, %v4419
  %v4436 = vpack.c.bf16 %v4340, %v4339
  %v4437 = vpack.c.bf16 %v4422, %v4421
  %v4438 = vpack.c.bf16 %v4342, %v4341
  %v4439 = vpack.c.bf16 %v4424, %v4423
  %v4440 = vpack.c.bf16 %v4344, %v4343
  %v4441 = vpack.c.bf16 %v4426, %v4425
  %v4442 = vpack.c.bf16 %v4346, %v4345
  %v4443 = vpack.c.bf16 %v4428, %v4427
  %v4444 = vpack.c.bf16 %v4348, %v4347
  %v4445 = vpack.c.bf16 %v4430, %v4429
  %v4446 = vpack.c.bf16 %v4350, %v4349
  %s4447 = scalar_lea.vmem %s1, 1056
  %v4448 = vld [vmem:[%s4447] sm:$0xf]
  %v4449 = vld [vmem:[%s4447 + $0x4] sm:$0xf]
  %v4450 = vld [vmem:[%s4447 + $0x8] sm:$0xf]
  %v4451 = vld [vmem:[%s4447 + $0xc] sm:$0xf]
  %v4452 = vld [vmem:[%s4447 + $0x10] sm:$0xf]
  %v4453 = vld [vmem:[%s4447 + $0x14] sm:$0xf]
  %v4454 = vld [vmem:[%s4447 + $0x18] sm:$0xf]
  %v4455 = vld [vmem:[%s4447 + $0x1c] sm:$0xf]
  %v4456 = vld [vmem:[%s4447 + $0x20] sm:$0xf]
  %v4457 = vld [vmem:[%s4447 + $0x24] sm:$0xf]
  %v4458 = vld [vmem:[%s4447 + $0x28] sm:$0xf]
  %v4459 = vld [vmem:[%s4447 + $0x2c] sm:$0xf]
  %v4460 = vld [vmem:[%s4447 + $0x30] sm:$0xf]
  %v4461 = vld [vmem:[%s4447 + $0x34] sm:$0xf]
  %v4462 = vld [vmem:[%s4447 + $0x38] sm:$0xf]
  %v4463 = vld [vmem:[%s4447 + $0x3c] sm:$0xf]
  %v4464 = vld [vmem:[%s4447 + $0x40] sm:$0xf]
  %v4465 = vld [vmem:[%s4447 + $0x44] sm:$0xf]
  %v4466 = vld [vmem:[%s4447 + $0x48] sm:$0xf]
  %v4467 = vld [vmem:[%s4447 + $0x4c] sm:$0xf]
  %v4468 = vld [vmem:[%s4447 + $0x50] sm:$0xf]
  %v4469 = vld [vmem:[%s4447 + $0x54] sm:$0xf]
  %v4470 = vld [vmem:[%s4447 + $0x58] sm:$0xf]
  %v4471 = vld [vmem:[%s4447 + $0x5c] sm:$0xf]
  %v4496 = vunpack.c.l.b16 %v4448
  %v4497 = vunpack.c.l.b16 %v4449
  %v4498 = vunpack.c.l.b16 %v4450
  %v4499 = vunpack.c.l.b16 %v4451
  %v4500 = vunpack.c.l.b16 %v4452
  %v4501 = vunpack.c.l.b16 %v4453
  %v4502 = vunpack.c.l.b16 %v4454
  %v4503 = vunpack.c.l.b16 %v4455
  %v4504 = vunpack.c.l.b16 %v4456
  %v4505 = vunpack.c.l.b16 %v4457
  %v4506 = vunpack.c.l.b16 %v4458
  %v4507 = vunpack.c.l.b16 %v4459
  %v4508 = vunpack.c.l.b16 %v4460
  %v4509 = vunpack.c.l.b16 %v4461
  %v4510 = vunpack.c.l.b16 %v4462
  %v4511 = vunpack.c.l.b16 %v4463
  %v4512 = vunpack.c.l.b16 %v4464
  %v4513 = vunpack.c.l.b16 %v4465
  %v4514 = vunpack.c.l.b16 %v4466
  %v4515 = vunpack.c.l.b16 %v4467
  %v4516 = vunpack.c.l.b16 %v4468
  %v4517 = vunpack.c.l.b16 %v4469
  %v4518 = vunpack.c.l.b16 %v4470
  %v4519 = vunpack.c.l.b16 %v4471
  %v4520 = vpack.c.b16 %v4497, %v4496
  %v4521 = vpack.c.b16 %v4499, %v4498
  %v4522 = vpack.c.b16 %v4501, %v4500
  %v4523 = vpack.c.b16 %v4503, %v4502
  %v4524 = vpack.c.b16 %v4505, %v4504
  %v4525 = vpack.c.b16 %v4507, %v4506
  %v4526 = vpack.c.b16 %v4509, %v4508
  %v4527 = vpack.c.b16 %v4511, %v4510
  %v4528 = vpack.c.b16 %v4513, %v4512
  %v4529 = vpack.c.b16 %v4515, %v4514
  %v4530 = vpack.c.b16 %v4517, %v4516
  %v4531 = vpack.c.b16 %v4519, %v4518
  %v4545 = vsel %vm15, %v4432, 0
  %v4548 = vsel %vm15, %v4434, 0
  %v4551 = vsel %vm15, %v4436, 0
  %v4554 = vsel %vm15, %v4438, 0
  %v4557 = vsel %vm15, %v4440, 0
  %v4560 = vsel %vm15, %v4442, 0
  %v4563 = vsel %vm15, %v4444, 0
  %v4566 = vsel %vm15, %v4446, 0
  %4568 = vmatprep.subr.bf16.mxu0 0
  %4569 = vmatpush1.bf16.msra.mxu0 %v4520
  %4570 = vmatprep.subr.bf16.mxu0 0
  %4571 = vmatpush1.bf16.msra.mxu0 %v4521
  %4572 = vmatprep.subr.bf16.mxu0 0
  %4573 = vmatpush1.bf16.msra.mxu0 %v4522
  %4574 = vmatprep.subr.bf16.mxu0 0
  %4575 = vmatpush1.bf16.msra.mxu0 %v4523
  %4576 = vmatprep.subr.bf16.mxu0 0
  %4577 = vmatpush1.bf16.msra.mxu0 %v4524
  %4578 = vmatprep.subr.bf16.mxu0 0
  %4579 = vmatpush1.bf16.msra.mxu0 %v4525
  %4580 = vmatprep.subr.bf16.mxu0 0
  %4581 = vmatpush1.bf16.msra.mxu0 %v4526
  %4582 = vmatprep.subr.bf16.mxu0 0
  %4583 = vmatpush1.bf16.msra.mxu0 %v4527
  %4584 = vmatprep.subr.bf16.mxu0 0
  %4585 = vmatpush1.bf16.msra.mxu0 %v4528
  %4586 = vmatprep.subr.bf16.mxu0 0
  %4587 = vmatpush1.bf16.msra.mxu0 %v4529
  %4588 = vmatprep.subr.bf16.mxu0 0
  %4589 = vmatpush1.bf16.msra.mxu0 %v4530
  %4590 = vmatprep.subr.bf16.mxu0 0
  %4591 = vmatpush1.bf16.msra.mxu0 %v4531
  %4592 = vmatprep.subr.bf16.mxu0 0
  %4593 = vmatpush1.bf16.msra.mxu0 0
  %4594 = vmatprep.subr.bf16.mxu0 0
  %4595 = vmatpush1.bf16.msra.mxu0 0
  %4596 = vmatprep.subr.bf16.mxu0 0
  %4597 = vmatpush1.bf16.msra.mxu0 0
  %4598 = vmatprep.subr.bf16.mxu0 0
  %4599 = vmatpush1.bf16.msra.mxu0 0
  %4600 = vmatprep.mubr.bf16.mxu0 %v4545
  %4601 = vmatmul.mubr.bf16.gmra.mrb[0].mxu0 %v4431
  %v4602 = vpop.f32.mrb[0].mxu0
  %v4603 = vadd.f32 0.0, %v4602
  %v4604 = vpop.f32.mrb[0].mxu0
  %v4605 = vpop.f32.mrb[0].mxu0
  %v4606 = vadd.f32 0.0, %v4605
  %v4607 = vpop.f32.mrb[0].mxu0
  %4608 = vmatprep.mubr.bf16.mxu0 %v4548
  %4609 = vmatmul.mubr.bf16.gmra.mrb[0].mxu0 %v4433
  %v4610 = vpop.f32.mrb[0].mxu0
  %v4611 = vadd.f32 0.0, %v4610
  %v4612 = vpop.f32.mrb[0].mxu0
  %v4613 = vpop.f32.mrb[0].mxu0
  %v4614 = vadd.f32 0.0, %v4613
  %v4615 = vpop.f32.mrb[0].mxu0
  %4616 = vmatprep.mubr.bf16.mxu0 %v4551
  %4617 = vmatmul.mubr.bf16.gmra.mrb[0].mxu0 %v4435
  %v4618 = vpop.f32.mrb[0].mxu0
  %v4619 = vadd.f32 0.0, %v4618
  %v4620 = vpop.f32.mrb[0].mxu0
  %v4621 = vpop.f32.mrb[0].mxu0
  %v4622 = vadd.f32 0.0, %v4621
  %v4623 = vpop.f32.mrb[0].mxu0
  %4624 = vmatprep.mubr.bf16.mxu0 %v4554
  %4625 = vmatmul.mubr.bf16.gmra.mrb[0].mxu0 %v4437
  %v4626 = vpop.f32.mrb[0].mxu0
  %v4627 = vadd.f32 0.0, %v4626
  %v4628 = vpop.f32.mrb[0].mxu0
  %v4629 = vpop.f32.mrb[0].mxu0
  %v4630 = vadd.f32 0.0, %v4629
  %v4631 = vpop.f32.mrb[0].mxu0
  %4632 = vmatprep.mubr.bf16.mxu0 %v4557
  %4633 = vmatmul.mubr.bf16.gmra.mrb[0].mxu0 %v4439
  %v4634 = vpop.f32.mrb[0].mxu0
  %v4635 = vadd.f32 0.0, %v4634
  %v4636 = vpop.f32.mrb[0].mxu0
  %v4637 = vpop.f32.mrb[0].mxu0
  %v4638 = vadd.f32 0.0, %v4637
  %v4639 = vpop.f32.mrb[0].mxu0
  %4640 = vmatprep.mubr.bf16.mxu0 %v4560
  %4641 = vmatmul.mubr.bf16.gmra.mrb[0].mxu0 %v4441
  %v4642 = vpop.f32.mrb[0].mxu0
  %v4643 = vadd.f32 0.0, %v4642
  %v4644 = vpop.f32.mrb[0].mxu0
  %v4645 = vpop.f32.mrb[0].mxu0
  %v4646 = vadd.f32 0.0, %v4645
  %v4647 = vpop.f32.mrb[0].mxu0
  %4648 = vmatprep.mubr.bf16.mxu0 %v4563
  %4649 = vmatmul.mubr.bf16.gmra.mrb[0].mxu0 %v4443
  %v4650 = vpop.f32.mrb[0].mxu0
  %v4651 = vadd.f32 0.0, %v4650
  %v4652 = vpop.f32.mrb[0].mxu0
  %v4653 = vpop.f32.mrb[0].mxu0
  %v4654 = vadd.f32 0.0, %v4653
  %v4655 = vpop.f32.mrb[0].mxu0
  %4656 = vmatprep.mubr.bf16.mxu0 %v4566
  %4657 = vmatmul.mubr.bf16.gmra.mrb[0].mxu0 %v4445
  %v4658 = vpop.f32.mrb[0].mxu0
  %v4659 = vadd.f32 0.0, %v4658
  %v4660 = vpop.f32.mrb[0].mxu0
  %v4661 = vpop.f32.mrb[0].mxu0
  %v4662 = vadd.f32 0.0, %v4661
  %v4663 = vpop.f32.mrb[0].mxu0
  %4664 = vdwg.mxu0
  %v4665 = vadd.f32 %v4241, %v4603
  %v4666 = vadd.f32 %v4244, %v4606
  %v4667 = vadd.f32 %v4249, %v4611
  %v4668 = vadd.f32 %v4252, %v4614
  %v4669 = vadd.f32 %v4257, %v4619
  %v4670 = vadd.f32 %v4260, %v4622
  %v4671 = vadd.f32 %v4265, %v4627
  %v4672 = vadd.f32 %v4268, %v4630
  %v4673 = vadd.f32 %v4273, %v4635
  %v4674 = vadd.f32 %v4276, %v4638
  %v4675 = vadd.f32 %v4281, %v4643
  %v4676 = vadd.f32 %v4284, %v4646
  %v4677 = vadd.f32 %v4289, %v4651
  %v4678 = vadd.f32 %v4292, %v4654
  %v4679 = vadd.f32 %v4297, %v4659
  %v4680 = vadd.f32 %v4300, %v4662
  %s4681 = scalar_lea.vmem %s2, 3
  %v4682 = vld [vmem:[%s4681] sm:$0x1]
  %v4684 = vlaneseq
  %v4685 = vshrl.u32 %v4684, 7
  %v4686 = vsub.s32 0, %v4685
  %v4687 = vrot.slane %v4682, %v4686
  %v4689 = vadd.f32 %v4665, %v4687
  %v4690 = vadd.f32 %v4666, %v4687
  %v4691 = vadd.f32 %v4667, %v4687
  %v4692 = vadd.f32 %v4668, %v4687
  %v4693 = vadd.f32 %v4669, %v4687
  %v4694 = vadd.f32 %v4670, %v4687
  %v4695 = vadd.f32 %v4671, %v4687
  %v4696 = vadd.f32 %v4672, %v4687
  %v4697 = vadd.f32 %v4673, %v4687
  %v4698 = vadd.f32 %v4674, %v4687
  %v4699 = vadd.f32 %v4675, %v4687
  %v4700 = vadd.f32 %v4676, %v4687
  %v4701 = vadd.f32 %v4677, %v4687
  %v4702 = vadd.f32 %v4678, %v4687
  %v4703 = vadd.f32 %v4679, %v4687
  %v4704 = vadd.f32 %v4680, %v4687
  %v4705 = vadd.f32 %v4689, %v2389
  %v4706 = vadd.f32 %v4690, %v2390
  %v4707 = vadd.f32 %v4691, %v2391
  %v4708 = vadd.f32 %v4692, %v2392
  %v4709 = vadd.f32 %v4693, %v2393
  %v4710 = vadd.f32 %v4694, %v2394
  %v4711 = vadd.f32 %v4695, %v2395
  %v4712 = vadd.f32 %v4696, %v2396
  %v4713 = vadd.f32 %v4697, %v2397
  %v4714 = vadd.f32 %v4698, %v2398
  %v4715 = vadd.f32 %v4699, %v2399
  %v4716 = vadd.f32 %v4700, %v2400
  %v4717 = vadd.f32 %v4701, %v2401
  %v4718 = vadd.f32 %v4702, %v2402
  %v4719 = vadd.f32 %v4703, %v2403
  %v4720 = vadd.f32 %v4704, %v2404
  %v4721 = vmax.f32 %v4705, 0.0
  %v4722 = vmax.f32 %v4706, 0.0
  %v4723 = vmax.f32 %v4707, 0.0
  %v4724 = vmax.f32 %v4708, 0.0
  %v4725 = vmax.f32 %v4709, 0.0
  %v4726 = vmax.f32 %v4710, 0.0
  %v4727 = vmax.f32 %v4711, 0.0
  %v4728 = vmax.f32 %v4712, 0.0
  %v4729 = vmax.f32 %v4713, 0.0
  %v4730 = vmax.f32 %v4714, 0.0
  %v4731 = vmax.f32 %v4715, 0.0
  %v4732 = vmax.f32 %v4716, 0.0
  %v4733 = vmax.f32 %v4717, 0.0
  %v4734 = vmax.f32 %v4718, 0.0
  %v4735 = vmax.f32 %v4719, 0.0
  %v4736 = vmax.f32 %v4720, 0.0
  %4737 = vst.msk [vmem:[%s3] sm:$0xff] %vm15, %v4721
  %4738 = vst.msk [vmem:[%s3 + $0x8] sm:$0xff] %vm15, %v4722
  %4739 = vst.msk [vmem:[%s3 + $0x10] sm:$0xff] %vm15, %v4723
  %4740 = vst.msk [vmem:[%s3 + $0x18] sm:$0xff] %vm15, %v4724
  %4741 = vst.msk [vmem:[%s3 + $0x20] sm:$0xff] %vm15, %v4725
  %4742 = vst.msk [vmem:[%s3 + $0x28] sm:$0xff] %vm15, %v4726
  %4743 = vst.msk [vmem:[%s3 + $0x30] sm:$0xff] %vm15, %v4727
  %4744 = vst.msk [vmem:[%s3 + $0x38] sm:$0xff] %vm15, %v4728
  %4745 = vst.msk [vmem:[%s3 + $0x40] sm:$0xff] %vm15, %v4729
  %4746 = vst.msk [vmem:[%s3 + $0x48] sm:$0xff] %vm15, %v4730
  %4747 = vst.msk [vmem:[%s3 + $0x50] sm:$0xff] %vm15, %v4731
  %4748 = vst.msk [vmem:[%s3 + $0x58] sm:$0xff] %vm15, %v4732
  %4749 = vst.msk [vmem:[%s3 + $0x60] sm:$0xff] %vm15, %v4733
  %4750 = vst.msk [vmem:[%s3 + $0x68] sm:$0xff] %vm15, %v4734
  %4751 = vst.msk [vmem:[%s3 + $0x70] sm:$0xff] %vm15, %v4735
  %4752 = vst.msk [vmem:[%s3 + $0x78] sm:$0xff] %vm15, %v4736
  // Predicated region
  $region14: #{layer1_forward.1} parent=0 // pred_check
    _
  $region15: #{layer1_forward.1} parent=0 // pred_check_branch
    %4754 = sbr.rel (0) target = $region17
  $region16: #{layer1_forward.1} parent=0 // pred_region
    _
  $region17: #{layer1_forward.1} parent=0 // pred_fallthru
    _
  // Predicated region
  $region18: #{layer1_forward.1} parent=0 // pred_check
    _
  $region19: #{layer1_forward.1} parent=0 // pred_check_branch
    %4756 = sbr.rel (0) target = $region21
  $region20: #{layer1_forward.1} parent=0 // pred_region
    _
  $region21: #{layer1_forward.1} parent=0 // pred_fallthru
    _

</llo_original>
